<compile_context>
chip_gen: v7x
topology: tpu7x:2x2x1
jax: 0.10.0
libtpu: 0.0.40
codegen_flags: <defaults>
</compile_context>

<pallas_src>
import functools
import math

import jax
import jax.numpy as jnp
from jax import lax
from jax.experimental import pallas as pl
from jax.experimental.pallas import tpu as pltpu


# Explicit VMEM budget: above the 16/32 MiB scoped defaults (v5e / v6e+v7x),
# ~25% below v7x's 64 MiB physical per-TC VMEM.
_VMEM_LIMIT = 48 * 1024 * 1024


# ----------------------------------------------------------------------------
# In-kernel helpers
# ----------------------------------------------------------------------------
def _layernorm(h, gamma, beta, eps=1e-5):
    mu = jnp.mean(h, axis=-1, keepdims=True)
    var = jnp.mean(jnp.square(h - mu), axis=-1, keepdims=True)
    return (h - mu) * lax.rsqrt(var + eps) * gamma + beta


def _attn_core(q, k, v, mask, scale):
    # batched scores (Bb, T, S) on the MXU with f32 accumulation
    s = jnp.einsum("btd,bsd->bts",
                   q.astype(jnp.bfloat16), k.astype(jnp.bfloat16),
                   preferred_element_type=jnp.float32) * scale
    s = jnp.where(mask, s, -1e9)
    s = s - jnp.max(s, axis=-1, keepdims=True)
    p = jnp.exp(s)
    p = p * pl.reciprocal(jnp.sum(p, axis=-1, keepdims=True), approx=True)
    return jnp.einsum("bts,bsd->btd",
                      p.astype(jnp.bfloat16), v.astype(jnp.bfloat16),
                      preferred_element_type=jnp.float32)


# ----------------------------------------------------------------------------
# Fused decoder layer kernel: self-attn -> add&LN -> cross-attn -> add&LN ->
# FFN -> add&LN, one batch-block per grid step, activations stay in VMEM.
# ----------------------------------------------------------------------------
def _decoder_layer_kernel(emb_scale,
                          x_ref, pe_ref, enc_ref, sl_ref, el_ref,
                          wqkv_ref, bqkv_ref, wos_ref, bos_ref, g1_ref, b1_ref,
                          wq_ref, bq_ref, wkv_ref, bkv_ref, woc_ref, boc_ref,
                          g2_ref, b2_ref,
                          w1_ref, b1f_ref, w2_ref, b2f_ref, g3_ref, b3_ref,
                          o_ref):
    Bb, T, D = x_ref.shape
    S = enc_ref.shape[1]
    scale = 1.0 / math.sqrt(D)

    # fused embedding scale + positional encoding (identity for layers > 0)
    x = x_ref[...].astype(jnp.float32) * emb_scale + pe_ref[...]
    xf = x.reshape(Bb * T, D)

    # pad & causal masks built in-kernel from the per-batch lengths
    sl = sl_ref[...]                                   # (Bb, 1, 1) int32
    el = el_ref[...]
    qi_t = lax.broadcasted_iota(jnp.int32, (Bb, T, T), 1)
    kj_t = lax.broadcasted_iota(jnp.int32, (Bb, T, T), 2)
    self_mask = (qi_t < sl) & (kj_t < sl) & (kj_t <= qi_t)
    qi_s = lax.broadcasted_iota(jnp.int32, (Bb, T, S), 1)
    kj_s = lax.broadcasted_iota(jnp.int32, (Bb, T, S), 2)
    cross_mask = (qi_s < sl) & (kj_s < el)

    # ---- masked causal self-attention + add & LN ---------------------------
    qkv = jnp.dot(xf.astype(jnp.bfloat16), wqkv_ref[...],
                  preferred_element_type=jnp.float32) + bqkv_ref[...]
    q = qkv[:, :D].reshape(Bb, T, D)
    k = qkv[:, D:2 * D].reshape(Bb, T, D)
    v = qkv[:, 2 * D:].reshape(Bb, T, D)
    sa = _attn_core(q, k, v, self_mask, scale).reshape(Bb * T, D)
    sa = jnp.dot(sa.astype(jnp.bfloat16), wos_ref[...],
                 preferred_element_type=jnp.float32) + bos_ref[...]
    xf = _layernorm(xf + sa, g1_ref[...], b1_ref[...])

    # ---- masked cross-attention over the encoder repr + add & LN ----------
    q = (jnp.dot(xf.astype(jnp.bfloat16), wq_ref[...],
                 preferred_element_type=jnp.float32)
         + bq_ref[...]).reshape(Bb, T, D)
    encf = enc_ref[...].reshape(Bb * S, D)             # bf16 rows
    kv = jnp.dot(encf.astype(jnp.bfloat16), wkv_ref[...],
                 preferred_element_type=jnp.float32) + bkv_ref[...]
    k = kv[:, :D].reshape(Bb, S, D)
    v = kv[:, D:].reshape(Bb, S, D)
    ca = _attn_core(q, k, v, cross_mask, scale).reshape(Bb * T, D)
    ca = jnp.dot(ca.astype(jnp.bfloat16), woc_ref[...],
                 preferred_element_type=jnp.float32) + boc_ref[...]
    xf = _layernorm(xf + ca, g2_ref[...], b2_ref[...])

    # ---- position-wise FFN + add & LN --------------------------------------
    h = jnp.dot(xf.astype(jnp.bfloat16), w1_ref[...],
                preferred_element_type=jnp.float32) + b1f_ref[...]
    h = jnp.maximum(h, 0.0)                            # ReLU
    y = jnp.dot(h.astype(jnp.bfloat16), w2_ref[...],
                preferred_element_type=jnp.float32) + b2f_ref[...]
    xf = _layernorm(xf + y, g3_ref[...], b3_ref[...])

    o_ref[...] = xf.reshape(Bb, T, D).astype(o_ref.dtype)


# ----------------------------------------------------------------------------
# Vocab-tiled output projection + log-softmax (online max / log-sum-exp in
# VMEM scratch; 2-pass recompute so no (tm, Vp) block is ever resident).
# ----------------------------------------------------------------------------
def _out_logsoftmax_kernel(x_ref, w_ref, b_ref, o_ref, m_sc, l_sc):
    phase = pl.program_id(1)
    j = pl.program_id(2)

    logits = jnp.dot(x_ref[...].astype(jnp.bfloat16), w_ref[...],
                     preferred_element_type=jnp.float32) + b_ref[...]

    @pl.when(jnp.logical_and(phase == 0, j == 0))
    def _():
        m_sc[...] = jnp.full(m_sc.shape, -jnp.inf, m_sc.dtype)
        l_sc[...] = jnp.zeros(l_sc.shape, l_sc.dtype)

    @pl.when(phase == 0)
    def _():
        m_prev = m_sc[...]
        m_new = jnp.maximum(m_prev, jnp.max(logits, axis=-1, keepdims=True))
        l_sc[...] = (l_sc[...] * jnp.exp(m_prev - m_new)
                     + jnp.sum(jnp.exp(logits - m_new), axis=-1, keepdims=True))
        m_sc[...] = m_new
        o_ref[...] = logits            # provisional; rewritten in pass 1

    @pl.when(phase == 1)
    def _():
        o_ref[...] = logits - (m_sc[...] + jnp.log(l_sc[...]))


# ----------------------------------------------------------------------------
# Wrappers (grids, BlockSpecs, tile policies)
# ----------------------------------------------------------------------------
def _const_spec(arr):
    """BlockSpec for a grid-invariant operand (weights / biases / LN params).

    Constant block index => never re-DMAed; Buffered(1) drops the useless
    second pipeline buffer and halves its VMEM footprint (matters on v7x).
    """
    nd = arr.ndim
    return pl.BlockSpec(arr.shape, lambda *_args, _nd=nd: (0,) * _nd,
                        pipeline_mode=pl.Buffered(1))


def _batch_block(B, T, target_rows=256):
    """Batches per grid step: fill the MXU (>= 256 rows) when B allows."""
    if B * T <= target_rows:
        return B
    bb = max(1, target_rows // T)
    while B % bb:
        bb -= 1
    return bb


def _row_tile(n, cap=256):
    """Row tile: whole array when small; otherwise <= 256 rows (MXU-matched)."""
    if n <= cap:
        return n
    for t in (cap, 128, 64, 32, 16, 8):
        if n % t == 0:
            return t
    return n


def decoder_layer(x, enc, sl3, el3, lp, pe, emb_scale):
    B, T, D = x.shape
    S = enc.shape[1]
    Bb = _batch_block(B, T)

    p_sa, p_ca, p_ff = lp["self_attn"], lp["cross_attn"], lp["ffn"]
    weights = [
        p_sa["wqkv"], p_sa["bqkv"].reshape(1, -1), p_sa["wo"],
        p_sa["bo"].reshape(1, -1), p_sa["ln_g"].reshape(1, -1),
        p_sa["ln_b"].reshape(1, -1),
        p_ca["wq"], p_ca["bq"].reshape(1, -1), p_ca["wkv"],
        p_ca["bkv"].reshape(1, -1), p_ca["wo"], p_ca["bo"].reshape(1, -1),
        p_ca["ln_g"].reshape(1, -1), p_ca["ln_b"].reshape(1, -1),
        p_ff["w1"], p_ff["b1"].reshape(1, -1), p_ff["w2"],
        p_ff["b2"].reshape(1, -1), p_ff["ln_g"].reshape(1, -1),
        p_ff["ln_b"].reshape(1, -1),
    ]

    in_specs = [
        pl.BlockSpec((Bb, T, D), lambda b: (b, 0, 0)),                 # x
        pl.BlockSpec((T, D), lambda b: (0, 0),
                     pipeline_mode=pl.Buffered(1)),                    # pos enc
        pl.BlockSpec((Bb, S, D), lambda b: (b, 0, 0)),                 # enc repr
        pl.BlockSpec((Bb, 1, 1), lambda b: (b, 0, 0)),                 # seq_len
        pl.BlockSpec((Bb, 1, 1), lambda b: (b, 0, 0)),                 # enc_len
    ] + [_const_spec(w) for w in weights]

    kern = functools.partial(_decoder_layer_kernel, emb_scale)
    return pl.pallas_call(
        kern,
        grid=(B // Bb,),
        in_specs=in_specs,
        out_specs=pl.BlockSpec((Bb, T, D), lambda b: (b, 0, 0)),
        out_shape=jax.ShapeDtypeStruct((B, T, D), jnp.bfloat16),
        compiler_params=pltpu.CompilerParams(
            dimension_semantics=("parallel",),
            vmem_limit_bytes=_VMEM_LIMIT),
    )(x, pe, enc, sl3, el3, *weights)


def output_log_softmax(x, w, b):
    B, T, D = x.shape
    N = B * T
    V = w.shape[1]
    tv = min(512, pl.cdiv(V, 128) * 128)        # lane-dense vocab tile
    Vp = pl.cdiv(V, tv) * tv
    pad = Vp - V
    if pad:
        # zero-pad weight columns; -1e30 bias makes padded logits vanish in
        # the softmax so the real-column log-probs stay exact.
        w = jnp.pad(w, ((0, 0), (0, pad)))
        b = jnp.pad(b, (0, pad), constant_values=-1e30)
    xf = x.reshape(N, D)
    tm = _row_tile(N)

    out = pl.pallas_call(
        _out_logsoftmax_kernel,
        grid=(N // tm, 2, Vp // tv),            # rows x {stats, write} x vocab
        in_specs=[
            pl.BlockSpec((tm, D), lambda i, p, j: (i, 0)),
            pl.BlockSpec((D, tv), lambda i, p, j: (0, j)),
            pl.BlockSpec((1, tv), lambda i, p, j: (0, j)),
        ],
        out_specs=pl.BlockSpec((tm, tv), lambda i, p, j: (i, j)),
        out_shape=jax.ShapeDtypeStruct((N, Vp), jnp.float32),
        scratch_shapes=[pltpu.VMEM((tm, 1), jnp.float32),
                        pltpu.VMEM((tm, 1), jnp.float32)],
        compiler_params=pltpu.CompilerParams(
            dimension_semantics=("parallel", "arbitrary", "arbitrary"),
            vmem_limit_bytes=_VMEM_LIMIT),
    )(xf, w, b.reshape(1, Vp))
    return out[:, :V].reshape(B, T, V)


# ----------------------------------------------------------------------------
# Model glue (plain JAX: embedding gather + layer loop)
# ----------------------------------------------------------------------------
def sinusoidal_pe(max_len, d_model):
    pos = jnp.arange(max_len, dtype=jnp.float32)[:, None]
    i = jnp.arange(d_model // 2, dtype=jnp.float32)[None, :]
    angle = pos / jnp.power(10000.0, (2.0 * i) / d_model)
    pe = jnp.zeros((max_len, d_model), jnp.float32)
    pe = pe.at[:, 0::2].set(jnp.sin(angle))
    pe = pe.at[:, 1::2].set(jnp.cos(angle))
    return pe


def transformer_decoder_forward(seq, seq_len, enc_repr, enc_len, params):
    B, T = seq.shape
    D = params["embed_table"].shape[1]

    # TODO(synk): embedding gather stays in XLA (no clean rectangular
    #             BlockSpec); the sqrt(D) scale and positional-encoding add
    #             are fused into the first decoder-layer kernel.
    x = jnp.take(params["embed_table"], seq, axis=0)           # (B, T, D) f32
    enc_bf = enc_repr.astype(jnp.bfloat16)                     # halve per-layer DMA
    sl3 = seq_len.astype(jnp.int32).reshape(B, 1, 1)
    el3 = enc_len.astype(jnp.int32).reshape(B, 1, 1)

    pe0 = params["pos_enc"][:T]
    pe_zero = jnp.zeros((T, D), jnp.float32)
    for li, lp in enumerate(params["layers"]):
        pe = pe0 if li == 0 else pe_zero
        emb_scale = math.sqrt(D) if li == 0 else 1.0
        x = decoder_layer(x, enc_bf, sl3, el3, lp, pe, emb_scale)

    # TODO(synk): attention keeps the full (T,T)/(T,S) score matrix per batch
    #             block; for long sequences convert to a flash-style online
    #             softmax over KV tiles (extra grid axis + m/l/acc scratch).
    return output_log_softmax(x, params["w_out"], params["b_out"])


# ----------------------------------------------------------------------------
# Deterministic parameter init (synthetic weights; no checkpoint load)
# Weights stored in bf16 (MXU operands), biases / LN params in f32.
# ----------------------------------------------------------------------------
def init_params(key, in_vocab, embed, out_vocab, ff_size, n_layers, max_len=64):
    keys = iter(jax.random.split(key, 2 + n_layers * 7))

    def dense(din, dout):
        w = (jax.random.normal(next(keys), (din, dout), jnp.float32) * 0.02
             ).astype(jnp.bfloat16)
        return w, jnp.zeros((dout,), jnp.float32)

    def ln(d):
        return jnp.ones((d,), jnp.float32), jnp.zeros((d,), jnp.float32)

    embed_table = jax.random.normal(next(keys), (in_vocab, embed), jnp.float32) * 0.02

    layers = []
    for _ in range(n_layers):
        wqkv, bqkv = dense(embed, 3 * embed)
        wo_s, bo_s = dense(embed, embed)
        g1, b1ln = ln(embed)
        wq, bq = dense(embed, embed)
        wkv, bkv = dense(embed, 2 * embed)
        wo_c, bo_c = dense(embed, embed)
        g2, b2ln = ln(embed)
        w1, b1 = dense(embed, ff_size)
        w2, b2 = dense(ff_size, embed)
        g3, b3ln = ln(embed)
        layers.append(dict(
            self_attn=dict(wqkv=wqkv, bqkv=bqkv, wo=wo_s, bo=bo_s,
                           ln_g=g1, ln_b=b1ln),
            cross_attn=dict(wq=wq, bq=bq, wkv=wkv, bkv=bkv, wo=wo_c, bo=bo_c,
                            ln_g=g2, ln_b=b2ln),
            ffn=dict(w1=w1, b1=b1, w2=w2, b2=b2, ln_g=g3, ln_b=b3ln),
        ))

    w_out, b_out = dense(embed, out_vocab)
    return dict(
        embed_table=embed_table,
        pos_enc=sinusoidal_pe(max_len, embed),
        layers=layers,
        w_out=w_out,
        b_out=b_out,
    )


# ----------------------------------------------------------------------------
if __name__ == "__main__":
    # lane-dense model dims (embed / ff multiples of 128); out_vocab=40 is
    # padded to one 128-wide vocab tile inside output_log_softmax and sliced.
    B, T, S = 2, 8, 8
    in_vocab, embed, out_vocab, ff_size = 64, 128, 40, 256
    n_layers, n_heads, p_dropout = 2, 4, 0.1
    # TODO(synk): nHeads unused (PureCorrelation is single-head); dropout is
    #             identity in eval mode.

    key = jax.random.PRNGKey(0)
    k_seq, k_enc, k_par = jax.random.split(key, 3)

    seq = jax.random.randint(k_seq, (B, T), 0, in_vocab, dtype=jnp.int32)
    seq_len = jnp.array([8, 5], dtype=jnp.int32)
    enc_repr = jax.random.normal(k_enc, (B, S, embed), jnp.float32)
    enc_len = jnp.array([8, 6], dtype=jnp.int32)

    params = init_params(k_par, in_vocab, embed, out_vocab, ff_size, n_layers)

    fwd = jax.jit(transformer_decoder_forward)
    pred = fwd(seq, seq_len, enc_repr, enc_len, params)
    jax.block_until_ready(pred)

    assert pred.shape == (B, T, out_vocab), pred.shape
    assert bool(jnp.all(jnp.isfinite(pred)))
    # log-softmax rows should sum (in prob space) to ~1
    assert bool(jnp.allclose(jnp.sum(jnp.exp(pred), axis=-1), 1.0, atol=1e-4))
    print("KERNEL_OK")
</pallas_src>

<mosaic_0001>
module attributes {stable_mosaic.version = 11 : i64} {
  func.func @_decoder_layer_kernel(%arg0: i32, %arg1: memref<2x8x128xf32, #tpu.memory_space<vmem>>, %arg2: memref<8x128xf32, #tpu.memory_space<vmem>>, %arg3: memref<2x8x128xbf16, #tpu.memory_space<vmem>>, %arg4: memref<2x1x1xi32, #tpu.memory_space<vmem>>, %arg5: memref<2x1x1xi32, #tpu.memory_space<vmem>>, %arg6: memref<128x384xbf16, #tpu.memory_space<vmem>>, %arg7: memref<1x384xf32, #tpu.memory_space<vmem>>, %arg8: memref<128x128xbf16, #tpu.memory_space<vmem>>, %arg9: memref<1x128xf32, #tpu.memory_space<vmem>>, %arg10: memref<1x128xf32, #tpu.memory_space<vmem>>, %arg11: memref<1x128xf32, #tpu.memory_space<vmem>>, %arg12: memref<128x128xbf16, #tpu.memory_space<vmem>>, %arg13: memref<1x128xf32, #tpu.memory_space<vmem>>, %arg14: memref<128x256xbf16, #tpu.memory_space<vmem>>, %arg15: memref<1x256xf32, #tpu.memory_space<vmem>>, %arg16: memref<128x128xbf16, #tpu.memory_space<vmem>>, %arg17: memref<1x128xf32, #tpu.memory_space<vmem>>, %arg18: memref<1x128xf32, #tpu.memory_space<vmem>>, %arg19: memref<1x128xf32, #tpu.memory_space<vmem>>, %arg20: memref<128x256xbf16, #tpu.memory_space<vmem>>, %arg21: memref<1x256xf32, #tpu.memory_space<vmem>>, %arg22: memref<256x128xbf16, #tpu.memory_space<vmem>>, %arg23: memref<1x128xf32, #tpu.memory_space<vmem>>, %arg24: memref<1x128xf32, #tpu.memory_space<vmem>>, %arg25: memref<1x128xf32, #tpu.memory_space<vmem>>, %arg26: memref<2x8x128xbf16, #tpu.memory_space<vmem>>) attributes {dimension_semantics = [#tpu.dimension_semantics<parallel>], iteration_bounds = array<i64: 1>, scalar_prefetch = 0 : i64, scratch_operands = 0 : i64, tpu.core_type = #tpu.core_type<tc>, window_params = [{transform_indices = @transform_0, window_bounds = array<i64: 2, 8, 128>}, {pipeline_mode = #tpu.pipeline_mode<synchronous>, transform_indices = @transform_1, window_bounds = array<i64: 8, 128>}, {transform_indices = @transform_2, window_bounds = array<i64: 2, 8, 128>}, {transform_indices = @transform_3, window_bounds = array<i64: 2, 1, 1>}, {transform_indices = @transform_4, window_bounds = array<i64: 2, 1, 1>}, {pipeline_mode = #tpu.pipeline_mode<synchronous>, transform_indices = @transform_5, window_bounds = array<i64: 128, 384>}, {pipeline_mode = #tpu.pipeline_mode<synchronous>, transform_indices = @transform_6, window_bounds = array<i64: 1, 384>}, {pipeline_mode = #tpu.pipeline_mode<synchronous>, transform_indices = @transform_7, window_bounds = array<i64: 128, 128>}, {pipeline_mode = #tpu.pipeline_mode<synchronous>, transform_indices = @transform_8, window_bounds = array<i64: 1, 128>}, {pipeline_mode = #tpu.pipeline_mode<synchronous>, transform_indices = @transform_9, window_bounds = array<i64: 1, 128>}, {pipeline_mode = #tpu.pipeline_mode<synchronous>, transform_indices = @transform_10, window_bounds = array<i64: 1, 128>}, {pipeline_mode = #tpu.pipeline_mode<synchronous>, transform_indices = @transform_11, window_bounds = array<i64: 128, 128>}, {pipeline_mode = #tpu.pipeline_mode<synchronous>, transform_indices = @transform_12, window_bounds = array<i64: 1, 128>}, {pipeline_mode = #tpu.pipeline_mode<synchronous>, transform_indices = @transform_13, window_bounds = array<i64: 128, 256>}, {pipeline_mode = #tpu.pipeline_mode<synchronous>, transform_indices = @transform_14, window_bounds = array<i64: 1, 256>}, {pipeline_mode = #tpu.pipeline_mode<synchronous>, transform_indices = @transform_15, window_bounds = array<i64: 128, 128>}, {pipeline_mode = #tpu.pipeline_mode<synchronous>, transform_indices = @transform_16, window_bounds = array<i64: 1, 128>}, {pipeline_mode = #tpu.pipeline_mode<synchronous>, transform_indices = @transform_17, window_bounds = array<i64: 1, 128>}, {pipeline_mode = #tpu.pipeline_mode<synchronous>, transform_indices = @transform_18, window_bounds = array<i64: 1, 128>}, {pipeline_mode = #tpu.pipeline_mode<synchronous>, transform_indices = @transform_19, window_bounds = array<i64: 128, 256>}, {pipeline_mode = #tpu.pipeline_mode<synchronous>, transform_indices = @transform_20, window_bounds = array<i64: 1, 256>}, {pipeline_mode = #tpu.pipeline_mode<synchronous>, transform_indices = @transform_21, window_bounds = array<i64: 256, 128>}, {pipeline_mode = #tpu.pipeline_mode<synchronous>, transform_indices = @transform_22, window_bounds = array<i64: 1, 128>}, {pipeline_mode = #tpu.pipeline_mode<synchronous>, transform_indices = @transform_23, window_bounds = array<i64: 1, 128>}, {pipeline_mode = #tpu.pipeline_mode<synchronous>, transform_indices = @transform_24, window_bounds = array<i64: 1, 128>}, {transform_indices = @transform_25, window_bounds = array<i64: 2, 8, 128>}]} {
    %c0 = arith.constant 0 : index
    %c0_0 = arith.constant 0 : index
    %c0_1 = arith.constant 0 : index
    %0 = vector.load %arg1[%c0, %c0_0, %c0_1] : memref<2x8x128xf32, #tpu.memory_space<vmem>>, vector<2x8x128xf32>
    %cst = arith.constant 11.3137083 : f32
    %1 = vector.broadcast %cst : f32 to vector<2x8x128xf32>
    %2 = arith.mulf %0, %1 : vector<2x8x128xf32>
    %c0_2 = arith.constant 0 : index
    %c0_3 = arith.constant 0 : index
    %3 = vector.load %arg2[%c0_2, %c0_3] : memref<8x128xf32, #tpu.memory_space<vmem>>, vector<8x128xf32>
    %4 = vector.shape_cast %3 : vector<8x128xf32> to vector<1x8x128xf32>
    %5 = vector.broadcast %4 : vector<1x8x128xf32> to vector<2x8x128xf32>
    %6 = arith.addf %2, %5 : vector<2x8x128xf32>
    %7 = vector.shape_cast %6 : vector<2x8x128xf32> to vector<16x128xf32>
    %c0_4 = arith.constant 0 : index
    %c0_5 = arith.constant 0 : index
    %c0_6 = arith.constant 0 : index
    %8 = vector.load %arg4[%c0_4, %c0_5, %c0_6] : memref<2x1x1xi32, #tpu.memory_space<vmem>>, vector<2x1x1xi32>
    %c0_7 = arith.constant 0 : index
    %c0_8 = arith.constant 0 : index
    %c0_9 = arith.constant 0 : index
    %9 = vector.load %arg5[%c0_7, %c0_8, %c0_9] : memref<2x1x1xi32, #tpu.memory_space<vmem>>, vector<2x1x1xi32>
    %10 = tpu.iota {dimensions = array<i32: 1>} : vector<2x8x8xi32>
    %11 = tpu.iota {dimensions = array<i32: 2>} : vector<2x8x8xi32>
    %12 = vector.broadcast %8 : vector<2x1x1xi32> to vector<2x8x8xi32>
    %13 = arith.cmpi slt, %10, %12 : vector<2x8x8xi32>
    %14 = vector.broadcast %8 : vector<2x1x1xi32> to vector<2x8x8xi32>
    %15 = arith.cmpi slt, %11, %14 : vector<2x8x8xi32>
    %16 = arith.andi %13, %15 : vector<2x8x8xi1>
    %17 = arith.cmpi sle, %11, %10 : vector<2x8x8xi32>
    %18 = arith.andi %16, %17 : vector<2x8x8xi1>
    %19 = tpu.iota {dimensions = array<i32: 1>} : vector<2x8x8xi32>
    %20 = tpu.iota {dimensions = array<i32: 2>} : vector<2x8x8xi32>
    %21 = vector.broadcast %8 : vector<2x1x1xi32> to vector<2x8x8xi32>
    %22 = arith.cmpi slt, %19, %21 : vector<2x8x8xi32>
    %23 = vector.broadcast %9 : vector<2x1x1xi32> to vector<2x8x8xi32>
    %24 = arith.cmpi slt, %20, %23 : vector<2x8x8xi32>
    %25 = arith.andi %22, %24 : vector<2x8x8xi1>
    %26 = arith.truncf %7 : vector<16x128xf32> to vector<16x128xbf16>
    %c0_10 = arith.constant 0 : index
    %c0_11 = arith.constant 0 : index
    %27 = vector.load %arg6[%c0_10, %c0_11] : memref<128x384xbf16, #tpu.memory_space<vmem>>, vector<128x384xbf16>
    %cst_12 = arith.constant dense<0.000000e+00> : vector<16x384xf32>
    %28 = tpu.matmul %26, %27, %cst_12 {dimension_numbers = #tpu.dot_dimension_numbers<[1], [0], [0], [1], [0, 0, 1, 1], [], []>} : vector<16x128xbf16>, vector<128x384xbf16>, vector<16x384xf32> -> vector<16x384xf32>
    %c0_13 = arith.constant 0 : index
    %c0_14 = arith.constant 0 : index
    %29 = vector.load %arg7[%c0_13, %c0_14] : memref<1x384xf32, #tpu.memory_space<vmem>>, vector<1x384xf32>
    %30 = vector.broadcast %29 : vector<1x384xf32> to vector<16x384xf32>
    %31 = arith.addf %28, %30 : vector<16x384xf32>
    %32 = vector.extract_strided_slice %31 {offsets = [0, 0], sizes = [16, 128], strides = [1, 1]} : vector<16x384xf32> to vector<16x128xf32>
    %33 = vector.shape_cast %32 : vector<16x128xf32> to vector<2x8x128xf32>
    %34 = vector.extract_strided_slice %31 {offsets = [0, 128], sizes = [16, 128], strides = [1, 1]} : vector<16x384xf32> to vector<16x128xf32>
    %35 = vector.shape_cast %34 : vector<16x128xf32> to vector<2x8x128xf32>
    %36 = vector.extract_strided_slice %31 {offsets = [0, 256], sizes = [16, 128], strides = [1, 1]} : vector<16x384xf32> to vector<16x128xf32>
    %37 = vector.shape_cast %36 : vector<16x128xf32> to vector<2x8x128xf32>
    %38 = arith.truncf %33 : vector<2x8x128xf32> to vector<2x8x128xbf16>
    %39 = arith.truncf %35 : vector<2x8x128xf32> to vector<2x8x128xbf16>
    "tpu.trace_start"() <{level = 10 : i32, message = "btd,bsd->bts"}> : () -> ()
    %cst_15 = arith.constant dense<0.000000e+00> : vector<2x8x8xf32>
    %40 = tpu.matmul %38, %39, %cst_15 {dimension_numbers = #tpu.dot_dimension_numbers<[2], [2], [1], [1], [0, 0, 0, 1, 1, 1], [0], [0]>} : vector<2x8x128xbf16>, vector<2x8x128xbf16>, vector<2x8x8xf32> -> vector<2x8x8xf32>
    "tpu.trace_stop"() : () -> ()
    %cst_16 = arith.constant 0.0883883461 : f32
    %41 = vector.broadcast %cst_16 : f32 to vector<2x8x8xf32>
    %42 = arith.mulf %40, %41 : vector<2x8x8xf32>
    %cst_17 = arith.constant -1.000000e+09 : f32
    %43 = vector.broadcast %cst_17 : f32 to vector<2x8x8xf32>
    %44 = arith.select %18, %42, %43 : vector<2x8x8xi1>, vector<2x8x8xf32>
    %cst_18 = arith.constant dense<0xFF800000> : vector<2x8xf32>
    %45 = vector.multi_reduction <maximumf>, %44, %cst_18 [2] : vector<2x8x8xf32> to vector<2x8xf32>
    %46 = vector.shape_cast %45 : vector<2x8xf32> to vector<2x8x1xf32>
    %47 = vector.broadcast %46 : vector<2x8x1xf32> to vector<2x8x8xf32>
    %48 = arith.subf %44, %47 : vector<2x8x8xf32>
    %49 = math.exp %48 : vector<2x8x8xf32>
    %cst_19 = arith.constant dense<0.000000e+00> : vector<2x8xf32>
    %50 = vector.multi_reduction <add>, %49, %cst_19 [2] : vector<2x8x8xf32> to vector<2x8xf32>
    %51 = vector.shape_cast %50 : vector<2x8xf32> to vector<2x8x1xf32>
    %52 = tpu.reciprocal %51 {approx = true} : vector<2x8x1xf32> -> vector<2x8x1xf32>
    %53 = vector.broadcast %52 : vector<2x8x1xf32> to vector<2x8x8xf32>
    %54 = arith.mulf %49, %53 : vector<2x8x8xf32>
    %55 = arith.truncf %54 : vector<2x8x8xf32> to vector<2x8x8xbf16>
    %56 = arith.truncf %37 : vector<2x8x128xf32> to vector<2x8x128xbf16>
    "tpu.trace_start"() <{level = 10 : i32, message = "bts,bsd->btd"}> : () -> ()
    %cst_20 = arith.constant dense<0.000000e+00> : vector<2x8x128xf32>
    %57 = tpu.matmul %55, %56, %cst_20 {dimension_numbers = #tpu.dot_dimension_numbers<[2], [1], [1], [2], [0, 0, 0, 1, 1, 2], [0], [0]>} : vector<2x8x8xbf16>, vector<2x8x128xbf16>, vector<2x8x128xf32> -> vector<2x8x128xf32>
    "tpu.trace_stop"() : () -> ()
    %58 = vector.shape_cast %57 : vector<2x8x128xf32> to vector<16x128xf32>
    %59 = arith.truncf %58 : vector<16x128xf32> to vector<16x128xbf16>
    %c0_21 = arith.constant 0 : index
    %c0_22 = arith.constant 0 : index
    %60 = vector.load %arg8[%c0_21, %c0_22] : memref<128x128xbf16, #tpu.memory_space<vmem>>, vector<128x128xbf16>
    %cst_23 = arith.constant dense<0.000000e+00> : vector<16x128xf32>
    %61 = tpu.matmul %59, %60, %cst_23 {dimension_numbers = #tpu.dot_dimension_numbers<[1], [0], [0], [1], [0, 0, 1, 1], [], []>} : vector<16x128xbf16>, vector<128x128xbf16>, vector<16x128xf32> -> vector<16x128xf32>
    %c0_24 = arith.constant 0 : index
    %c0_25 = arith.constant 0 : index
    %62 = vector.load %arg9[%c0_24, %c0_25] : memref<1x128xf32, #tpu.memory_space<vmem>>, vector<1x128xf32>
    %63 = vector.broadcast %62 : vector<1x128xf32> to vector<16x128xf32>
    %64 = arith.addf %61, %63 : vector<16x128xf32>
    %65 = arith.addf %7, %64 : vector<16x128xf32>
    %c0_26 = arith.constant 0 : index
    %c0_27 = arith.constant 0 : index
    %66 = vector.load %arg10[%c0_26, %c0_27] : memref<1x128xf32, #tpu.memory_space<vmem>>, vector<1x128xf32>
    %c0_28 = arith.constant 0 : index
    %c0_29 = arith.constant 0 : index
    %67 = vector.load %arg11[%c0_28, %c0_29] : memref<1x128xf32, #tpu.memory_space<vmem>>, vector<1x128xf32>
    %cst_30 = arith.constant dense<0.000000e+00> : vector<16xf32>
    %68 = vector.multi_reduction <add>, %65, %cst_30 [1] : vector<16x128xf32> to vector<16xf32>
    %69 = vector.shape_cast %68 : vector<16xf32> to vector<16x1xf32>
    %cst_31 = arith.constant 1.280000e+02 : f32
    %70 = vector.broadcast %cst_31 : f32 to vector<16x1xf32>
    %71 = arith.divf %69, %70 : vector<16x1xf32>
    %72 = vector.broadcast %71 : vector<16x1xf32> to vector<16x128xf32>
    %73 = arith.subf %65, %72 : vector<16x128xf32>
    %74 = arith.mulf %73, %73 : vector<16x128xf32>
    %cst_32 = arith.constant dense<0.000000e+00> : vector<16xf32>
    %75 = vector.multi_reduction <add>, %74, %cst_32 [1] : vector<16x128xf32> to vector<16xf32>
    %76 = vector.shape_cast %75 : vector<16xf32> to vector<16x1xf32>
    %cst_33 = arith.constant 1.280000e+02 : f32
    %77 = vector.broadcast %cst_33 : f32 to vector<16x1xf32>
    %78 = arith.divf %76, %77 : vector<16x1xf32>
    %79 = vector.broadcast %71 : vector<16x1xf32> to vector<16x128xf32>
    %80 = arith.subf %65, %79 : vector<16x128xf32>
    %cst_34 = arith.constant 9.99999974E-6 : f32
    %81 = vector.broadcast %cst_34 : f32 to vector<16x1xf32>
    %82 = arith.addf %78, %81 : vector<16x1xf32>
    %83 = math.rsqrt %82 : vector<16x1xf32>
    %84 = vector.broadcast %83 : vector<16x1xf32> to vector<16x128xf32>
    %85 = arith.mulf %80, %84 : vector<16x128xf32>
    %86 = vector.broadcast %66 : vector<1x128xf32> to vector<16x128xf32>
    %87 = arith.mulf %85, %86 : vector<16x128xf32>
    %88 = vector.broadcast %67 : vector<1x128xf32> to vector<16x128xf32>
    %89 = arith.addf %87, %88 : vector<16x128xf32>
    %90 = arith.truncf %89 : vector<16x128xf32> to vector<16x128xbf16>
    %c0_35 = arith.constant 0 : index
    %c0_36 = arith.constant 0 : index
    %91 = vector.load %arg12[%c0_35, %c0_36] : memref<128x128xbf16, #tpu.memory_space<vmem>>, vector<128x128xbf16>
    %cst_37 = arith.constant dense<0.000000e+00> : vector<16x128xf32>
    %92 = tpu.matmul %90, %91, %cst_37 {dimension_numbers = #tpu.dot_dimension_numbers<[1], [0], [0], [1], [0, 0, 1, 1], [], []>} : vector<16x128xbf16>, vector<128x128xbf16>, vector<16x128xf32> -> vector<16x128xf32>
    %c0_38 = arith.constant 0 : index
    %c0_39 = arith.constant 0 : index
    %93 = vector.load %arg13[%c0_38, %c0_39] : memref<1x128xf32, #tpu.memory_space<vmem>>, vector<1x128xf32>
    %94 = vector.broadcast %93 : vector<1x128xf32> to vector<16x128xf32>
    %95 = arith.addf %92, %94 : vector<16x128xf32>
    %96 = vector.shape_cast %95 : vector<16x128xf32> to vector<2x8x128xf32>
    %c0_40 = arith.constant 0 : index
    %c0_41 = arith.constant 0 : index
    %c0_42 = arith.constant 0 : index
    %97 = vector.load %arg3[%c0_40, %c0_41, %c0_42] : memref<2x8x128xbf16, #tpu.memory_space<vmem>>, vector<2x8x128xbf16>
    %98 = vector.shape_cast %97 : vector<2x8x128xbf16> to vector<16x128xbf16>
    %c0_43 = arith.constant 0 : index
    %c0_44 = arith.constant 0 : index
    %99 = vector.load %arg14[%c0_43, %c0_44] : memref<128x256xbf16, #tpu.memory_space<vmem>>, vector<128x256xbf16>
    %cst_45 = arith.constant dense<0.000000e+00> : vector<16x256xf32>
    %100 = tpu.matmul %98, %99, %cst_45 {dimension_numbers = #tpu.dot_dimension_numbers<[1], [0], [0], [1], [0, 0, 1, 1], [], []>} : vector<16x128xbf16>, vector<128x256xbf16>, vector<16x256xf32> -> vector<16x256xf32>
    %c0_46 = arith.constant 0 : index
    %c0_47 = arith.constant 0 : index
    %101 = vector.load %arg15[%c0_46, %c0_47] : memref<1x256xf32, #tpu.memory_space<vmem>>, vector<1x256xf32>
    %102 = vector.broadcast %101 : vector<1x256xf32> to vector<16x256xf32>
    %103 = arith.addf %100, %102 : vector<16x256xf32>
    %104 = vector.extract_strided_slice %103 {offsets = [0, 0], sizes = [16, 128], strides = [1, 1]} : vector<16x256xf32> to vector<16x128xf32>
    %105 = vector.shape_cast %104 : vector<16x128xf32> to vector<2x8x128xf32>
    %106 = vector.extract_strided_slice %103 {offsets = [0, 128], sizes = [16, 128], strides = [1, 1]} : vector<16x256xf32> to vector<16x128xf32>
    %107 = vector.shape_cast %106 : vector<16x128xf32> to vector<2x8x128xf32>
    %108 = arith.truncf %96 : vector<2x8x128xf32> to vector<2x8x128xbf16>
    %109 = arith.truncf %105 : vector<2x8x128xf32> to vector<2x8x128xbf16>
    "tpu.trace_start"() <{level = 10 : i32, message = "btd,bsd->bts"}> : () -> ()
    %cst_48 = arith.constant dense<0.000000e+00> : vector<2x8x8xf32>
    %110 = tpu.matmul %108, %109, %cst_48 {dimension_numbers = #tpu.dot_dimension_numbers<[2], [2], [1], [1], [0, 0, 0, 1, 1, 1], [0], [0]>} : vector<2x8x128xbf16>, vector<2x8x128xbf16>, vector<2x8x8xf32> -> vector<2x8x8xf32>
    "tpu.trace_stop"() : () -> ()
    %cst_49 = arith.constant 0.0883883461 : f32
    %111 = vector.broadcast %cst_49 : f32 to vector<2x8x8xf32>
    %112 = arith.mulf %110, %111 : vector<2x8x8xf32>
    %cst_50 = arith.constant -1.000000e+09 : f32
    %113 = vector.broadcast %cst_50 : f32 to vector<2x8x8xf32>
    %114 = arith.select %25, %112, %113 : vector<2x8x8xi1>, vector<2x8x8xf32>
    %cst_51 = arith.constant dense<0xFF800000> : vector<2x8xf32>
    %115 = vector.multi_reduction <maximumf>, %114, %cst_51 [2] : vector<2x8x8xf32> to vector<2x8xf32>
    %116 = vector.shape_cast %115 : vector<2x8xf32> to vector<2x8x1xf32>
    %117 = vector.broadcast %116 : vector<2x8x1xf32> to vector<2x8x8xf32>
    %118 = arith.subf %114, %117 : vector<2x8x8xf32>
    %119 = math.exp %118 : vector<2x8x8xf32>
    %cst_52 = arith.constant dense<0.000000e+00> : vector<2x8xf32>
    %120 = vector.multi_reduction <add>, %119, %cst_52 [2] : vector<2x8x8xf32> to vector<2x8xf32>
    %121 = vector.shape_cast %120 : vector<2x8xf32> to vector<2x8x1xf32>
    %122 = tpu.reciprocal %121 {approx = true} : vector<2x8x1xf32> -> vector<2x8x1xf32>
    %123 = vector.broadcast %122 : vector<2x8x1xf32> to vector<2x8x8xf32>
    %124 = arith.mulf %119, %123 : vector<2x8x8xf32>
    %125 = arith.truncf %124 : vector<2x8x8xf32> to vector<2x8x8xbf16>
    %126 = arith.truncf %107 : vector<2x8x128xf32> to vector<2x8x128xbf16>
    "tpu.trace_start"() <{level = 10 : i32, message = "bts,bsd->btd"}> : () -> ()
    %cst_53 = arith.constant dense<0.000000e+00> : vector<2x8x128xf32>
    %127 = tpu.matmul %125, %126, %cst_53 {dimension_numbers = #tpu.dot_dimension_numbers<[2], [1], [1], [2], [0, 0, 0, 1, 1, 2], [0], [0]>} : vector<2x8x8xbf16>, vector<2x8x128xbf16>, vector<2x8x128xf32> -> vector<2x8x128xf32>
    "tpu.trace_stop"() : () -> ()
    %128 = vector.shape_cast %127 : vector<2x8x128xf32> to vector<16x128xf32>
    %129 = arith.truncf %128 : vector<16x128xf32> to vector<16x128xbf16>
    %c0_54 = arith.constant 0 : index
    %c0_55 = arith.constant 0 : index
    %130 = vector.load %arg16[%c0_54, %c0_55] : memref<128x128xbf16, #tpu.memory_space<vmem>>, vector<128x128xbf16>
    %cst_56 = arith.constant dense<0.000000e+00> : vector<16x128xf32>
    %131 = tpu.matmul %129, %130, %cst_56 {dimension_numbers = #tpu.dot_dimension_numbers<[1], [0], [0], [1], [0, 0, 1, 1], [], []>} : vector<16x128xbf16>, vector<128x128xbf16>, vector<16x128xf32> -> vector<16x128xf32>
    %c0_57 = arith.constant 0 : index
    %c0_58 = arith.constant 0 : index
    %132 = vector.load %arg17[%c0_57, %c0_58] : memref<1x128xf32, #tpu.memory_space<vmem>>, vector<1x128xf32>
    %133 = vector.broadcast %132 : vector<1x128xf32> to vector<16x128xf32>
    %134 = arith.addf %131, %133 : vector<16x128xf32>
    %135 = arith.addf %89, %134 : vector<16x128xf32>
    %c0_59 = arith.constant 0 : index
    %c0_60 = arith.constant 0 : index
    %136 = vector.load %arg18[%c0_59, %c0_60] : memref<1x128xf32, #tpu.memory_space<vmem>>, vector<1x128xf32>
    %c0_61 = arith.constant 0 : index
    %c0_62 = arith.constant 0 : index
    %137 = vector.load %arg19[%c0_61, %c0_62] : memref<1x128xf32, #tpu.memory_space<vmem>>, vector<1x128xf32>
    %cst_63 = arith.constant dense<0.000000e+00> : vector<16xf32>
    %138 = vector.multi_reduction <add>, %135, %cst_63 [1] : vector<16x128xf32> to vector<16xf32>
    %139 = vector.shape_cast %138 : vector<16xf32> to vector<16x1xf32>
    %cst_64 = arith.constant 1.280000e+02 : f32
    %140 = vector.broadcast %cst_64 : f32 to vector<16x1xf32>
    %141 = arith.divf %139, %140 : vector<16x1xf32>
    %142 = vector.broadcast %141 : vector<16x1xf32> to vector<16x128xf32>
    %143 = arith.subf %135, %142 : vector<16x128xf32>
    %144 = arith.mulf %143, %143 : vector<16x128xf32>
    %cst_65 = arith.constant dense<0.000000e+00> : vector<16xf32>
    %145 = vector.multi_reduction <add>, %144, %cst_65 [1] : vector<16x128xf32> to vector<16xf32>
    %146 = vector.shape_cast %145 : vector<16xf32> to vector<16x1xf32>
    %cst_66 = arith.constant 1.280000e+02 : f32
    %147 = vector.broadcast %cst_66 : f32 to vector<16x1xf32>
    %148 = arith.divf %146, %147 : vector<16x1xf32>
    %149 = vector.broadcast %141 : vector<16x1xf32> to vector<16x128xf32>
    %150 = arith.subf %135, %149 : vector<16x128xf32>
    %cst_67 = arith.constant 9.99999974E-6 : f32
    %151 = vector.broadcast %cst_67 : f32 to vector<16x1xf32>
    %152 = arith.addf %148, %151 : vector<16x1xf32>
    %153 = math.rsqrt %152 : vector<16x1xf32>
    %154 = vector.broadcast %153 : vector<16x1xf32> to vector<16x128xf32>
    %155 = arith.mulf %150, %154 : vector<16x128xf32>
    %156 = vector.broadcast %136 : vector<1x128xf32> to vector<16x128xf32>
    %157 = arith.mulf %155, %156 : vector<16x128xf32>
    %158 = vector.broadcast %137 : vector<1x128xf32> to vector<16x128xf32>
    %159 = arith.addf %157, %158 : vector<16x128xf32>
    %160 = arith.truncf %159 : vector<16x128xf32> to vector<16x128xbf16>
    %c0_68 = arith.constant 0 : index
    %c0_69 = arith.constant 0 : index
    %161 = vector.load %arg20[%c0_68, %c0_69] : memref<128x256xbf16, #tpu.memory_space<vmem>>, vector<128x256xbf16>
    %cst_70 = arith.constant dense<0.000000e+00> : vector<16x256xf32>
    %162 = tpu.matmul %160, %161, %cst_70 {dimension_numbers = #tpu.dot_dimension_numbers<[1], [0], [0], [1], [0, 0, 1, 1], [], []>} : vector<16x128xbf16>, vector<128x256xbf16>, vector<16x256xf32> -> vector<16x256xf32>
    %c0_71 = arith.constant 0 : index
    %c0_72 = arith.constant 0 : index
    %163 = vector.load %arg21[%c0_71, %c0_72] : memref<1x256xf32, #tpu.memory_space<vmem>>, vector<1x256xf32>
    %164 = vector.broadcast %163 : vector<1x256xf32> to vector<16x256xf32>
    %165 = arith.addf %162, %164 : vector<16x256xf32>
    %cst_73 = arith.constant 0.000000e+00 : f32
    %166 = vector.broadcast %cst_73 : f32 to vector<16x256xf32>
    %167 = arith.maximumf %165, %166 : vector<16x256xf32>
    %168 = arith.truncf %167 : vector<16x256xf32> to vector<16x256xbf16>
    %c0_74 = arith.constant 0 : index
    %c0_75 = arith.constant 0 : index
    %169 = vector.load %arg22[%c0_74, %c0_75] : memref<256x128xbf16, #tpu.memory_space<vmem>>, vector<256x128xbf16>
    %cst_76 = arith.constant dense<0.000000e+00> : vector<16x128xf32>
    %170 = tpu.matmul %168, %169, %cst_76 {dimension_numbers = #tpu.dot_dimension_numbers<[1], [0], [0], [1], [0, 0, 1, 1], [], []>} : vector<16x256xbf16>, vector<256x128xbf16>, vector<16x128xf32> -> vector<16x128xf32>
    %c0_77 = arith.constant 0 : index
    %c0_78 = arith.constant 0 : index
    %171 = vector.load %arg23[%c0_77, %c0_78] : memref<1x128xf32, #tpu.memory_space<vmem>>, vector<1x128xf32>
    %172 = vector.broadcast %171 : vector<1x128xf32> to vector<16x128xf32>
    %173 = arith.addf %170, %172 : vector<16x128xf32>
    %174 = arith.addf %159, %173 : vector<16x128xf32>
    %c0_79 = arith.constant 0 : index
    %c0_80 = arith.constant 0 : index
    %175 = vector.load %arg24[%c0_79, %c0_80] : memref<1x128xf32, #tpu.memory_space<vmem>>, vector<1x128xf32>
    %c0_81 = arith.constant 0 : index
    %c0_82 = arith.constant 0 : index
    %176 = vector.load %arg25[%c0_81, %c0_82] : memref<1x128xf32, #tpu.memory_space<vmem>>, vector<1x128xf32>
    %cst_83 = arith.constant dense<0.000000e+00> : vector<16xf32>
    %177 = vector.multi_reduction <add>, %174, %cst_83 [1] : vector<16x128xf32> to vector<16xf32>
    %178 = vector.shape_cast %177 : vector<16xf32> to vector<16x1xf32>
    %cst_84 = arith.constant 1.280000e+02 : f32
    %179 = vector.broadcast %cst_84 : f32 to vector<16x1xf32>
    %180 = arith.divf %178, %179 : vector<16x1xf32>
    %181 = vector.broadcast %180 : vector<16x1xf32> to vector<16x128xf32>
    %182 = arith.subf %174, %181 : vector<16x128xf32>
    %183 = arith.mulf %182, %182 : vector<16x128xf32>
    %cst_85 = arith.constant dense<0.000000e+00> : vector<16xf32>
    %184 = vector.multi_reduction <add>, %183, %cst_85 [1] : vector<16x128xf32> to vector<16xf32>
    %185 = vector.shape_cast %184 : vector<16xf32> to vector<16x1xf32>
    %cst_86 = arith.constant 1.280000e+02 : f32
    %186 = vector.broadcast %cst_86 : f32 to vector<16x1xf32>
    %187 = arith.divf %185, %186 : vector<16x1xf32>
    %188 = vector.broadcast %180 : vector<16x1xf32> to vector<16x128xf32>
    %189 = arith.subf %174, %188 : vector<16x128xf32>
    %cst_87 = arith.constant 9.99999974E-6 : f32
    %190 = vector.broadcast %cst_87 : f32 to vector<16x1xf32>
    %191 = arith.addf %187, %190 : vector<16x1xf32>
    %192 = math.rsqrt %191 : vector<16x1xf32>
    %193 = vector.broadcast %192 : vector<16x1xf32> to vector<16x128xf32>
    %194 = arith.mulf %189, %193 : vector<16x128xf32>
    %195 = vector.broadcast %175 : vector<1x128xf32> to vector<16x128xf32>
    %196 = arith.mulf %194, %195 : vector<16x128xf32>
    %197 = vector.broadcast %176 : vector<1x128xf32> to vector<16x128xf32>
    %198 = arith.addf %196, %197 : vector<16x128xf32>
    %199 = vector.shape_cast %198 : vector<16x128xf32> to vector<2x8x128xf32>
    %200 = arith.truncf %199 : vector<2x8x128xf32> to vector<2x8x128xbf16>
    %c0_88 = arith.constant 0 : index
    %c0_89 = arith.constant 0 : index
    %c0_90 = arith.constant 0 : index
    %201 = vector.load %arg26[%c0_88, %c0_89, %c0_90] : memref<2x8x128xbf16, #tpu.memory_space<vmem>>, vector<2x8x128xbf16>
    tpu.vector_store %arg26[%c0_88, %c0_89, %c0_90], %200 {strides = array<i32>} : memref<2x8x128xbf16, #tpu.memory_space<vmem>>, vector<2x8x128xbf16>,
    return
  }
  func.func @transform_0(%arg0: i32) -> (i32, i32, i32) {
    %c0_i32 = arith.constant 0 : i32
    %c0_i32_0 = arith.constant 0 : i32
    %c0_i32_1 = arith.constant 0 : i32
    return %arg0, %c0_i32, %c0_i32_0 : i32, i32, i32
  }
  func.func @transform_1(%arg0: i32) -> (i32, i32) {
    %c0_i32 = arith.constant 0 : i32
    %c0_i32_0 = arith.constant 0 : i32
    %c0_i32_1 = arith.constant 0 : i32
    return %c0_i32, %c0_i32_0 : i32, i32
  }
  func.func @transform_2(%arg0: i32) -> (i32, i32, i32) {
    %c0_i32 = arith.constant 0 : i32
    %c0_i32_0 = arith.constant 0 : i32
    %c0_i32_1 = arith.constant 0 : i32
    return %arg0, %c0_i32, %c0_i32_0 : i32, i32, i32
  }
  func.func @transform_3(%arg0: i32) -> (i32, i32, i32) {
    %c0_i32 = arith.constant 0 : i32
    %c0_i32_0 = arith.constant 0 : i32
    %c0_i32_1 = arith.constant 0 : i32
    return %arg0, %c0_i32, %c0_i32_0 : i32, i32, i32
  }
  func.func @transform_4(%arg0: i32) -> (i32, i32, i32) {
    %c0_i32 = arith.constant 0 : i32
    %c0_i32_0 = arith.constant 0 : i32
    %c0_i32_1 = arith.constant 0 : i32
    return %arg0, %c0_i32, %c0_i32_0 : i32, i32, i32
  }
  func.func @transform_5(%arg0: i32) -> (i32, i32) {
    %c0_i32 = arith.constant 0 : i32
    %c0_i32_0 = arith.constant 0 : i32
    %c0_i32_1 = arith.constant 0 : i32
    return %c0_i32, %c0_i32_0 : i32, i32
  }
  func.func @transform_6(%arg0: i32) -> (i32, i32) {
    %c0_i32 = arith.constant 0 : i32
    %c0_i32_0 = arith.constant 0 : i32
    %c0_i32_1 = arith.constant 0 : i32
    return %c0_i32, %c0_i32_0 : i32, i32
  }
  func.func @transform_7(%arg0: i32) -> (i32, i32) {
    %c0_i32 = arith.constant 0 : i32
    %c0_i32_0 = arith.constant 0 : i32
    %c0_i32_1 = arith.constant 0 : i32
    return %c0_i32, %c0_i32_0 : i32, i32
  }
  func.func @transform_8(%arg0: i32) -> (i32, i32) {
    %c0_i32 = arith.constant 0 : i32
    %c0_i32_0 = arith.constant 0 : i32
    %c0_i32_1 = arith.constant 0 : i32
    return %c0_i32, %c0_i32_0 : i32, i32
  }
  func.func @transform_9(%arg0: i32) -> (i32, i32) {
    %c0_i32 = arith.constant 0 : i32
    %c0_i32_0 = arith.constant 0 : i32
    %c0_i32_1 = arith.constant 0 : i32
    return %c0_i32, %c0_i32_0 : i32, i32
  }
  func.func @transform_10(%arg0: i32) -> (i32, i32) {
    %c0_i32 = arith.constant 0 : i32
    %c0_i32_0 = arith.constant 0 : i32
    %c0_i32_1 = arith.constant 0 : i32
    return %c0_i32, %c0_i32_0 : i32, i32
  }
  func.func @transform_11(%arg0: i32) -> (i32, i32) {
    %c0_i32 = arith.constant 0 : i32
    %c0_i32_0 = arith.constant 0 : i32
    %c0_i32_1 = arith.constant 0 : i32
    return %c0_i32, %c0_i32_0 : i32, i32
  }
  func.func @transform_12(%arg0: i32) -> (i32, i32) {
    %c0_i32 = arith.constant 0 : i32
    %c0_i32_0 = arith.constant 0 : i32
    %c0_i32_1 = arith.constant 0 : i32
    return %c0_i32, %c0_i32_0 : i32, i32
  }
  func.func @transform_13(%arg0: i32) -> (i32, i32) {
    %c0_i32 = arith.constant 0 : i32
    %c0_i32_0 = arith.constant 0 : i32
    %c0_i32_1 = arith.constant 0 : i32
    return %c0_i32, %c0_i32_0 : i32, i32
  }
  func.func @transform_14(%arg0: i32) -> (i32, i32) {
    %c0_i32 = arith.constant 0 : i32
    %c0_i32_0 = arith.constant 0 : i32
    %c0_i32_1 = arith.constant 0 : i32
    return %c0_i32, %c0_i32_0 : i32, i32
  }
  func.func @transform_15(%arg0: i32) -> (i32, i32) {
    %c0_i32 = arith.constant 0 : i32
    %c0_i32_0 = arith.constant 0 : i32
    %c0_i32_1 = arith.constant 0 : i32
    return %c0_i32, %c0_i32_0 : i32, i32
  }
  func.func @transform_16(%arg0: i32) -> (i32, i32) {
    %c0_i32 = arith.constant 0 : i32
    %c0_i32_0 = arith.constant 0 : i32
    %c0_i32_1 = arith.constant 0 : i32
    return %c0_i32, %c0_i32_0 : i32, i32
  }
  func.func @transform_17(%arg0: i32) -> (i32, i32) {
    %c0_i32 = arith.constant 0 : i32
    %c0_i32_0 = arith.constant 0 : i32
    %c0_i32_1 = arith.constant 0 : i32
    return %c0_i32, %c0_i32_0 : i32, i32
  }
  func.func @transform_18(%arg0: i32) -> (i32, i32) {
    %c0_i32 = arith.constant 0 : i32
    %c0_i32_0 = arith.constant 0 : i32
    %c0_i32_1 = arith.constant 0 : i32
    return %c0_i32, %c0_i32_0 : i32, i32
  }
  func.func @transform_19(%arg0: i32) -> (i32, i32) {
    %c0_i32 = arith.constant 0 : i32
    %c0_i32_0 = arith.constant 0 : i32
    %c0_i32_1 = arith.constant 0 : i32
    return %c0_i32, %c0_i32_0 : i32, i32
  }
  func.func @transform_20(%arg0: i32) -> (i32, i32) {
    %c0_i32 = arith.constant 0 : i32
    %c0_i32_0 = arith.constant 0 : i32
    %c0_i32_1 = arith.constant 0 : i32
    return %c0_i32, %c0_i32_0 : i32, i32
  }
  func.func @transform_21(%arg0: i32) -> (i32, i32) {
    %c0_i32 = arith.constant 0 : i32
    %c0_i32_0 = arith.constant 0 : i32
    %c0_i32_1 = arith.constant 0 : i32
    return %c0_i32, %c0_i32_0 : i32, i32
  }
  func.func @transform_22(%arg0: i32) -> (i32, i32) {
    %c0_i32 = arith.constant 0 : i32
    %c0_i32_0 = arith.constant 0 : i32
    %c0_i32_1 = arith.constant 0 : i32
    return %c0_i32, %c0_i32_0 : i32, i32
  }
  func.func @transform_23(%arg0: i32) -> (i32, i32) {
    %c0_i32 = arith.constant 0 : i32
    %c0_i32_0 = arith.constant 0 : i32
    %c0_i32_1 = arith.constant 0 : i32
    return %c0_i32, %c0_i32_0 : i32, i32
  }
  func.func @transform_24(%arg0: i32) -> (i32, i32) {
    %c0_i32 = arith.constant 0 : i32
    %c0_i32_0 = arith.constant 0 : i32
    %c0_i32_1 = arith.constant 0 : i32
    return %c0_i32, %c0_i32_0 : i32, i32
  }
  func.func @transform_25(%arg0: i32) -> (i32, i32, i32) {
    %c0_i32 = arith.constant 0 : i32
    %c0_i32_0 = arith.constant 0 : i32
    %c0_i32_1 = arith.constant 0 : i32
    return %arg0, %c0_i32, %c0_i32_0 : i32, i32, i32
  }
}

module attributes {stable_mosaic.version = 11 : i64} {
  func.func @_decoder_layer_kernel(%arg0: i32, %arg1: memref<2x8x128xbf16, #tpu.memory_space<vmem>>, %arg2: memref<8x128xf32, #tpu.memory_space<vmem>>, %arg3: memref<2x8x128xbf16, #tpu.memory_space<vmem>>, %arg4: memref<2x1x1xi32, #tpu.memory_space<vmem>>, %arg5: memref<2x1x1xi32, #tpu.memory_space<vmem>>, %arg6: memref<128x384xbf16, #tpu.memory_space<vmem>>, %arg7: memref<1x384xf32, #tpu.memory_space<vmem>>, %arg8: memref<128x128xbf16, #tpu.memory_space<vmem>>, %arg9: memref<1x128xf32, #tpu.memory_space<vmem>>, %arg10: memref<1x128xf32, #tpu.memory_space<vmem>>, %arg11: memref<1x128xf32, #tpu.memory_space<vmem>>, %arg12: memref<128x128xbf16, #tpu.memory_space<vmem>>, %arg13: memref<1x128xf32, #tpu.memory_space<vmem>>, %arg14: memref<128x256xbf16, #tpu.memory_space<vmem>>, %arg15: memref<1x256xf32, #tpu.memory_space<vmem>>, %arg16: memref<128x128xbf16, #tpu.memory_space<vmem>>, %arg17: memref<1x128xf32, #tpu.memory_space<vmem>>, %arg18: memref<1x128xf32, #tpu.memory_space<vmem>>, %arg19: memref<1x128xf32, #tpu.memory_space<vmem>>, %arg20: memref<128x256xbf16, #tpu.memory_space<vmem>>, %arg21: memref<1x256xf32, #tpu.memory_space<vmem>>, %arg22: memref<256x128xbf16, #tpu.memory_space<vmem>>, %arg23: memref<1x128xf32, #tpu.memory_space<vmem>>, %arg24: memref<1x128xf32, #tpu.memory_space<vmem>>, %arg25: memref<1x128xf32, #tpu.memory_space<vmem>>, %arg26: memref<2x8x128xbf16, #tpu.memory_space<vmem>>) attributes {dimension_semantics = [#tpu.dimension_semantics<parallel>], iteration_bounds = array<i64: 1>, scalar_prefetch = 0 : i64, scratch_operands = 0 : i64, tpu.core_type = #tpu.core_type<tc>, window_params = [{transform_indices = @transform_0, window_bounds = array<i64: 2, 8, 128>}, {pipeline_mode = #tpu.pipeline_mode<synchronous>, transform_indices = @transform_1, window_bounds = array<i64: 8, 128>}, {transform_indices = @transform_2, window_bounds = array<i64: 2, 8, 128>}, {transform_indices = @transform_3, window_bounds = array<i64: 2, 1, 1>}, {transform_indices = @transform_4, window_bounds = array<i64: 2, 1, 1>}, {pipeline_mode = #tpu.pipeline_mode<synchronous>, transform_indices = @transform_5, window_bounds = array<i64: 128, 384>}, {pipeline_mode = #tpu.pipeline_mode<synchronous>, transform_indices = @transform_6, window_bounds = array<i64: 1, 384>}, {pipeline_mode = #tpu.pipeline_mode<synchronous>, transform_indices = @transform_7, window_bounds = array<i64: 128, 128>}, {pipeline_mode = #tpu.pipeline_mode<synchronous>, transform_indices = @transform_8, window_bounds = array<i64: 1, 128>}, {pipeline_mode = #tpu.pipeline_mode<synchronous>, transform_indices = @transform_9, window_bounds = array<i64: 1, 128>}, {pipeline_mode = #tpu.pipeline_mode<synchronous>, transform_indices = @transform_10, window_bounds = array<i64: 1, 128>}, {pipeline_mode = #tpu.pipeline_mode<synchronous>, transform_indices = @transform_11, window_bounds = array<i64: 128, 128>}, {pipeline_mode = #tpu.pipeline_mode<synchronous>, transform_indices = @transform_12, window_bounds = array<i64: 1, 128>}, {pipeline_mode = #tpu.pipeline_mode<synchronous>, transform_indices = @transform_13, window_bounds = array<i64: 128, 256>}, {pipeline_mode = #tpu.pipeline_mode<synchronous>, transform_indices = @transform_14, window_bounds = array<i64: 1, 256>}, {pipeline_mode = #tpu.pipeline_mode<synchronous>, transform_indices = @transform_15, window_bounds = array<i64: 128, 128>}, {pipeline_mode = #tpu.pipeline_mode<synchronous>, transform_indices = @transform_16, window_bounds = array<i64: 1, 128>}, {pipeline_mode = #tpu.pipeline_mode<synchronous>, transform_indices = @transform_17, window_bounds = array<i64: 1, 128>}, {pipeline_mode = #tpu.pipeline_mode<synchronous>, transform_indices = @transform_18, window_bounds = array<i64: 1, 128>}, {pipeline_mode = #tpu.pipeline_mode<synchronous>, transform_indices = @transform_19, window_bounds = array<i64: 128, 256>}, {pipeline_mode = #tpu.pipeline_mode<synchronous>, transform_indices = @transform_20, window_bounds = array<i64: 1, 256>}, {pipeline_mode = #tpu.pipeline_mode<synchronous>, transform_indices = @transform_21, window_bounds = array<i64: 256, 128>}, {pipeline_mode = #tpu.pipeline_mode<synchronous>, transform_indices = @transform_22, window_bounds = array<i64: 1, 128>}, {pipeline_mode = #tpu.pipeline_mode<synchronous>, transform_indices = @transform_23, window_bounds = array<i64: 1, 128>}, {pipeline_mode = #tpu.pipeline_mode<synchronous>, transform_indices = @transform_24, window_bounds = array<i64: 1, 128>}, {transform_indices = @transform_25, window_bounds = array<i64: 2, 8, 128>}]} {
    %c0 = arith.constant 0 : index
    %c0_0 = arith.constant 0 : index
    %c0_1 = arith.constant 0 : index
    %0 = vector.load %arg1[%c0, %c0_0, %c0_1] : memref<2x8x128xbf16, #tpu.memory_space<vmem>>, vector<2x8x128xbf16>
    %1 = arith.extf %0 : vector<2x8x128xbf16> to vector<2x8x128xf32>
    %cst = arith.constant 1.000000e+00 : f32
    %2 = vector.broadcast %cst : f32 to vector<2x8x128xf32>
    %3 = arith.mulf %1, %2 : vector<2x8x128xf32>
    %c0_2 = arith.constant 0 : index
    %c0_3 = arith.constant 0 : index
    %4 = vector.load %arg2[%c0_2, %c0_3] : memref<8x128xf32, #tpu.memory_space<vmem>>, vector<8x128xf32>
    %5 = vector.shape_cast %4 : vector<8x128xf32> to vector<1x8x128xf32>
    %6 = vector.broadcast %5 : vector<1x8x128xf32> to vector<2x8x128xf32>
    %7 = arith.addf %3, %6 : vector<2x8x128xf32>
    %8 = vector.shape_cast %7 : vector<2x8x128xf32> to vector<16x128xf32>
    %c0_4 = arith.constant 0 : index
    %c0_5 = arith.constant 0 : index
    %c0_6 = arith.constant 0 : index
    %9 = vector.load %arg4[%c0_4, %c0_5, %c0_6] : memref<2x1x1xi32, #tpu.memory_space<vmem>>, vector<2x1x1xi32>
    %c0_7 = arith.constant 0 : index
    %c0_8 = arith.constant 0 : index
    %c0_9 = arith.constant 0 : index
    %10 = vector.load %arg5[%c0_7, %c0_8, %c0_9] : memref<2x1x1xi32, #tpu.memory_space<vmem>>, vector<2x1x1xi32>
    %11 = tpu.iota {dimensions = array<i32: 1>} : vector<2x8x8xi32>
    %12 = tpu.iota {dimensions = array<i32: 2>} : vector<2x8x8xi32>
    %13 = vector.broadcast %9 : vector<2x1x1xi32> to vector<2x8x8xi32>
    %14 = arith.cmpi slt, %11, %13 : vector<2x8x8xi32>
    %15 = vector.broadcast %9 : vector<2x1x1xi32> to vector<2x8x8xi32>
    %16 = arith.cmpi slt, %12, %15 : vector<2x8x8xi32>
    %17 = arith.andi %14, %16 : vector<2x8x8xi1>
    %18 = arith.cmpi sle, %12, %11 : vector<2x8x8xi32>
    %19 = arith.andi %17, %18 : vector<2x8x8xi1>
    %20 = tpu.iota {dimensions = array<i32: 1>} : vector<2x8x8xi32>
    %21 = tpu.iota {dimensions = array<i32: 2>} : vector<2x8x8xi32>
    %22 = vector.broadcast %9 : vector<2x1x1xi32> to vector<2x8x8xi32>
    %23 = arith.cmpi slt, %20, %22 : vector<2x8x8xi32>
    %24 = vector.broadcast %10 : vector<2x1x1xi32> to vector<2x8x8xi32>
    %25 = arith.cmpi slt, %21, %24 : vector<2x8x8xi32>
    %26 = arith.andi %23, %25 : vector<2x8x8xi1>
    %27 = arith.truncf %8 : vector<16x128xf32> to vector<16x128xbf16>
    %c0_10 = arith.constant 0 : index
    %c0_11 = arith.constant 0 : index
    %28 = vector.load %arg6[%c0_10, %c0_11] : memref<128x384xbf16, #tpu.memory_space<vmem>>, vector<128x384xbf16>
    %cst_12 = arith.constant dense<0.000000e+00> : vector<16x384xf32>
    %29 = tpu.matmul %27, %28, %cst_12 {dimension_numbers = #tpu.dot_dimension_numbers<[1], [0], [0], [1], [0, 0, 1, 1], [], []>} : vector<16x128xbf16>, vector<128x384xbf16>, vector<16x384xf32> -> vector<16x384xf32>
    %c0_13 = arith.constant 0 : index
    %c0_14 = arith.constant 0 : index
    %30 = vector.load %arg7[%c0_13, %c0_14] : memref<1x384xf32, #tpu.memory_space<vmem>>, vector<1x384xf32>
    %31 = vector.broadcast %30 : vector<1x384xf32> to vector<16x384xf32>
    %32 = arith.addf %29, %31 : vector<16x384xf32>
    %33 = vector.extract_strided_slice %32 {offsets = [0, 0], sizes = [16, 128], strides = [1, 1]} : vector<16x384xf32> to vector<16x128xf32>
    %34 = vector.shape_cast %33 : vector<16x128xf32> to vector<2x8x128xf32>
    %35 = vector.extract_strided_slice %32 {offsets = [0, 128], sizes = [16, 128], strides = [1, 1]} : vector<16x384xf32> to vector<16x128xf32>
    %36 = vector.shape_cast %35 : vector<16x128xf32> to vector<2x8x128xf32>
    %37 = vector.extract_strided_slice %32 {offsets = [0, 256], sizes = [16, 128], strides = [1, 1]} : vector<16x384xf32> to vector<16x128xf32>
    %38 = vector.shape_cast %37 : vector<16x128xf32> to vector<2x8x128xf32>
    %39 = arith.truncf %34 : vector<2x8x128xf32> to vector<2x8x128xbf16>
    %40 = arith.truncf %36 : vector<2x8x128xf32> to vector<2x8x128xbf16>
    "tpu.trace_start"() <{level = 10 : i32, message = "btd,bsd->bts"}> : () -> ()
    %cst_15 = arith.constant dense<0.000000e+00> : vector<2x8x8xf32>
    %41 = tpu.matmul %39, %40, %cst_15 {dimension_numbers = #tpu.dot_dimension_numbers<[2], [2], [1], [1], [0, 0, 0, 1, 1, 1], [0], [0]>} : vector<2x8x128xbf16>, vector<2x8x128xbf16>, vector<2x8x8xf32> -> vector<2x8x8xf32>
    "tpu.trace_stop"() : () -> ()
    %cst_16 = arith.constant 0.0883883461 : f32
    %42 = vector.broadcast %cst_16 : f32 to vector<2x8x8xf32>
    %43 = arith.mulf %41, %42 : vector<2x8x8xf32>
    %cst_17 = arith.constant -1.000000e+09 : f32
    %44 = vector.broadcast %cst_17 : f32 to vector<2x8x8xf32>
    %45 = arith.select %19, %43, %44 : vector<2x8x8xi1>, vector<2x8x8xf32>
    %cst_18 = arith.constant dense<0xFF800000> : vector<2x8xf32>
    %46 = vector.multi_reduction <maximumf>, %45, %cst_18 [2] : vector<2x8x8xf32> to vector<2x8xf32>
    %47 = vector.shape_cast %46 : vector<2x8xf32> to vector<2x8x1xf32>
    %48 = vector.broadcast %47 : vector<2x8x1xf32> to vector<2x8x8xf32>
    %49 = arith.subf %45, %48 : vector<2x8x8xf32>
    %50 = math.exp %49 : vector<2x8x8xf32>
    %cst_19 = arith.constant dense<0.000000e+00> : vector<2x8xf32>
    %51 = vector.multi_reduction <add>, %50, %cst_19 [2] : vector<2x8x8xf32> to vector<2x8xf32>
    %52 = vector.shape_cast %51 : vector<2x8xf32> to vector<2x8x1xf32>
    %53 = tpu.reciprocal %52 {approx = true} : vector<2x8x1xf32> -> vector<2x8x1xf32>
    %54 = vector.broadcast %53 : vector<2x8x1xf32> to vector<2x8x8xf32>
    %55 = arith.mulf %50, %54 : vector<2x8x8xf32>
    %56 = arith.truncf %55 : vector<2x8x8xf32> to vector<2x8x8xbf16>
    %57 = arith.truncf %38 : vector<2x8x128xf32> to vector<2x8x128xbf16>
    "tpu.trace_start"() <{level = 10 : i32, message = "bts,bsd->btd"}> : () -> ()
    %cst_20 = arith.constant dense<0.000000e+00> : vector<2x8x128xf32>
    %58 = tpu.matmul %56, %57, %cst_20 {dimension_numbers = #tpu.dot_dimension_numbers<[2], [1], [1], [2], [0, 0, 0, 1, 1, 2], [0], [0]>} : vector<2x8x8xbf16>, vector<2x8x128xbf16>, vector<2x8x128xf32> -> vector<2x8x128xf32>
    "tpu.trace_stop"() : () -> ()
    %59 = vector.shape_cast %58 : vector<2x8x128xf32> to vector<16x128xf32>
    %60 = arith.truncf %59 : vector<16x128xf32> to vector<16x128xbf16>
    %c0_21 = arith.constant 0 : index
    %c0_22 = arith.constant 0 : index
    %61 = vector.load %arg8[%c0_21, %c0_22] : memref<128x128xbf16, #tpu.memory_space<vmem>>, vector<128x128xbf16>
    %cst_23 = arith.constant dense<0.000000e+00> : vector<16x128xf32>
    %62 = tpu.matmul %60, %61, %cst_23 {dimension_numbers = #tpu.dot_dimension_numbers<[1], [0], [0], [1], [0, 0, 1, 1], [], []>} : vector<16x128xbf16>, vector<128x128xbf16>, vector<16x128xf32> -> vector<16x128xf32>
    %c0_24 = arith.constant 0 : index
    %c0_25 = arith.constant 0 : index
    %63 = vector.load %arg9[%c0_24, %c0_25] : memref<1x128xf32, #tpu.memory_space<vmem>>, vector<1x128xf32>
    %64 = vector.broadcast %63 : vector<1x128xf32> to vector<16x128xf32>
    %65 = arith.addf %62, %64 : vector<16x128xf32>
    %66 = arith.addf %8, %65 : vector<16x128xf32>
    %c0_26 = arith.constant 0 : index
    %c0_27 = arith.constant 0 : index
    %67 = vector.load %arg10[%c0_26, %c0_27] : memref<1x128xf32, #tpu.memory_space<vmem>>, vector<1x128xf32>
    %c0_28 = arith.constant 0 : index
    %c0_29 = arith.constant 0 : index
    %68 = vector.load %arg11[%c0_28, %c0_29] : memref<1x128xf32, #tpu.memory_space<vmem>>, vector<1x128xf32>
    %cst_30 = arith.constant dense<0.000000e+00> : vector<16xf32>
    %69 = vector.multi_reduction <add>, %66, %cst_30 [1] : vector<16x128xf32> to vector<16xf32>
    %70 = vector.shape_cast %69 : vector<16xf32> to vector<16x1xf32>
    %cst_31 = arith.constant 1.280000e+02 : f32
    %71 = vector.broadcast %cst_31 : f32 to vector<16x1xf32>
    %72 = arith.divf %70, %71 : vector<16x1xf32>
    %73 = vector.broadcast %72 : vector<16x1xf32> to vector<16x128xf32>
    %74 = arith.subf %66, %73 : vector<16x128xf32>
    %75 = arith.mulf %74, %74 : vector<16x128xf32>
    %cst_32 = arith.constant dense<0.000000e+00> : vector<16xf32>
    %76 = vector.multi_reduction <add>, %75, %cst_32 [1] : vector<16x128xf32> to vector<16xf32>
    %77 = vector.shape_cast %76 : vector<16xf32> to vector<16x1xf32>
    %cst_33 = arith.constant 1.280000e+02 : f32
    %78 = vector.broadcast %cst_33 : f32 to vector<16x1xf32>
    %79 = arith.divf %77, %78 : vector<16x1xf32>
    %80 = vector.broadcast %72 : vector<16x1xf32> to vector<16x128xf32>
    %81 = arith.subf %66, %80 : vector<16x128xf32>
    %cst_34 = arith.constant 9.99999974E-6 : f32
    %82 = vector.broadcast %cst_34 : f32 to vector<16x1xf32>
    %83 = arith.addf %79, %82 : vector<16x1xf32>
    %84 = math.rsqrt %83 : vector<16x1xf32>
    %85 = vector.broadcast %84 : vector<16x1xf32> to vector<16x128xf32>
    %86 = arith.mulf %81, %85 : vector<16x128xf32>
    %87 = vector.broadcast %67 : vector<1x128xf32> to vector<16x128xf32>
    %88 = arith.mulf %86, %87 : vector<16x128xf32>
    %89 = vector.broadcast %68 : vector<1x128xf32> to vector<16x128xf32>
    %90 = arith.addf %88, %89 : vector<16x128xf32>
    %91 = arith.truncf %90 : vector<16x128xf32> to vector<16x128xbf16>
    %c0_35 = arith.constant 0 : index
    %c0_36 = arith.constant 0 : index
    %92 = vector.load %arg12[%c0_35, %c0_36] : memref<128x128xbf16, #tpu.memory_space<vmem>>, vector<128x128xbf16>
    %cst_37 = arith.constant dense<0.000000e+00> : vector<16x128xf32>
    %93 = tpu.matmul %91, %92, %cst_37 {dimension_numbers = #tpu.dot_dimension_numbers<[1], [0], [0], [1], [0, 0, 1, 1], [], []>} : vector<16x128xbf16>, vector<128x128xbf16>, vector<16x128xf32> -> vector<16x128xf32>
    %c0_38 = arith.constant 0 : index
    %c0_39 = arith.constant 0 : index
    %94 = vector.load %arg13[%c0_38, %c0_39] : memref<1x128xf32, #tpu.memory_space<vmem>>, vector<1x128xf32>
    %95 = vector.broadcast %94 : vector<1x128xf32> to vector<16x128xf32>
    %96 = arith.addf %93, %95 : vector<16x128xf32>
    %97 = vector.shape_cast %96 : vector<16x128xf32> to vector<2x8x128xf32>
    %c0_40 = arith.constant 0 : index
    %c0_41 = arith.constant 0 : index
    %c0_42 = arith.constant 0 : index
    %98 = vector.load %arg3[%c0_40, %c0_41, %c0_42] : memref<2x8x128xbf16, #tpu.memory_space<vmem>>, vector<2x8x128xbf16>
    %99 = vector.shape_cast %98 : vector<2x8x128xbf16> to vector<16x128xbf16>
    %c0_43 = arith.constant 0 : index
    %c0_44 = arith.constant 0 : index
    %100 = vector.load %arg14[%c0_43, %c0_44] : memref<128x256xbf16, #tpu.memory_space<vmem>>, vector<128x256xbf16>
    %cst_45 = arith.constant dense<0.000000e+00> : vector<16x256xf32>
    %101 = tpu.matmul %99, %100, %cst_45 {dimension_numbers = #tpu.dot_dimension_numbers<[1], [0], [0], [1], [0, 0, 1, 1], [], []>} : vector<16x128xbf16>, vector<128x256xbf16>, vector<16x256xf32> -> vector<16x256xf32>
    %c0_46 = arith.constant 0 : index
    %c0_47 = arith.constant 0 : index
    %102 = vector.load %arg15[%c0_46, %c0_47] : memref<1x256xf32, #tpu.memory_space<vmem>>, vector<1x256xf32>
    %103 = vector.broadcast %102 : vector<1x256xf32> to vector<16x256xf32>
    %104 = arith.addf %101, %103 : vector<16x256xf32>
    %105 = vector.extract_strided_slice %104 {offsets = [0, 0], sizes = [16, 128], strides = [1, 1]} : vector<16x256xf32> to vector<16x128xf32>
    %106 = vector.shape_cast %105 : vector<16x128xf32> to vector<2x8x128xf32>
    %107 = vector.extract_strided_slice %104 {offsets = [0, 128], sizes = [16, 128], strides = [1, 1]} : vector<16x256xf32> to vector<16x128xf32>
    %108 = vector.shape_cast %107 : vector<16x128xf32> to vector<2x8x128xf32>
    %109 = arith.truncf %97 : vector<2x8x128xf32> to vector<2x8x128xbf16>
    %110 = arith.truncf %106 : vector<2x8x128xf32> to vector<2x8x128xbf16>
    "tpu.trace_start"() <{level = 10 : i32, message = "btd,bsd->bts"}> : () -> ()
    %cst_48 = arith.constant dense<0.000000e+00> : vector<2x8x8xf32>
    %111 = tpu.matmul %109, %110, %cst_48 {dimension_numbers = #tpu.dot_dimension_numbers<[2], [2], [1], [1], [0, 0, 0, 1, 1, 1], [0], [0]>} : vector<2x8x128xbf16>, vector<2x8x128xbf16>, vector<2x8x8xf32> -> vector<2x8x8xf32>
    "tpu.trace_stop"() : () -> ()
    %cst_49 = arith.constant 0.0883883461 : f32
    %112 = vector.broadcast %cst_49 : f32 to vector<2x8x8xf32>
    %113 = arith.mulf %111, %112 : vector<2x8x8xf32>
    %cst_50 = arith.constant -1.000000e+09 : f32
    %114 = vector.broadcast %cst_50 : f32 to vector<2x8x8xf32>
    %115 = arith.select %26, %113, %114 : vector<2x8x8xi1>, vector<2x8x8xf32>
    %cst_51 = arith.constant dense<0xFF800000> : vector<2x8xf32>
    %116 = vector.multi_reduction <maximumf>, %115, %cst_51 [2] : vector<2x8x8xf32> to vector<2x8xf32>
    %117 = vector.shape_cast %116 : vector<2x8xf32> to vector<2x8x1xf32>
    %118 = vector.broadcast %117 : vector<2x8x1xf32> to vector<2x8x8xf32>
    %119 = arith.subf %115, %118 : vector<2x8x8xf32>
    %120 = math.exp %119 : vector<2x8x8xf32>
    %cst_52 = arith.constant dense<0.000000e+00> : vector<2x8xf32>
    %121 = vector.multi_reduction <add>, %120, %cst_52 [2] : vector<2x8x8xf32> to vector<2x8xf32>
    %122 = vector.shape_cast %121 : vector<2x8xf32> to vector<2x8x1xf32>
    %123 = tpu.reciprocal %122 {approx = true} : vector<2x8x1xf32> -> vector<2x8x1xf32>
    %124 = vector.broadcast %123 : vector<2x8x1xf32> to vector<2x8x8xf32>
    %125 = arith.mulf %120, %124 : vector<2x8x8xf32>
    %126 = arith.truncf %125 : vector<2x8x8xf32> to vector<2x8x8xbf16>
    %127 = arith.truncf %108 : vector<2x8x128xf32> to vector<2x8x128xbf16>
    "tpu.trace_start"() <{level = 10 : i32, message = "bts,bsd->btd"}> : () -> ()
    %cst_53 = arith.constant dense<0.000000e+00> : vector<2x8x128xf32>
    %128 = tpu.matmul %126, %127, %cst_53 {dimension_numbers = #tpu.dot_dimension_numbers<[2], [1], [1], [2], [0, 0, 0, 1, 1, 2], [0], [0]>} : vector<2x8x8xbf16>, vector<2x8x128xbf16>, vector<2x8x128xf32> -> vector<2x8x128xf32>
    "tpu.trace_stop"() : () -> ()
    %129 = vector.shape_cast %128 : vector<2x8x128xf32> to vector<16x128xf32>
    %130 = arith.truncf %129 : vector<16x128xf32> to vector<16x128xbf16>
    %c0_54 = arith.constant 0 : index
    %c0_55 = arith.constant 0 : index
    %131 = vector.load %arg16[%c0_54, %c0_55] : memref<128x128xbf16, #tpu.memory_space<vmem>>, vector<128x128xbf16>
    %cst_56 = arith.constant dense<0.000000e+00> : vector<16x128xf32>
    %132 = tpu.matmul %130, %131, %cst_56 {dimension_numbers = #tpu.dot_dimension_numbers<[1], [0], [0], [1], [0, 0, 1, 1], [], []>} : vector<16x128xbf16>, vector<128x128xbf16>, vector<16x128xf32> -> vector<16x128xf32>
    %c0_57 = arith.constant 0 : index
    %c0_58 = arith.constant 0 : index
    %133 = vector.load %arg17[%c0_57, %c0_58] : memref<1x128xf32, #tpu.memory_space<vmem>>, vector<1x128xf32>
    %134 = vector.broadcast %133 : vector<1x128xf32> to vector<16x128xf32>
    %135 = arith.addf %132, %134 : vector<16x128xf32>
    %136 = arith.addf %90, %135 : vector<16x128xf32>
    %c0_59 = arith.constant 0 : index
    %c0_60 = arith.constant 0 : index
    %137 = vector.load %arg18[%c0_59, %c0_60] : memref<1x128xf32, #tpu.memory_space<vmem>>, vector<1x128xf32>
    %c0_61 = arith.constant 0 : index
    %c0_62 = arith.constant 0 : index
    %138 = vector.load %arg19[%c0_61, %c0_62] : memref<1x128xf32, #tpu.memory_space<vmem>>, vector<1x128xf32>
    %cst_63 = arith.constant dense<0.000000e+00> : vector<16xf32>
    %139 = vector.multi_reduction <add>, %136, %cst_63 [1] : vector<16x128xf32> to vector<16xf32>
    %140 = vector.shape_cast %139 : vector<16xf32> to vector<16x1xf32>
    %cst_64 = arith.constant 1.280000e+02 : f32
    %141 = vector.broadcast %cst_64 : f32 to vector<16x1xf32>
    %142 = arith.divf %140, %141 : vector<16x1xf32>
    %143 = vector.broadcast %142 : vector<16x1xf32> to vector<16x128xf32>
    %144 = arith.subf %136, %143 : vector<16x128xf32>
    %145 = arith.mulf %144, %144 : vector<16x128xf32>
    %cst_65 = arith.constant dense<0.000000e+00> : vector<16xf32>
    %146 = vector.multi_reduction <add>, %145, %cst_65 [1] : vector<16x128xf32> to vector<16xf32>
    %147 = vector.shape_cast %146 : vector<16xf32> to vector<16x1xf32>
    %cst_66 = arith.constant 1.280000e+02 : f32
    %148 = vector.broadcast %cst_66 : f32 to vector<16x1xf32>
    %149 = arith.divf %147, %148 : vector<16x1xf32>
    %150 = vector.broadcast %142 : vector<16x1xf32> to vector<16x128xf32>
    %151 = arith.subf %136, %150 : vector<16x128xf32>
    %cst_67 = arith.constant 9.99999974E-6 : f32
    %152 = vector.broadcast %cst_67 : f32 to vector<16x1xf32>
    %153 = arith.addf %149, %152 : vector<16x1xf32>
    %154 = math.rsqrt %153 : vector<16x1xf32>
    %155 = vector.broadcast %154 : vector<16x1xf32> to vector<16x128xf32>
    %156 = arith.mulf %151, %155 : vector<16x128xf32>
    %157 = vector.broadcast %137 : vector<1x128xf32> to vector<16x128xf32>
    %158 = arith.mulf %156, %157 : vector<16x128xf32>
    %159 = vector.broadcast %138 : vector<1x128xf32> to vector<16x128xf32>
    %160 = arith.addf %158, %159 : vector<16x128xf32>
    %161 = arith.truncf %160 : vector<16x128xf32> to vector<16x128xbf16>
    %c0_68 = arith.constant 0 : index
    %c0_69 = arith.constant 0 : index
    %162 = vector.load %arg20[%c0_68, %c0_69] : memref<128x256xbf16, #tpu.memory_space<vmem>>, vector<128x256xbf16>
    %cst_70 = arith.constant dense<0.000000e+00> : vector<16x256xf32>
    %163 = tpu.matmul %161, %162, %cst_70 {dimension_numbers = #tpu.dot_dimension_numbers<[1], [0], [0], [1], [0, 0, 1, 1], [], []>} : vector<16x128xbf16>, vector<128x256xbf16>, vector<16x256xf32> -> vector<16x256xf32>
    %c0_71 = arith.constant 0 : index
    %c0_72 = arith.constant 0 : index
    %164 = vector.load %arg21[%c0_71, %c0_72] : memref<1x256xf32, #tpu.memory_space<vmem>>, vector<1x256xf32>
    %165 = vector.broadcast %164 : vector<1x256xf32> to vector<16x256xf32>
    %166 = arith.addf %163, %165 : vector<16x256xf32>
    %cst_73 = arith.constant 0.000000e+00 : f32
    %167 = vector.broadcast %cst_73 : f32 to vector<16x256xf32>
    %168 = arith.maximumf %166, %167 : vector<16x256xf32>
    %169 = arith.truncf %168 : vector<16x256xf32> to vector<16x256xbf16>
    %c0_74 = arith.constant 0 : index
    %c0_75 = arith.constant 0 : index
    %170 = vector.load %arg22[%c0_74, %c0_75] : memref<256x128xbf16, #tpu.memory_space<vmem>>, vector<256x128xbf16>
    %cst_76 = arith.constant dense<0.000000e+00> : vector<16x128xf32>
    %171 = tpu.matmul %169, %170, %cst_76 {dimension_numbers = #tpu.dot_dimension_numbers<[1], [0], [0], [1], [0, 0, 1, 1], [], []>} : vector<16x256xbf16>, vector<256x128xbf16>, vector<16x128xf32> -> vector<16x128xf32>
    %c0_77 = arith.constant 0 : index
    %c0_78 = arith.constant 0 : index
    %172 = vector.load %arg23[%c0_77, %c0_78] : memref<1x128xf32, #tpu.memory_space<vmem>>, vector<1x128xf32>
    %173 = vector.broadcast %172 : vector<1x128xf32> to vector<16x128xf32>
    %174 = arith.addf %171, %173 : vector<16x128xf32>
    %175 = arith.addf %160, %174 : vector<16x128xf32>
    %c0_79 = arith.constant 0 : index
    %c0_80 = arith.constant 0 : index
    %176 = vector.load %arg24[%c0_79, %c0_80] : memref<1x128xf32, #tpu.memory_space<vmem>>, vector<1x128xf32>
    %c0_81 = arith.constant 0 : index
    %c0_82 = arith.constant 0 : index
    %177 = vector.load %arg25[%c0_81, %c0_82] : memref<1x128xf32, #tpu.memory_space<vmem>>, vector<1x128xf32>
    %cst_83 = arith.constant dense<0.000000e+00> : vector<16xf32>
    %178 = vector.multi_reduction <add>, %175, %cst_83 [1] : vector<16x128xf32> to vector<16xf32>
    %179 = vector.shape_cast %178 : vector<16xf32> to vector<16x1xf32>
    %cst_84 = arith.constant 1.280000e+02 : f32
    %180 = vector.broadcast %cst_84 : f32 to vector<16x1xf32>
    %181 = arith.divf %179, %180 : vector<16x1xf32>
    %182 = vector.broadcast %181 : vector<16x1xf32> to vector<16x128xf32>
    %183 = arith.subf %175, %182 : vector<16x128xf32>
    %184 = arith.mulf %183, %183 : vector<16x128xf32>
    %cst_85 = arith.constant dense<0.000000e+00> : vector<16xf32>
    %185 = vector.multi_reduction <add>, %184, %cst_85 [1] : vector<16x128xf32> to vector<16xf32>
    %186 = vector.shape_cast %185 : vector<16xf32> to vector<16x1xf32>
    %cst_86 = arith.constant 1.280000e+02 : f32
    %187 = vector.broadcast %cst_86 : f32 to vector<16x1xf32>
    %188 = arith.divf %186, %187 : vector<16x1xf32>
    %189 = vector.broadcast %181 : vector<16x1xf32> to vector<16x128xf32>
    %190 = arith.subf %175, %189 : vector<16x128xf32>
    %cst_87 = arith.constant 9.99999974E-6 : f32
    %191 = vector.broadcast %cst_87 : f32 to vector<16x1xf32>
    %192 = arith.addf %188, %191 : vector<16x1xf32>
    %193 = math.rsqrt %192 : vector<16x1xf32>
    %194 = vector.broadcast %193 : vector<16x1xf32> to vector<16x128xf32>
    %195 = arith.mulf %190, %194 : vector<16x128xf32>
    %196 = vector.broadcast %176 : vector<1x128xf32> to vector<16x128xf32>
    %197 = arith.mulf %195, %196 : vector<16x128xf32>
    %198 = vector.broadcast %177 : vector<1x128xf32> to vector<16x128xf32>
    %199 = arith.addf %197, %198 : vector<16x128xf32>
    %200 = vector.shape_cast %199 : vector<16x128xf32> to vector<2x8x128xf32>
    %201 = arith.truncf %200 : vector<2x8x128xf32> to vector<2x8x128xbf16>
    %c0_88 = arith.constant 0 : index
    %c0_89 = arith.constant 0 : index
    %c0_90 = arith.constant 0 : index
    %202 = vector.load %arg26[%c0_88, %c0_89, %c0_90] : memref<2x8x128xbf16, #tpu.memory_space<vmem>>, vector<2x8x128xbf16>
    tpu.vector_store %arg26[%c0_88, %c0_89, %c0_90], %201 {strides = array<i32>} : memref<2x8x128xbf16, #tpu.memory_space<vmem>>, vector<2x8x128xbf16>,
    return
  }
  func.func @transform_0(%arg0: i32) -> (i32, i32, i32) {
    %c0_i32 = arith.constant 0 : i32
    %c0_i32_0 = arith.constant 0 : i32
    %c0_i32_1 = arith.constant 0 : i32
    return %arg0, %c0_i32, %c0_i32_0 : i32, i32, i32
  }
  func.func @transform_1(%arg0: i32) -> (i32, i32) {
    %c0_i32 = arith.constant 0 : i32
    %c0_i32_0 = arith.constant 0 : i32
    %c0_i32_1 = arith.constant 0 : i32
    return %c0_i32, %c0_i32_0 : i32, i32
  }
  func.func @transform_2(%arg0: i32) -> (i32, i32, i32) {
    %c0_i32 = arith.constant 0 : i32
    %c0_i32_0 = arith.constant 0 : i32
    %c0_i32_1 = arith.constant 0 : i32
    return %arg0, %c0_i32, %c0_i32_0 : i32, i32, i32
  }
  func.func @transform_3(%arg0: i32) -> (i32, i32, i32) {
    %c0_i32 = arith.constant 0 : i32
    %c0_i32_0 = arith.constant 0 : i32
    %c0_i32_1 = arith.constant 0 : i32
    return %arg0, %c0_i32, %c0_i32_0 : i32, i32, i32
  }
  func.func @transform_4(%arg0: i32) -> (i32, i32, i32) {
    %c0_i32 = arith.constant 0 : i32
    %c0_i32_0 = arith.constant 0 : i32
    %c0_i32_1 = arith.constant 0 : i32
    return %arg0, %c0_i32, %c0_i32_0 : i32, i32, i32
  }
  func.func @transform_5(%arg0: i32) -> (i32, i32) {
    %c0_i32 = arith.constant 0 : i32
    %c0_i32_0 = arith.constant 0 : i32
    %c0_i32_1 = arith.constant 0 : i32
    return %c0_i32, %c0_i32_0 : i32, i32
  }
  func.func @transform_6(%arg0: i32) -> (i32, i32) {
    %c0_i32 = arith.constant 0 : i32
    %c0_i32_0 = arith.constant 0 : i32
    %c0_i32_1 = arith.constant 0 : i32
    return %c0_i32, %c0_i32_0 : i32, i32
  }
  func.func @transform_7(%arg0: i32) -> (i32, i32) {
    %c0_i32 = arith.constant 0 : i32
    %c0_i32_0 = arith.constant 0 : i32
    %c0_i32_1 = arith.constant 0 : i32
    return %c0_i32, %c0_i32_0 : i32, i32
  }
  func.func @transform_8(%arg0: i32) -> (i32, i32) {
    %c0_i32 = arith.constant 0 : i32
    %c0_i32_0 = arith.constant 0 : i32
    %c0_i32_1 = arith.constant 0 : i32
    return %c0_i32, %c0_i32_0 : i32, i32
  }
  func.func @transform_9(%arg0: i32) -> (i32, i32) {
    %c0_i32 = arith.constant 0 : i32
    %c0_i32_0 = arith.constant 0 : i32
    %c0_i32_1 = arith.constant 0 : i32
    return %c0_i32, %c0_i32_0 : i32, i32
  }
  func.func @transform_10(%arg0: i32) -> (i32, i32) {
    %c0_i32 = arith.constant 0 : i32
    %c0_i32_0 = arith.constant 0 : i32
    %c0_i32_1 = arith.constant 0 : i32
    return %c0_i32, %c0_i32_0 : i32, i32
  }
  func.func @transform_11(%arg0: i32) -> (i32, i32) {
    %c0_i32 = arith.constant 0 : i32
    %c0_i32_0 = arith.constant 0 : i32
    %c0_i32_1 = arith.constant 0 : i32
    return %c0_i32, %c0_i32_0 : i32, i32
  }
  func.func @transform_12(%arg0: i32) -> (i32, i32) {
    %c0_i32 = arith.constant 0 : i32
    %c0_i32_0 = arith.constant 0 : i32
    %c0_i32_1 = arith.constant 0 : i32
    return %c0_i32, %c0_i32_0 : i32, i32
  }
  func.func @transform_13(%arg0: i32) -> (i32, i32) {
    %c0_i32 = arith.constant 0 : i32
    %c0_i32_0 = arith.constant 0 : i32
    %c0_i32_1 = arith.constant 0 : i32
    return %c0_i32, %c0_i32_0 : i32, i32
  }
  func.func @transform_14(%arg0: i32) -> (i32, i32) {
    %c0_i32 = arith.constant 0 : i32
    %c0_i32_0 = arith.constant 0 : i32
    %c0_i32_1 = arith.constant 0 : i32
    return %c0_i32, %c0_i32_0 : i32, i32
  }
  func.func @transform_15(%arg0: i32) -> (i32, i32) {
    %c0_i32 = arith.constant 0 : i32
    %c0_i32_0 = arith.constant 0 : i32
    %c0_i32_1 = arith.constant 0 : i32
    return %c0_i32, %c0_i32_0 : i32, i32
  }
  func.func @transform_16(%arg0: i32) -> (i32, i32) {
    %c0_i32 = arith.constant 0 : i32
    %c0_i32_0 = arith.constant 0 : i32
    %c0_i32_1 = arith.constant 0 : i32
    return %c0_i32, %c0_i32_0 : i32, i32
  }
  func.func @transform_17(%arg0: i32) -> (i32, i32) {
    %c0_i32 = arith.constant 0 : i32
    %c0_i32_0 = arith.constant 0 : i32
    %c0_i32_1 = arith.constant 0 : i32
    return %c0_i32, %c0_i32_0 : i32, i32
  }
  func.func @transform_18(%arg0: i32) -> (i32, i32) {
    %c0_i32 = arith.constant 0 : i32
    %c0_i32_0 = arith.constant 0 : i32
    %c0_i32_1 = arith.constant 0 : i32
    return %c0_i32, %c0_i32_0 : i32, i32
  }
  func.func @transform_19(%arg0: i32) -> (i32, i32) {
    %c0_i32 = arith.constant 0 : i32
    %c0_i32_0 = arith.constant 0 : i32
    %c0_i32_1 = arith.constant 0 : i32
    return %c0_i32, %c0_i32_0 : i32, i32
  }
  func.func @transform_20(%arg0: i32) -> (i32, i32) {
    %c0_i32 = arith.constant 0 : i32
    %c0_i32_0 = arith.constant 0 : i32
    %c0_i32_1 = arith.constant 0 : i32
    return %c0_i32, %c0_i32_0 : i32, i32
  }
  func.func @transform_21(%arg0: i32) -> (i32, i32) {
    %c0_i32 = arith.constant 0 : i32
    %c0_i32_0 = arith.constant 0 : i32
    %c0_i32_1 = arith.constant 0 : i32
    return %c0_i32, %c0_i32_0 : i32, i32
  }
  func.func @transform_22(%arg0: i32) -> (i32, i32) {
    %c0_i32 = arith.constant 0 : i32
    %c0_i32_0 = arith.constant 0 : i32
    %c0_i32_1 = arith.constant 0 : i32
    return %c0_i32, %c0_i32_0 : i32, i32
  }
  func.func @transform_23(%arg0: i32) -> (i32, i32) {
    %c0_i32 = arith.constant 0 : i32
    %c0_i32_0 = arith.constant 0 : i32
    %c0_i32_1 = arith.constant 0 : i32
    return %c0_i32, %c0_i32_0 : i32, i32
  }
  func.func @transform_24(%arg0: i32) -> (i32, i32) {
    %c0_i32 = arith.constant 0 : i32
    %c0_i32_0 = arith.constant 0 : i32
    %c0_i32_1 = arith.constant 0 : i32
    return %c0_i32, %c0_i32_0 : i32, i32
  }
  func.func @transform_25(%arg0: i32) -> (i32, i32, i32) {
    %c0_i32 = arith.constant 0 : i32
    %c0_i32_0 = arith.constant 0 : i32
    %c0_i32_1 = arith.constant 0 : i32
    return %arg0, %c0_i32, %c0_i32_0 : i32, i32, i32
  }
}

module attributes {stable_mosaic.version = 11 : i64} {
  func.func @_out_logsoftmax_kernel(%arg0: i32, %arg1: i32, %arg2: i32, %arg3: memref<16x128xbf16, #tpu.memory_space<vmem>>, %arg4: memref<128x128xbf16, #tpu.memory_space<vmem>>, %arg5: memref<1x128xf32, #tpu.memory_space<vmem>>, %arg6: memref<16x128xf32, #tpu.memory_space<vmem>>, %arg7: memref<16x1xf32, #tpu.memory_space<vmem>>, %arg8: memref<16x1xf32, #tpu.memory_space<vmem>>) attributes {dimension_semantics = [#tpu.dimension_semantics<parallel>, #tpu.dimension_semantics<arbitrary>, #tpu.dimension_semantics<arbitrary>], iteration_bounds = array<i64: 1, 2, 1>, scalar_prefetch = 0 : i64, scratch_operands = 2 : i64, tpu.core_type = #tpu.core_type<tc>, window_params = [{transform_indices = @transform_0, window_bounds = array<i64: 16, 128>}, {transform_indices = @transform_1, window_bounds = array<i64: 128, 128>}, {transform_indices = @transform_2, window_bounds = array<i64: 1, 128>}, {transform_indices = @transform_3, window_bounds = array<i64: 16, 128>}]} {
    %c0 = arith.constant 0 : index
    %c0_0 = arith.constant 0 : index
    %0 = vector.load %arg3[%c0, %c0_0] : memref<16x128xbf16, #tpu.memory_space<vmem>>, vector<16x128xbf16>
    %c0_1 = arith.constant 0 : index
    %c0_2 = arith.constant 0 : index
    %1 = vector.load %arg4[%c0_1, %c0_2] : memref<128x128xbf16, #tpu.memory_space<vmem>>, vector<128x128xbf16>
    %cst = arith.constant dense<0.000000e+00> : vector<16x128xf32>
    %2 = tpu.matmul %0, %1, %cst {dimension_numbers = #tpu.dot_dimension_numbers<[1], [0], [0], [1], [0, 0, 1, 1], [], []>} : vector<16x128xbf16>, vector<128x128xbf16>, vector<16x128xf32> -> vector<16x128xf32>
    %c0_3 = arith.constant 0 : index
    %c0_4 = arith.constant 0 : index
    %3 = vector.load %arg5[%c0_3, %c0_4] : memref<1x128xf32, #tpu.memory_space<vmem>>, vector<1x128xf32>
    %4 = vector.broadcast %3 : vector<1x128xf32> to vector<16x128xf32>
    %5 = arith.addf %2, %4 : vector<16x128xf32>
    %c0_i32 = arith.constant 0 : i32
    %6 = arith.cmpi eq, %arg1, %c0_i32 : i32
    %c0_i32_5 = arith.constant 0 : i32
    %7 = arith.cmpi eq, %arg2, %c0_i32_5 : i32
    %8 = arith.andi %6, %7 : i1
    %9 = arith.extui %8 : i1 to i32
    %c0_i32_6 = arith.constant 0 : i32
    %10 = arith.cmpi ne, %9, %c0_i32_6 : i32
    scf.if %10 {
      %cst_10 = arith.constant 0xFF800000 : f32
      %17 = vector.broadcast %cst_10 : f32 to vector<16x1xf32>
      %c0_11 = arith.constant 0 : index
      %c0_12 = arith.constant 0 : index
      %18 = vector.load %arg7[%c0_11, %c0_12] : memref<16x1xf32, #tpu.memory_space<vmem>>, vector<16x1xf32>
      tpu.vector_store %arg7[%c0_11, %c0_12], %17 {strides = array<i32>} : memref<16x1xf32, #tpu.memory_space<vmem>>, vector<16x1xf32>,
      %cst_13 = arith.constant 0.000000e+00 : f32
      %19 = vector.broadcast %cst_13 : f32 to vector<16x1xf32>
      %c0_14 = arith.constant 0 : index
      %c0_15 = arith.constant 0 : index
      %20 = vector.load %arg8[%c0_14, %c0_15] : memref<16x1xf32, #tpu.memory_space<vmem>>, vector<16x1xf32>
      tpu.vector_store %arg8[%c0_14, %c0_15], %19 {strides = array<i32>} : memref<16x1xf32, #tpu.memory_space<vmem>>, vector<16x1xf32>,
    } else {
    }
    %c0_i32_7 = arith.constant 0 : i32
    %11 = arith.cmpi eq, %arg1, %c0_i32_7 : i32
    %12 = arith.extui %11 : i1 to i32
    %c0_i32_8 = arith.constant 0 : i32
    %13 = arith.cmpi ne, %12, %c0_i32_8 : i32
    scf.if %13 {
      %c0_10 = arith.constant 0 : index
      %c0_11 = arith.constant 0 : index
      %17 = vector.load %arg7[%c0_10, %c0_11] : memref<16x1xf32, #tpu.memory_space<vmem>>, vector<16x1xf32>
      %cst_12 = arith.constant dense<0xFF800000> : vector<16xf32>
      %18 = vector.multi_reduction <maximumf>, %5, %cst_12 [1] : vector<16x128xf32> to vector<16xf32>
      %19 = vector.shape_cast %18 : vector<16xf32> to vector<16x1xf32>
      %20 = arith.maximumf %17, %19 : vector<16x1xf32>
      %c0_13 = arith.constant 0 : index
      %c0_14 = arith.constant 0 : index
      %21 = vector.load %arg8[%c0_13, %c0_14] : memref<16x1xf32, #tpu.memory_space<vmem>>, vector<16x1xf32>
      %22 = arith.subf %17, %20 : vector<16x1xf32>
      %23 = math.exp %22 : vector<16x1xf32>
      %24 = arith.mulf %21, %23 : vector<16x1xf32>
      %25 = vector.broadcast %20 : vector<16x1xf32> to vector<16x128xf32>
      %26 = arith.subf %5, %25 : vector<16x128xf32>
      %27 = math.exp %26 : vector<16x128xf32>
      %cst_15 = arith.constant dense<0.000000e+00> : vector<16xf32>
      %28 = vector.multi_reduction <add>, %27, %cst_15 [1] : vector<16x128xf32> to vector<16xf32>
      %29 = vector.shape_cast %28 : vector<16xf32> to vector<16x1xf32>
      %30 = arith.addf %24, %29 : vector<16x1xf32>
      %c0_16 = arith.constant 0 : index
      %c0_17 = arith.constant 0 : index
      %31 = vector.load %arg8[%c0_16, %c0_17] : memref<16x1xf32, #tpu.memory_space<vmem>>, vector<16x1xf32>
      tpu.vector_store %arg8[%c0_16, %c0_17], %30 {strides = array<i32>} : memref<16x1xf32, #tpu.memory_space<vmem>>, vector<16x1xf32>,
      %c0_18 = arith.constant 0 : index
      %c0_19 = arith.constant 0 : index
      %32 = vector.load %arg7[%c0_18, %c0_19] : memref<16x1xf32, #tpu.memory_space<vmem>>, vector<16x1xf32>
      tpu.vector_store %arg7[%c0_18, %c0_19], %20 {strides = array<i32>} : memref<16x1xf32, #tpu.memory_space<vmem>>, vector<16x1xf32>,
      %c0_20 = arith.constant 0 : index
      %c0_21 = arith.constant 0 : index
      %33 = vector.load %arg6[%c0_20, %c0_21] : memref<16x128xf32, #tpu.memory_space<vmem>>, vector<16x128xf32>
      tpu.vector_store %arg6[%c0_20, %c0_21], %5 {strides = array<i32>} : memref<16x128xf32, #tpu.memory_space<vmem>>, vector<16x128xf32>,
    } else {
    }
    %c1_i32 = arith.constant 1 : i32
    %14 = arith.cmpi eq, %arg1, %c1_i32 : i32
    %15 = arith.extui %14 : i1 to i32
    %c0_i32_9 = arith.constant 0 : i32
    %16 = arith.cmpi ne, %15, %c0_i32_9 : i32
    scf.if %16 {
      %c0_10 = arith.constant 0 : index
      %c0_11 = arith.constant 0 : index
      %17 = vector.load %arg7[%c0_10, %c0_11] : memref<16x1xf32, #tpu.memory_space<vmem>>, vector<16x1xf32>
      %c0_12 = arith.constant 0 : index
      %c0_13 = arith.constant 0 : index
      %18 = vector.load %arg8[%c0_12, %c0_13] : memref<16x1xf32, #tpu.memory_space<vmem>>, vector<16x1xf32>
      %19 = math.log %18 : vector<16x1xf32>
      %20 = arith.addf %17, %19 : vector<16x1xf32>
      %21 = vector.broadcast %20 : vector<16x1xf32> to vector<16x128xf32>
      %22 = arith.subf %5, %21 : vector<16x128xf32>
      %c0_14 = arith.constant 0 : index
      %c0_15 = arith.constant 0 : index
      %23 = vector.load %arg6[%c0_14, %c0_15] : memref<16x128xf32, #tpu.memory_space<vmem>>, vector<16x128xf32>
      tpu.vector_store %arg6[%c0_14, %c0_15], %22 {strides = array<i32>} : memref<16x128xf32, #tpu.memory_space<vmem>>, vector<16x128xf32>,
    } else {
    }
    return
  }
  func.func @transform_0(%arg0: i32, %arg1: i32, %arg2: i32) -> (i32, i32) {
    %c0_i32 = arith.constant 0 : i32
    %c0_i32_0 = arith.constant 0 : i32
    return %arg0, %c0_i32 : i32, i32
  }
  func.func @transform_1(%arg0: i32, %arg1: i32, %arg2: i32) -> (i32, i32) {
    %c0_i32 = arith.constant 0 : i32
    %c0_i32_0 = arith.constant 0 : i32
    return %c0_i32, %arg2 : i32, i32
  }
  func.func @transform_2(%arg0: i32, %arg1: i32, %arg2: i32) -> (i32, i32) {
    %c0_i32 = arith.constant 0 : i32
    %c0_i32_0 = arith.constant 0 : i32
    return %c0_i32, %arg2 : i32, i32
  }
  func.func @transform_3(%arg0: i32, %arg1: i32, %arg2: i32) -> (i32, i32) {
    %c0_i32 = arith.constant 0 : i32
    return %arg0, %arg2 : i32, i32
  }
}

</mosaic_0001>

<llo_original>
// kernel: transformer_decoder_forward.5
$region0: #{transformer_decoder_forward.5}
  #allocation0 [shape = 'u32[]', space=smem, size = 0x4, offset = 0x4, fixed_abs, tag = 'smem constant byte address 0x4 - core index']
  #allocation1 [shape = 'u32[144,128]{1,0:T(1,128)}', space=vmem, size = 0x12000, scoped, tag = 'internal scratch']
  #allocation2 [shape = 'f32[16,1]{1,0:T(8,128)}', space=vmem, size = 0x2000, scoped, tag = 'scratch operand']
  #allocation3 [shape = 'f32[16,1]{1,0:T(8,128)}', space=vmem, size = 0x2000, scoped, tag = 'scratch operand']
  %s0 = inlined_call_operand.vmem [shape: bf16[16,128], index: 0, kind: input, shape index: {}]
  %s1 = inlined_call_operand.vmem [shape: bf16[128,128], index: 1, kind: input, shape index: {}]
  %s2 = inlined_call_operand.vmem [shape: f32[1,128], index: 2, kind: input, shape index: {}]
  %s3 = inlined_call_operand.vmem [shape: f32[16,128], index: 3, kind: output, shape index: {}]
  %s4 = sld [smem:[#allocation0]]
  $region57: #{transformer_decoder_forward.5} parent=0
    _
  %s6 = ssub.s32 1, %s4
  %s7 = scalar_select 0, %s6, %s4
  loop: start=0, step=1, limit=4
  $region2: #{transformer_decoder_forward.5} parent=0 // loop_pre_header
    _
  $region3: #{transformer_decoder_forward.5} parent=0 // loop_header
    %s9 = sphi 0, %s13
    %p10 = scmp.ge.s32.totalorder %s9, 4
    %s16 = sphi 0, %s35
    %s17 = sphi 0, %s31
    %s18 = sphi 0, %s27
    %s19 = sphi 0, %s16
    %s20 = sphi 0, %s17
    %s21 = sphi 0, %s18
    %s22 = sphi 0, %s19
    %s23 = sphi 0, %s20
    %s24 = sphi 0, %s21
    %s38 = sphi 0, %s40
    %s41 = sphi 0, %s38
    %s42 = sphi 0, %s41
    %s58 = sphi 0, %s42
    %s64 = sphi 0, %s66
    %s67 = sphi 0, %s64
    %s68 = sphi 0, %s67
    %s84 = sphi 0, %s68
    %s90 = sphi 0, %s92
    %s93 = sphi 0, %s90
    %s94 = sphi 0, %s93
    %s110 = sphi 0, %s94
    %s118 = sphi 0, %s120
    %s121 = sphi 0, %s118
    %s122 = sphi 0, %s121
    %s138 = sphi 0, %s122
  $region4: #{transformer_decoder_forward.5} parent=0 // loop_header_branch
    %12 = sbr.rel (%p10) target = $region8
  $region5: #{transformer_decoder_forward.5} parent=0 // loop_body
    %s14 = ssub.s32 %s9, 1
    %s15 = ssub.s32 %s9, 2
    %s25 = sadd.s32 1, %s18
    %p26 = scmp.ge.s32.totalorder %s25, 1
    %s27 = scalar_select %p26, 0, %s25
    %s28 = sadd.s32 1, %s17
    %s29 = scalar_select %p26, %s28, %s17
    %p30 = scmp.ge.s32.totalorder %s29, 2
    %s31 = scalar_select %p30, 0, %s29
    %s32 = sadd.s32 1, %s16
    %s33 = scalar_select %p30, %s32, %s16
    %p34 = scmp.ge.s32.totalorder %s33, 1
    %s35 = scalar_select %p34, 0, %s33
    %s36 = ssub.s32 %s16, %s35
    %p37 = scmp.eq.s32.totalorder %s36, 0
    %s39 = sadd.s32 %s38, 1
    %s40 = scalar_select %p37, %s38, %s39
    %p43 = pneg %p37
    %p44 = scmp.eq.s32.totalorder %s9, 1
    %p45 = por %p43, %p44
    %p46 = scmp.ne.s32.totalorder %s38, %s41
    %p47 = scmp.eq.s32.totalorder %s9, 0
    %p48 = por %p46, %p47
    %p49 = scmp.ne.s32.totalorder %s38, %s41
    %p50 = scmp.eq.s32.totalorder %s14, 1
    %p51 = por %p49, %p50
    %p52 = scmp.ne.s32.totalorder %s41, %s42
    %p53 = scmp.eq.s32.totalorder %s14, 0
    %p54 = por %p52, %p53
    %p55 = scmp.ne.s32.totalorder %s41, %s42
    %p56 = scmp.eq.s32.totalorder %s15, 1
    %p57 = por %p55, %p56
    %p59 = scmp.ne.s32.totalorder %s42, %s58
    %p60 = scmp.eq.s32.totalorder %s15, 0
    %p61 = por %p59, %p60
    %s62 = ssub.s32 %s18, %s27
    %p63 = scmp.eq.s32.totalorder %s62, 0
    %s65 = sadd.s32 %s64, 1
    %s66 = scalar_select %p63, %s64, %s65
    %p69 = pneg %p63
    %p70 = scmp.eq.s32.totalorder %s9, 1
    %p71 = por %p69, %p70
    %p72 = scmp.ne.s32.totalorder %s64, %s67
    %p73 = scmp.eq.s32.totalorder %s9, 0
    %p74 = por %p72, %p73
    %p75 = scmp.ne.s32.totalorder %s64, %s67
    %p76 = scmp.eq.s32.totalorder %s14, 1
    %p77 = por %p75, %p76
    %p78 = scmp.ne.s32.totalorder %s67, %s68
    %p79 = scmp.eq.s32.totalorder %s14, 0
    %p80 = por %p78, %p79
    %p81 = scmp.ne.s32.totalorder %s67, %s68
    %p82 = scmp.eq.s32.totalorder %s15, 1
    %p83 = por %p81, %p82
    %p85 = scmp.ne.s32.totalorder %s68, %s84
    %p86 = scmp.eq.s32.totalorder %s15, 0
    %p87 = por %p85, %p86
    %s88 = ssub.s32 %s18, %s27
    %p89 = scmp.eq.s32.totalorder %s88, 0
    %s91 = sadd.s32 %s90, 1
    %s92 = scalar_select %p89, %s90, %s91
    %p95 = pneg %p89
    %p96 = scmp.eq.s32.totalorder %s9, 1
    %p97 = por %p95, %p96
    %p98 = scmp.ne.s32.totalorder %s90, %s93
    %p99 = scmp.eq.s32.totalorder %s9, 0
    %p100 = por %p98, %p99
    %p101 = scmp.ne.s32.totalorder %s90, %s93
    %p102 = scmp.eq.s32.totalorder %s14, 1
    %p103 = por %p101, %p102
    %p104 = scmp.ne.s32.totalorder %s93, %s94
    %p105 = scmp.eq.s32.totalorder %s14, 0
    %p106 = por %p104, %p105
    %p107 = scmp.ne.s32.totalorder %s93, %s94
    %p108 = scmp.eq.s32.totalorder %s15, 1
    %p109 = por %p107, %p108
    %p111 = scmp.ne.s32.totalorder %s94, %s110
    %p112 = scmp.eq.s32.totalorder %s15, 0
    %p113 = por %p111, %p112
    %s114 = ssub.s32 %s16, %s35
    %s115 = ssub.s32 %s18, %s27
    %s116 = sor.u32 %s114, %s115
    %p117 = scmp.eq.s32.totalorder %s116, 0
    %s119 = sadd.s32 %s118, 1
    %s120 = scalar_select %p117, %s118, %s119
    %p123 = pneg %p117
    %p124 = scmp.eq.s32.totalorder %s9, 1
    %p125 = por %p123, %p124
    %p126 = scmp.ne.s32.totalorder %s118, %s121
    %p127 = scmp.eq.s32.totalorder %s9, 0
    %p128 = por %p126, %p127
    %p129 = scmp.ne.s32.totalorder %s118, %s121
    %p130 = scmp.eq.s32.totalorder %s14, 1
    %p131 = por %p129, %p130
    %p132 = scmp.ne.s32.totalorder %s121, %s122
    %p133 = scmp.eq.s32.totalorder %s14, 0
    %p134 = por %p132, %p133
    %p135 = scmp.ne.s32.totalorder %s121, %s122
    %p136 = scmp.eq.s32.totalorder %s15, 1
    %p137 = por %p135, %p136
    %p139 = scmp.ne.s32.totalorder %s122, %s138
    %p140 = scmp.eq.s32.totalorder %s15, 0
    %p141 = por %p139, %p140
    %p142 = scmp.le.s32.totalorder 1, %s9
    %p143 = scmp.lt.s32.totalorder %s9, 3
    %p144 = pnand %p142, %p143
    %p145 = pneg %p144
    // Predicated region
    $region9: #{transformer_decoder_forward.5} parent=5 // pred_check
      _
    $region10: #{transformer_decoder_forward.5} parent=5 // pred_check_branch
      %147 = sbr.rel (%p144) target = $region12
    $region11: #{transformer_decoder_forward.5} parent=5 // pred_region
      %s148 = ssub.s32 %s9, 1
      // Predicated region
      $region13: #{transformer_decoder_forward.5} parent=11 // pred_check
        %p149 = pneg %p54
      $region14: #{transformer_decoder_forward.5} parent=11 // pred_check_branch
        %151 = sbr.rel (%p149) target = $region16
      $region15: #{transformer_decoder_forward.5} parent=11 // pred_region
        %s152 = smul.u32 2, %s19
        %p153 = scmp.lt.s32.totalorder %s152, 1
        %s154 = scalar_select %p153, %s152, 1
        %s155 = smul.addr %s154, 4
        %s156 = scalar_lea.vmem %s0, %s155
        %s157 = smul.u32 2, %s19
      $region16: #{transformer_decoder_forward.5} parent=11 // pred_fallthru
        _
      // Predicated region
      $region17: #{transformer_decoder_forward.5} parent=11 // pred_check
        %p158 = pneg %p80
      $region18: #{transformer_decoder_forward.5} parent=11 // pred_check_branch
        %160 = sbr.rel (%p158) target = $region20
      $region19: #{transformer_decoder_forward.5} parent=11 // pred_region
        %p161 = scmp.lt.s32.totalorder %s21, 0
        %s162 = scalar_select %p161, %s21, 0
        %s163 = smul.addr %s162, 4
        %s164 = scalar_lea.vmem %s1, %s163
      $region20: #{transformer_decoder_forward.5} parent=11 // pred_fallthru
        _
      // Predicated region
      $region21: #{transformer_decoder_forward.5} parent=11 // pred_check
        %p165 = pneg %p106
      $region22: #{transformer_decoder_forward.5} parent=11 // pred_check_branch
        %167 = sbr.rel (%p165) target = $region24
      $region23: #{transformer_decoder_forward.5} parent=11 // pred_region
        %p168 = scmp.lt.s32.totalorder %s21, 0
        %s169 = scalar_select %p168, %s21, 0
        %s170 = scalar_lea.vmem %s2, %s169
      $region24: #{transformer_decoder_forward.5} parent=11 // pred_fallthru
        _
    $region12: #{transformer_decoder_forward.5} parent=5 // pred_fallthru
      _
    %p171 = scmp.lt.s32.totalorder %s9, 2
    // Predicated region
    $region25: #{transformer_decoder_forward.5} parent=5 // pred_check
      %p172 = pneg %p171
    $region26: #{transformer_decoder_forward.5} parent=5 // pred_check_branch
      %174 = sbr.rel (%p172) target = $region28
    $region27: #{transformer_decoder_forward.5} parent=5 // pred_region
      _
    $region28: #{transformer_decoder_forward.5} parent=5 // pred_fallthru
      _
    %p175 = scmp.le.s32.totalorder 1, %s9
    %p176 = scmp.lt.s32.totalorder %s9, 3
    %p177 = pnand %p175, %p176
    %p178 = pneg %p177
    // Predicated region
    $region29: #{transformer_decoder_forward.5} parent=5 // pred_check
      _
    $region30: #{transformer_decoder_forward.5} parent=5 // pred_check_branch
      %180 = sbr.rel (%p177) target = $region32
    $region31: #{transformer_decoder_forward.5} parent=5 // pred_region
      %s181 = ssub.s32 %s9, 1
      %s182 = smul.u32 2, %s19
      %p183 = scmp.lt.s32.totalorder %s182, 1
      %s184 = scalar_select %p183, %s182, 1
      %s185 = smul.addr %s184, 4
      %s186 = scalar_lea.vmem %s0, %s185
      %p187 = pneg %p54
      %p188 = pneg %p51
      %p189 = scmp.lt.s32.totalorder %s21, 0
      %s190 = scalar_select %p189, %s21, 0
      %s191 = smul.addr %s190, 4
      %s192 = scalar_lea.vmem %s1, %s191
      %p193 = pneg %p80
      %p194 = pneg %p77
      %p195 = scmp.lt.s32.totalorder %s21, 0
      %s196 = scalar_select %p195, %s21, 0
      %s197 = scalar_lea.vmem %s2, %s196
      %p198 = pneg %p106
      %p199 = pneg %p103
      %p200 = pneg %p134
      %p201 = pneg %p131
      %s202 = smul.u32 2, %s19
      %p203 = scmp.lt.s32.totalorder %s202, 1
      %s204 = scalar_select %p203, %s202, 1
      %p205 = scmp.lt.s32.totalorder %s21, 0
      %s206 = scalar_select %p205, %s21, 0
      %s207 = sadd.s32 %s206, %s204
      %s208 = smul.addr %s207, 8
      %s209 = scalar_lea.vmem %s3, %s208
      %s210 = smul.u32 2, %s19
      %p211 = scmp.lt.s32.totalorder %s210, 1
      %s212 = scalar_select %p211, %s210, 1
      %s213 = smul.addr %s212, 4
      %s214 = scalar_lea.vmem %s0, %s213
      %s215 = smul.u32 2, %s19
      %p216 = scmp.lt.s32.totalorder %s21, 0
      %s217 = scalar_select %p216, %s21, 0
      %s218 = smul.addr %s217, 4
      %s219 = scalar_lea.vmem %s1, %s218
      %p220 = scmp.lt.s32.totalorder %s21, 0
      %s221 = scalar_select %p220, %s21, 0
      %s222 = scalar_lea.vmem %s2, %s221
      %s223 = smul.u32 2, %s19
      %p224 = scmp.lt.s32.totalorder %s223, 1
      %s225 = scalar_select %p224, %s223, 1
      %p226 = scmp.lt.s32.totalorder %s21, 0
      %s227 = scalar_select %p226, %s21, 0
      %s228 = sadd.s32 %s227, %s225
      %s229 = smul.addr %s228, 8
      %s230 = scalar_lea.vmem %s3, %s229
      %s231 = smul.u32 2, %s19
      %v233 = vld [vmem:[%s214] sm:$0xf]
      %v234 = vld [vmem:[%s214 + $0x4] sm:$0xf]
      %v235 = vld [vmem:[%s219] sm:$0xf]
      %v236 = vld [vmem:[%s219 + $0x4] sm:$0xf]
      %v237 = vld [vmem:[%s219 + $0x8] sm:$0xf]
      %v238 = vld [vmem:[%s219 + $0xc] sm:$0xf]
      %v239 = vld [vmem:[%s219 + $0x10] sm:$0xf]
      %v240 = vld [vmem:[%s219 + $0x14] sm:$0xf]
      %v241 = vld [vmem:[%s219 + $0x18] sm:$0xf]
      %v242 = vld [vmem:[%s219 + $0x1c] sm:$0xf]
      %v243 = vld [vmem:[%s219 + $0x20] sm:$0xf]
      %v244 = vld [vmem:[%s219 + $0x24] sm:$0xf]
      %v245 = vld [vmem:[%s219 + $0x28] sm:$0xf]
      %v246 = vld [vmem:[%s219 + $0x2c] sm:$0xf]
      %v247 = vld [vmem:[%s219 + $0x30] sm:$0xf]
      %v248 = vld [vmem:[%s219 + $0x34] sm:$0xf]
      %v249 = vld [vmem:[%s219 + $0x38] sm:$0xf]
      %v250 = vld [vmem:[%s219 + $0x3c] sm:$0xf]
      %v251 = vld [vmem:[%s222] sm:$0x1]
      %v253 = vlaneseq
      %v254 = vshrl.u32 %v253, 7
      %v255 = vsub.s32 0, %v254
      %v256 = vrot.slane %v251, %v255
      %v260 = vunpack.c.l.b16 %v233
      %v261 = vunpack.c.l.b16 %v234
      %v262 = vpack.c.b16 %v261, %v260
      %v280 = vunpack.c.l.b16 %v235
      %v281 = vunpack.c.l.b16 %v236
      %v282 = vunpack.c.l.b16 %v237
      %v283 = vunpack.c.l.b16 %v238
      %v284 = vunpack.c.l.b16 %v239
      %v285 = vunpack.c.l.b16 %v240
      %v286 = vunpack.c.l.b16 %v241
      %v287 = vunpack.c.l.b16 %v242
      %v288 = vunpack.c.l.b16 %v243
      %v289 = vunpack.c.l.b16 %v244
      %v290 = vunpack.c.l.b16 %v245
      %v291 = vunpack.c.l.b16 %v246
      %v292 = vunpack.c.l.b16 %v247
      %v293 = vunpack.c.l.b16 %v248
      %v294 = vunpack.c.l.b16 %v249
      %v295 = vunpack.c.l.b16 %v250
      %v296 = vpack.c.b16 %v281, %v280
      %v297 = vpack.c.b16 %v283, %v282
      %v298 = vpack.c.b16 %v285, %v284
      %v299 = vpack.c.b16 %v287, %v286
      %v300 = vpack.c.b16 %v289, %v288
      %v301 = vpack.c.b16 %v291, %v290
      %v302 = vpack.c.b16 %v293, %v292
      %v303 = vpack.c.b16 %v295, %v294
      %312 = vmatprep.subr.bf16.mxu0 0
      %313 = vmatpush1.bf16.msra.mxu0 %v296
      %314 = vmatprep.subr.bf16.mxu0 0
      %315 = vmatpush1.bf16.msra.mxu0 %v297
      %316 = vmatprep.subr.bf16.mxu0 0
      %317 = vmatpush1.bf16.msra.mxu0 %v298
      %318 = vmatprep.subr.bf16.mxu0 0
      %319 = vmatpush1.bf16.msra.mxu0 %v299
      %320 = vmatprep.subr.bf16.mxu0 0
      %321 = vmatpush1.bf16.msra.mxu0 %v300
      %322 = vmatprep.subr.bf16.mxu0 0
      %323 = vmatpush1.bf16.msra.mxu0 %v301
      %324 = vmatprep.subr.bf16.mxu0 0
      %325 = vmatpush1.bf16.msra.mxu0 %v302
      %326 = vmatprep.subr.bf16.mxu0 0
      %327 = vmatpush1.bf16.msra.mxu0 %v303
      %328 = vmatprep.subr.bf16.mxu0 0
      %329 = vmatpush1.bf16.msra.mxu0 0
      %330 = vmatprep.subr.bf16.mxu0 0
      %331 = vmatpush1.bf16.msra.mxu0 0
      %332 = vmatprep.subr.bf16.mxu0 0
      %333 = vmatpush1.bf16.msra.mxu0 0
      %334 = vmatprep.subr.bf16.mxu0 0
      %335 = vmatpush1.bf16.msra.mxu0 0
      %336 = vmatprep.subr.bf16.mxu0 0
      %337 = vmatpush1.bf16.msra.mxu0 0
      %338 = vmatprep.subr.bf16.mxu0 0
      %339 = vmatpush1.bf16.msra.mxu0 0
      %340 = vmatprep.subr.bf16.mxu0 0
      %341 = vmatpush1.bf16.msra.mxu0 0
      %342 = vmatprep.subr.bf16.mxu0 0
      %343 = vmatpush1.bf16.msra.mxu0 0
      %344 = vmatprep.mubr.bf16.mxu0 0
      %345 = vmatmul.mubr.bf16.gmra.mrb[0].mxu0 %v262
      %v346 = vpop.f32.mrb[0].mxu0
      %v347 = vadd.f32 %v256, %v346
      %v348 = vpop.f32.mrb[0].mxu0
      %v349 = vpop.f32.mrb[0].mxu0
      %v350 = vadd.f32 %v256, %v349
      %v351 = vpop.f32.mrb[0].mxu0
      %352 = vdwg.mxu0
      %p353 = scmp.eq.s32.totalorder %s20, 0
      %p354 = scmp.eq.s32.totalorder %s21, 0
      %p355 = pnand %p353, %p354
      %p356 = pneg %p355
      // Predicated region
      $region33: #{transformer_decoder_forward.5} parent=31 // pred_check
        _
      $region34: #{transformer_decoder_forward.5} parent=31 // pred_check_branch
        %358 = sbr.rel (%p355) target = $region36
      $region35: #{transformer_decoder_forward.5} parent=31 // pred_region
        %vm359 = vcmask 7168
        %360 = vst.msk [vmem:[#allocation2] sm:$0xff] %vm359, -inf
        %361 = vst.msk [vmem:[#allocation2 + $0x8] sm:$0xff] %vm359, -inf
        %362 = vst.msk [vmem:[#allocation3] sm:$0xff] %vm359, 0.0
        %363 = vst.msk [vmem:[#allocation3 + $0x8] sm:$0xff] %vm359, 0.0
      $region36: #{transformer_decoder_forward.5} parent=31 // pred_fallthru
        _
      // Predicated region
      $region37: #{transformer_decoder_forward.5} parent=31 // pred_check
        %p364 = pneg %p353
      $region38: #{transformer_decoder_forward.5} parent=31 // pred_check_branch
        %366 = sbr.rel (%p364) target = $region40
      $region39: #{transformer_decoder_forward.5} parent=31 // pred_region
        %v367 = vld [vmem:[#allocation2] sm:$0xff]
        %v368 = vld [vmem:[#allocation2 + $0x8] sm:$0xff]
        %369 = vmax.xlane.f32.xlu0 %v347
        %v370 = vpop.xlane.xlu0 %369
        %371 = vmax.xlane.f32.xlu0 %v350
        %v372 = vpop.xlane.xlu0 %371
        %v373 = vmax.f32 %v367, %v370
        %v374 = vmax.f32 %v368, %v372
        %v375 = vld [vmem:[#allocation3] sm:$0xff]
        %v376 = vld [vmem:[#allocation3 + $0x8] sm:$0xff]
        %v377 = vsub.f32 %v367, %v373
        %v378 = vsub.f32 %v368, %v374
        %v379 = vmul.f32 %v377, 1.442695
        %v380 = vpow.pop %v379
        %v381 = vmul.f32 %v378, 1.442695
        %v382 = vpow.pop %v381
        %v383 = vmul.f32 %v375, %v380
        %v384 = vmul.f32 %v376, %v382
        %386 = vset.pattern.permute.xlu0 0
        %387 = vperm.xlu0 %386, %v373
        %v388 = vpop.permute.xlu0 %387
        %391 = vset.pattern.permute.xlu0 0
        %392 = vperm.xlu0 %391, %v374
        %v393 = vpop.permute.xlu0 %392
        %v395 = vsub.f32 %v347, %v388
        %v396 = vsub.f32 %v350, %v393
        %v397 = vmul.f32 %v395, 1.442695
        %v398 = vpow.pop %v397
        %v399 = vmul.f32 %v396, 1.442695
        %v400 = vpow.pop %v399
        %401 = vadd.xlane.f32.xlu0 %v398
        %v402 = vpop.xlane.xlu0 %401
        %403 = vadd.xlane.f32.xlu0 %v400
        %v404 = vpop.xlane.xlu0 %403
        %v405 = vadd.f32 %v383, %v402
        %v406 = vadd.f32 %v384, %v404
        %vm407 = vcmask 7168
        %408 = vst.msk [vmem:[#allocation3] sm:$0xff] %vm407, %v405
        %409 = vst.msk [vmem:[#allocation3 + $0x8] sm:$0xff] %vm407, %v406
        %410 = vst.msk [vmem:[#allocation2] sm:$0xff] %vm407, %v373
        %411 = vst.msk [vmem:[#allocation2 + $0x8] sm:$0xff] %vm407, %v374
        %412 = vst [vmem:[%s230] sm:$0xff] %v347
        %413 = vst [vmem:[%s230 + $0x8] sm:$0xff] %v350
      $region40: #{transformer_decoder_forward.5} parent=31 // pred_fallthru
        _
      %p414 = scmp.eq.s32.totalorder %s20, 1
      // Predicated region
      $region41: #{transformer_decoder_forward.5} parent=31 // pred_check
        %p415 = pneg %p414
      $region42: #{transformer_decoder_forward.5} parent=31 // pred_check_branch
        %417 = sbr.rel (%p415) target = $region44
      $region43: #{transformer_decoder_forward.5} parent=31 // pred_region
        %v418 = vld [vmem:[#allocation2] sm:$0xff]
        %v419 = vld [vmem:[#allocation2 + $0x8] sm:$0xff]
        %v420 = vld [vmem:[#allocation3] sm:$0xff]
        %v421 = vld [vmem:[#allocation3 + $0x8] sm:$0xff]
        %v422 = vlog2.pop %v420
        %v423 = vmul.f32 %v422, 0.6931472
        %v424 = vlog2.pop %v421
        %v425 = vmul.f32 %v424, 0.6931472
        %v426 = vadd.f32 %v418, %v423
        %v427 = vadd.f32 %v419, %v425
        %429 = vset.pattern.permute.xlu0 0
        %430 = vperm.xlu0 %429, %v426
        %v431 = vpop.permute.xlu0 %430
        %434 = vset.pattern.permute.xlu0 0
        %435 = vperm.xlu0 %434, %v427
        %v436 = vpop.permute.xlu0 %435
        %v438 = vsub.f32 %v347, %v431
        %v439 = vsub.f32 %v350, %v436
        %440 = vst [vmem:[%s230] sm:$0xff] %v438
        %441 = vst [vmem:[%s230 + $0x8] sm:$0xff] %v439
      $region44: #{transformer_decoder_forward.5} parent=31 // pred_fallthru
        _
      %s442 = smul.u32 2, %s19
      %p443 = scmp.lt.s32.totalorder %s442, 1
      %s444 = scalar_select %p443, %s442, 1
      %p445 = scmp.lt.s32.totalorder %s21, 0
      %s446 = scalar_select %p445, %s21, 0
      %s447 = sadd.s32 %s446, %s444
      %s448 = smul.addr %s447, 8
      %s449 = scalar_lea.vmem %s3, %s448
      // Predicated region
      $region45: #{transformer_decoder_forward.5} parent=31 // pred_check
        %p450 = pneg %p131
      $region46: #{transformer_decoder_forward.5} parent=31 // pred_check_branch
        %452 = sbr.rel (%p450) target = $region48
      $region47: #{transformer_decoder_forward.5} parent=31 // pred_region
        %s453 = smul.u32 2, %s19
      $region48: #{transformer_decoder_forward.5} parent=31 // pred_fallthru
        _
      // Predicated region
      $region49: #{transformer_decoder_forward.5} parent=31 // pred_check
        %p454 = pneg %p131
      $region50: #{transformer_decoder_forward.5} parent=31 // pred_check_branch
        %456 = sbr.rel (%p454) target = $region52
      $region51: #{transformer_decoder_forward.5} parent=31 // pred_region
        %s457 = smul.u32 2, %s19
        %p458 = scmp.lt.s32.totalorder %s457, 1
        %s459 = scalar_select %p458, %s457, 1
        %p460 = scmp.lt.s32.totalorder %s21, 0
        %s461 = scalar_select %p460, %s21, 0
        %s462 = sadd.s32 %s461, %s459
        %s463 = smul.addr %s462, 8
        %s464 = scalar_lea.vmem %s3, %s463
      $region52: #{transformer_decoder_forward.5} parent=31 // pred_fallthru
        _
    $region32: #{transformer_decoder_forward.5} parent=5 // pred_fallthru
      _
    %p465 = scmp.le.s32.totalorder 2, %s9
    // Predicated region
    $region53: #{transformer_decoder_forward.5} parent=5 // pred_check
      %p466 = pneg %p465
    $region54: #{transformer_decoder_forward.5} parent=5 // pred_check_branch
      %468 = sbr.rel (%p466) target = $region56
    $region55: #{transformer_decoder_forward.5} parent=5 // pred_region
      %s469 = ssub.s32 %s9, 2
    $region56: #{transformer_decoder_forward.5} parent=5 // pred_fallthru
      _
  $region6: #{transformer_decoder_forward.5} parent=0 // loop_footer
    %s13 = sadd.s32 1, %s9
  $region7: #{transformer_decoder_forward.5} parent=0 // loop_footer_branch
    %8 = sbr.rel target = $region3
  $region8: #{transformer_decoder_forward.5} parent=0 // loop_exit
    _

// kernel: transformer_decoder_forward.3
$region0: #{transformer_decoder_forward.3}
  #allocation0 [shape = 'u32[]', space=smem, size = 0x4, offset = 0x4, fixed_abs, tag = 'smem constant byte address 0x4 - core index']
  #allocation1 [shape = 'u32[144,128]{1,0:T(1,128)}', space=vmem, size = 0x12000, scoped, tag = 'internal scratch']
  %s0 = inlined_call_operand.vmem [shape: f32[2,8,128], index: 0, kind: input, shape index: {}]
  %s1 = inlined_call_operand.vmem [shape: f32[8,128], index: 1, kind: input, shape index: {}]
  %s2 = inlined_call_operand.vmem [shape: bf16[2,8,128], index: 2, kind: input, shape index: {}]
  %s3 = inlined_call_operand.vmem [shape: s32[2,1,1], index: 3, kind: input, shape index: {}]
  %s4 = inlined_call_operand.vmem [shape: s32[2,1,1], index: 4, kind: input, shape index: {}]
  %s5 = inlined_call_operand.vmem [shape: bf16[128,384], index: 5, kind: input, shape index: {}]
  %s6 = inlined_call_operand.vmem [shape: f32[1,384], index: 6, kind: input, shape index: {}]
  %s7 = inlined_call_operand.vmem [shape: bf16[128,128], index: 7, kind: input, shape index: {}]
  %s8 = inlined_call_operand.vmem [shape: f32[1,128], index: 8, kind: input, shape index: {}]
  %s9 = inlined_call_operand.vmem [shape: f32[1,128], index: 9, kind: input, shape index: {}]
  %s10 = inlined_call_operand.vmem [shape: f32[1,128], index: 10, kind: input, shape index: {}]
  %s11 = inlined_call_operand.hbm [shape: bf16[128,128], index: 11, kind: input, shape index: {}]
  %s12 = inlined_call_operand.vmem [shape: f32[1,128], index: 12, kind: input, shape index: {}]
  %s13 = inlined_call_operand.vmem [shape: bf16[128,256], index: 13, kind: input, shape index: {}]
  %s14 = inlined_call_operand.vmem [shape: f32[1,256], index: 14, kind: input, shape index: {}]
  %s15 = inlined_call_operand.hbm [shape: bf16[128,128], index: 15, kind: input, shape index: {}]
  %s16 = inlined_call_operand.hbm [shape: f32[1,128], index: 16, kind: input, shape index: {}]
  %s17 = inlined_call_operand.hbm [shape: f32[1,128], index: 17, kind: input, shape index: {}]
  %s18 = inlined_call_operand.vmem [shape: f32[1,128], index: 18, kind: input, shape index: {}]
  %s19 = inlined_call_operand.hbm [shape: bf16[128,256], index: 19, kind: input, shape index: {}]
  %s20 = inlined_call_operand.vmem [shape: f32[1,256], index: 20, kind: input, shape index: {}]
  %s21 = inlined_call_operand.hbm [shape: bf16[256,128], index: 21, kind: input, shape index: {}]
  %s22 = inlined_call_operand.vmem [shape: f32[1,128], index: 22, kind: input, shape index: {}]
  %s23 = inlined_call_operand.vmem [shape: f32[1,128], index: 23, kind: input, shape index: {}]
  %s24 = inlined_call_operand.vmem [shape: f32[1,128], index: 24, kind: input, shape index: {}]
  %s25 = inlined_call_operand.vmem [shape: bf16[2,8,128], index: 25, kind: output, shape index: {}]
  %s26 = sld [smem:[#allocation0]]
  $region134: #{transformer_decoder_forward.3} parent=0
    _
  %s28 = ssub.s32 1, %s26
  %s29 = scalar_select 0, %s28, %s26
  $region1: #{transformer_decoder_forward.3} parent=0
    #allocation2 [shape = 'u8[32768]{0}', space=vmem, size = 0x8000, scoped, tag = 'input window, operand 11, single buffered']
    #allocation3 [shape = 's32[1]{0}', space=sflag, size = 0x4, scoped, tag = 'scoped memory for transformer_decoder_forward.3']
    #allocation4 [shape = 'u8[32768]{0}', space=vmem, size = 0x8000, scoped, tag = 'input window, operand 15, single buffered']
    #allocation5 [shape = 's32[1]{0}', space=sflag, size = 0x4, scoped, tag = 'scoped memory for transformer_decoder_forward.3']
    #allocation6 [shape = 'u8[512]{0}', space=vmem, size = 0x400, scoped, tag = 'input window, operand 16, single buffered']
    #allocation7 [shape = 'u8[512]{0}', space=vmem, size = 0x400, scoped, tag = 'input window, operand 17, single buffered']
    #allocation8 [shape = 's32[1]{0}', space=sflag, size = 0x4, scoped, tag = 'scoped memory for transformer_decoder_forward.3']
    #allocation9 [shape = 'u8[65536]{0}', space=vmem, size = 0x10000, scoped, tag = 'input window, operand 19, single buffered']
    #allocation10 [shape = 'u8[65536]{0}', space=vmem, size = 0x10000, scoped, tag = 'input window, operand 21, single buffered']
    #allocation11 [shape = 's32[1]{0}', space=sflag, size = 0x4, scoped, tag = 'scoped memory for transformer_decoder_forward.3']
    %30 = vsyncpa [#allocation3], 0
    %31 = vsyncpa [#allocation5], 0
    %32 = vsyncpa [#allocation8], 0
    %33 = vsyncpa [#allocation11], 0
    // Predicated region
    $region2: #{transformer_decoder_forward.3} parent=1 // pred_check
      _
    $region3: #{transformer_decoder_forward.3} parent=1 // pred_check_branch
      %35 = sbr.rel (0) target = $region5
    $region4: #{transformer_decoder_forward.3} parent=1 // pred_region
      _
    $region5: #{transformer_decoder_forward.3} parent=1 // pred_fallthru
      _
    // Predicated region
    $region6: #{transformer_decoder_forward.3} parent=1 // pred_check
      _
    $region7: #{transformer_decoder_forward.3} parent=1 // pred_check_branch
      %37 = sbr.rel (0) target = $region9
    $region8: #{transformer_decoder_forward.3} parent=1 // pred_region
      _
    $region9: #{transformer_decoder_forward.3} parent=1 // pred_fallthru
      _
    // Predicated region
    $region10: #{transformer_decoder_forward.3} parent=1 // pred_check
      _
    $region11: #{transformer_decoder_forward.3} parent=1 // pred_check_branch
      %39 = sbr.rel (0) target = $region13
    $region12: #{transformer_decoder_forward.3} parent=1 // pred_region
      _
    $region13: #{transformer_decoder_forward.3} parent=1 // pred_fallthru
      _
    // Predicated region
    $region14: #{transformer_decoder_forward.3} parent=1 // pred_check
      _
    $region15: #{transformer_decoder_forward.3} parent=1 // pred_check_branch
      %41 = sbr.rel (0) target = $region17
    $region16: #{transformer_decoder_forward.3} parent=1 // pred_region
      _
    $region17: #{transformer_decoder_forward.3} parent=1 // pred_fallthru
      _
    // Predicated region
    $region18: #{transformer_decoder_forward.3} parent=1 // pred_check
      _
    $region19: #{transformer_decoder_forward.3} parent=1 // pred_check_branch
      %43 = sbr.rel (0) target = $region21
    $region20: #{transformer_decoder_forward.3} parent=1 // pred_region
      _
    $region21: #{transformer_decoder_forward.3} parent=1 // pred_fallthru
      _
    // Predicated region
    $region22: #{transformer_decoder_forward.3} parent=1 // pred_check
      _
    $region23: #{transformer_decoder_forward.3} parent=1 // pred_check_branch
      %45 = sbr.rel (0) target = $region25
    $region24: #{transformer_decoder_forward.3} parent=1 // pred_region
      _
    $region25: #{transformer_decoder_forward.3} parent=1 // pred_fallthru
      _
    // Predicated region
    $region26: #{transformer_decoder_forward.3} parent=1 // pred_check
      _
    $region27: #{transformer_decoder_forward.3} parent=1 // pred_check_branch
      %47 = sbr.rel (0) target = $region29
    $region28: #{transformer_decoder_forward.3} parent=1 // pred_region
      _
    $region29: #{transformer_decoder_forward.3} parent=1 // pred_fallthru
      _
    // Predicated region
    $region30: #{transformer_decoder_forward.3} parent=1 // pred_check
      _
    $region31: #{transformer_decoder_forward.3} parent=1 // pred_check_branch
      %49 = sbr.rel (0) target = $region33
    $region32: #{transformer_decoder_forward.3} parent=1 // pred_region
      _
    $region33: #{transformer_decoder_forward.3} parent=1 // pred_fallthru
      _
    // Predicated region
    $region34: #{transformer_decoder_forward.3} parent=1 // pred_check
      _
    $region35: #{transformer_decoder_forward.3} parent=1 // pred_check_branch
      %51 = sbr.rel (0) target = $region37
    $region36: #{transformer_decoder_forward.3} parent=1 // pred_region
      _
    $region37: #{transformer_decoder_forward.3} parent=1 // pred_fallthru
      _
    // Predicated region
    $region38: #{transformer_decoder_forward.3} parent=1 // pred_check
      _
    $region39: #{transformer_decoder_forward.3} parent=1 // pred_check_branch
      %53 = sbr.rel (0) target = $region41
    $region40: #{transformer_decoder_forward.3} parent=1 // pred_region
      _
    $region41: #{transformer_decoder_forward.3} parent=1 // pred_fallthru
      _
    // Predicated region
    $region42: #{transformer_decoder_forward.3} parent=1 // pred_check
      _
    $region43: #{transformer_decoder_forward.3} parent=1 // pred_check_branch
      %55 = sbr.rel (0) target = $region45
    $region44: #{transformer_decoder_forward.3} parent=1 // pred_region
      _
    $region45: #{transformer_decoder_forward.3} parent=1 // pred_fallthru
      _
    // Predicated region
    $region46: #{transformer_decoder_forward.3} parent=1 // pred_check
      _
    $region47: #{transformer_decoder_forward.3} parent=1 // pred_check_branch
      %57 = sbr.rel (0) target = $region49
    $region48: #{transformer_decoder_forward.3} parent=1 // pred_region
      %s59 = ssub.s32 1024, 1024
      %60 = vsyncadd [#allocation3], %s59
      %s61 = sshll.u32 [#allocation2], 4
      %s62 = int_to_ptr.vmem [resolvable:$true] %s61
      %67 = dma.hbm_to_vmem [thread:$0]  %s11, 1024, %s62, [#allocation3], 64, 64, 4
    $region49: #{transformer_decoder_forward.3} parent=1 // pred_fallthru
      _
    // Predicated region
    $region50: #{transformer_decoder_forward.3} parent=1 // pred_check
      _
    $region51: #{transformer_decoder_forward.3} parent=1 // pred_check_branch
      %69 = sbr.rel (0) target = $region53
    $region52: #{transformer_decoder_forward.3} parent=1 // pred_region
      _
    $region53: #{transformer_decoder_forward.3} parent=1 // pred_fallthru
      _
    // Predicated region
    $region54: #{transformer_decoder_forward.3} parent=1 // pred_check
      _
    $region55: #{transformer_decoder_forward.3} parent=1 // pred_check_branch
      %71 = sbr.rel (0) target = $region57
    $region56: #{transformer_decoder_forward.3} parent=1 // pred_region
      _
    $region57: #{transformer_decoder_forward.3} parent=1 // pred_fallthru
      _
    // Predicated region
    $region58: #{transformer_decoder_forward.3} parent=1 // pred_check
      _
    $region59: #{transformer_decoder_forward.3} parent=1 // pred_check_branch
      %73 = sbr.rel (0) target = $region61
    $region60: #{transformer_decoder_forward.3} parent=1 // pred_region
      _
    $region61: #{transformer_decoder_forward.3} parent=1 // pred_fallthru
      _
    // Predicated region
    $region62: #{transformer_decoder_forward.3} parent=1 // pred_check
      _
    $region63: #{transformer_decoder_forward.3} parent=1 // pred_check_branch
      %75 = sbr.rel (0) target = $region65
    $region64: #{transformer_decoder_forward.3} parent=1 // pred_region
      %s77 = ssub.s32 1024, 1024
      %78 = vsyncadd [#allocation5], %s77
      %s79 = sshll.u32 [#allocation4], 4
      %s80 = int_to_ptr.vmem [resolvable:$true] %s79
      %85 = dma.hbm_to_vmem [thread:$0]  %s15, 1024, %s80, [#allocation5], 64, 64, 4
    $region65: #{transformer_decoder_forward.3} parent=1 // pred_fallthru
      _
    // Predicated region
    $region66: #{transformer_decoder_forward.3} parent=1 // pred_check
      _
    $region67: #{transformer_decoder_forward.3} parent=1 // pred_check_branch
      %87 = sbr.rel (0) target = $region69
    $region68: #{transformer_decoder_forward.3} parent=1 // pred_region
      %s89 = ssub.s32 16, 16
      %90 = vsyncadd [#allocation5], %s89
      %s92 = sshll.u32 [#allocation6], 4
      %s93 = int_to_ptr.vmem [resolvable:$true] %s92
      %95 = dma.hbm_to_vmem [thread:$0]  %s16, 16, %s93, [#allocation5]
    $region69: #{transformer_decoder_forward.3} parent=1 // pred_fallthru
      _
    // Predicated region
    $region70: #{transformer_decoder_forward.3} parent=1 // pred_check
      _
    $region71: #{transformer_decoder_forward.3} parent=1 // pred_check_branch
      %97 = sbr.rel (0) target = $region73
    $region72: #{transformer_decoder_forward.3} parent=1 // pred_region
      %s99 = ssub.s32 16, 16
      %100 = vsyncadd [#allocation8], %s99
      %s102 = sshll.u32 [#allocation7], 4
      %s103 = int_to_ptr.vmem [resolvable:$true] %s102
      %105 = dma.hbm_to_vmem [thread:$0]  %s17, 16, %s103, [#allocation8]
    $region73: #{transformer_decoder_forward.3} parent=1 // pred_fallthru
      _
    // Predicated region
    $region74: #{transformer_decoder_forward.3} parent=1 // pred_check
      _
    $region75: #{transformer_decoder_forward.3} parent=1 // pred_check_branch
      %107 = sbr.rel (0) target = $region77
    $region76: #{transformer_decoder_forward.3} parent=1 // pred_region
      _
    $region77: #{transformer_decoder_forward.3} parent=1 // pred_fallthru
      _
    // Predicated region
    $region78: #{transformer_decoder_forward.3} parent=1 // pred_check
      _
    $region79: #{transformer_decoder_forward.3} parent=1 // pred_check_branch
      %109 = sbr.rel (0) target = $region81
    $region80: #{transformer_decoder_forward.3} parent=1 // pred_region
      %s111 = ssub.s32 2048, 2048
      %112 = vsyncadd [#allocation8], %s111
      %s113 = sshll.u32 [#allocation9], 4
      %s114 = int_to_ptr.vmem [resolvable:$true] %s113
      %119 = dma.hbm_to_vmem [thread:$0]  %s19, 2048, %s114, [#allocation8], 128, 128, 8
    $region81: #{transformer_decoder_forward.3} parent=1 // pred_fallthru
      _
    // Predicated region
    $region82: #{transformer_decoder_forward.3} parent=1 // pred_check
      _
    $region83: #{transformer_decoder_forward.3} parent=1 // pred_check_branch
      %121 = sbr.rel (0) target = $region85
    $region84: #{transformer_decoder_forward.3} parent=1 // pred_region
      _
    $region85: #{transformer_decoder_forward.3} parent=1 // pred_fallthru
      _
    // Predicated region
    $region86: #{transformer_decoder_forward.3} parent=1 // pred_check
      _
    $region87: #{transformer_decoder_forward.3} parent=1 // pred_check_branch
      %123 = sbr.rel (0) target = $region89
    $region88: #{transformer_decoder_forward.3} parent=1 // pred_region
      %s125 = ssub.s32 2048, 2048
      %126 = vsyncadd [#allocation11], %s125
      %s127 = sshll.u32 [#allocation10], 4
      %s128 = int_to_ptr.vmem [resolvable:$true] %s127
      %133 = dma.hbm_to_vmem [thread:$0]  %s21, 2048, %s128, [#allocation11], 64, 64, 4
    $region89: #{transformer_decoder_forward.3} parent=1 // pred_fallthru
      _
    // Predicated region
    $region90: #{transformer_decoder_forward.3} parent=1 // pred_check
      _
    $region91: #{transformer_decoder_forward.3} parent=1 // pred_check_branch
      %135 = sbr.rel (0) target = $region93
    $region92: #{transformer_decoder_forward.3} parent=1 // pred_region
      _
    $region93: #{transformer_decoder_forward.3} parent=1 // pred_fallthru
      _
    // Predicated region
    $region94: #{transformer_decoder_forward.3} parent=1 // pred_check
      _
    $region95: #{transformer_decoder_forward.3} parent=1 // pred_check_branch
      %137 = sbr.rel (0) target = $region97
    $region96: #{transformer_decoder_forward.3} parent=1 // pred_region
      _
    $region97: #{transformer_decoder_forward.3} parent=1 // pred_fallthru
      _
    // Predicated region
    $region98: #{transformer_decoder_forward.3} parent=1 // pred_check
      _
    $region99: #{transformer_decoder_forward.3} parent=1 // pred_check_branch
      %139 = sbr.rel (0) target = $region101
    $region100: #{transformer_decoder_forward.3} parent=1 // pred_region
      _
    $region101: #{transformer_decoder_forward.3} parent=1 // pred_fallthru
      _
    // Predicated region
    $region102: #{transformer_decoder_forward.3} parent=1 // pred_check
      _
    $region103: #{transformer_decoder_forward.3} parent=1 // pred_check_branch
      %141 = sbr.rel (0) target = $region105
    $region104: #{transformer_decoder_forward.3} parent=1 // pred_region
      %142 = dma.done [#allocation3], 1024
    $region105: #{transformer_decoder_forward.3} parent=1 // pred_fallthru
      _
    // Predicated region
    $region106: #{transformer_decoder_forward.3} parent=1 // pred_check
      _
    $region107: #{transformer_decoder_forward.3} parent=1 // pred_check_branch
      %144 = sbr.rel (0) target = $region109
    $region108: #{transformer_decoder_forward.3} parent=1 // pred_region
      %145 = dma.done [#allocation5], 1024
    $region109: #{transformer_decoder_forward.3} parent=1 // pred_fallthru
      _
    // Predicated region
    $region110: #{transformer_decoder_forward.3} parent=1 // pred_check
      _
    $region111: #{transformer_decoder_forward.3} parent=1 // pred_check_branch
      %147 = sbr.rel (0) target = $region113
    $region112: #{transformer_decoder_forward.3} parent=1 // pred_region
      %148 = dma.done [#allocation5], 16
    $region113: #{transformer_decoder_forward.3} parent=1 // pred_fallthru
      _
    // Predicated region
    $region114: #{transformer_decoder_forward.3} parent=1 // pred_check
      _
    $region115: #{transformer_decoder_forward.3} parent=1 // pred_check_branch
      %150 = sbr.rel (0) target = $region117
    $region116: #{transformer_decoder_forward.3} parent=1 // pred_region
      %151 = dma.done [#allocation8], 16
    $region117: #{transformer_decoder_forward.3} parent=1 // pred_fallthru
      _
    // Predicated region
    $region118: #{transformer_decoder_forward.3} parent=1 // pred_check
      _
    $region119: #{transformer_decoder_forward.3} parent=1 // pred_check_branch
      %153 = sbr.rel (0) target = $region121
    $region120: #{transformer_decoder_forward.3} parent=1 // pred_region
      %154 = dma.done [#allocation8], 2048
    $region121: #{transformer_decoder_forward.3} parent=1 // pred_fallthru
      _
    // Predicated region
    $region122: #{transformer_decoder_forward.3} parent=1 // pred_check
      _
    $region123: #{transformer_decoder_forward.3} parent=1 // pred_check_branch
      %156 = sbr.rel (0) target = $region125
    $region124: #{transformer_decoder_forward.3} parent=1 // pred_region
      %157 = dma.done [#allocation11], 2048
    $region125: #{transformer_decoder_forward.3} parent=1 // pred_fallthru
      _
    %v159 = vld [vmem:[%s0] sm:$0xff]
    %v160 = vld [vmem:[%s0 + $0x8] sm:$0xff]
    %v161 = vmul.f32 %v159, 11.313708
    %v162 = vmul.f32 %v160, 11.313708
    %v163 = vld [vmem:[%s1] sm:$0xff]
    %v164 = vadd.f32 %v161, %v163
    %v165 = vadd.f32 %v162, %v163
    %v166 = vld [vmem:[%s3] sm:$0x1]
    %v167 = vld [vmem:[%s3 + $0x1] sm:$0x1]
    %v168 = vld [vmem:[%s4] sm:$0x1]
    %v169 = vld [vmem:[%s4 + $0x1] sm:$0x1]
    %v170 = vlaneseq
    %v171 = vshrl.u32 %v170, 7
    %v172 = vlaneseq
    %v173 = vand.u32 %v172, 127
    %v174 = vlaneseq
    %v175 = vshrl.u32 %v174, 7
    %v176 = vsub.s32 0, %v175
    %v177 = vrot.slane %v166, %v176
    %v178 = vlaneseq
    %v179 = vshrl.u32 %v178, 7
    %v180 = vsub.s32 0, %v179
    %v181 = vrot.slane %v167, %v180
    %182 = vset.pattern.permute.xlu0 0
    %183 = vperm.xlu0 %182, %v177
    %v184 = vpop.permute.xlu0 %183
    %185 = vset.pattern.permute.xlu0 0
    %186 = vperm.xlu0 %185, %v181
    %v187 = vpop.permute.xlu0 %186
    %vm188 = vcmp.lt.s32.totalorder %v171, %v184
    %vm189 = vcmp.lt.s32.totalorder %v171, %v187
    %vm190 = vcmp.lt.s32.totalorder %v173, %v184
    %vm191 = vcmp.lt.s32.totalorder %v173, %v187
    %vm192 = vmand %vm188, %vm190
    %vm193 = vmand %vm189, %vm191
    %vm194 = vcmp.le.s32.totalorder %v173, %v171
    %vm195 = vmand %vm192, %vm194
    %vm196 = vmand %vm193, %vm194
    %v197 = vlaneseq
    %v198 = vshrl.u32 %v197, 7
    %v199 = vsub.s32 0, %v198
    %v200 = vrot.slane %v168, %v199
    %v201 = vlaneseq
    %v202 = vshrl.u32 %v201, 7
    %v203 = vsub.s32 0, %v202
    %v204 = vrot.slane %v169, %v203
    %205 = vset.pattern.permute.xlu0 0
    %206 = vperm.xlu0 %205, %v200
    %v207 = vpop.permute.xlu0 %206
    %208 = vset.pattern.permute.xlu0 0
    %209 = vperm.xlu0 %208, %v204
    %v210 = vpop.permute.xlu0 %209
    %vm211 = vcmp.lt.s32.totalorder %v173, %v207
    %vm212 = vcmp.lt.s32.totalorder %v173, %v210
    %vm213 = vmand %vm188, %vm211
    %vm214 = vmand %vm189, %vm212
    %v215 = vpack.c.bf16 %v165, %v164
    %v216 = vld [vmem:[%s5] sm:$0xff]
    %v217 = vld [vmem:[%s5 + $0x8] sm:$0xf]
    %v218 = vld [vmem:[%s5 + $0xc] sm:$0xff]
    %v219 = vld [vmem:[%s5 + $0x14] sm:$0xf]
    %v220 = vld [vmem:[%s5 + $0x18] sm:$0xff]
    %v221 = vld [vmem:[%s5 + $0x20] sm:$0xf]
    %v222 = vld [vmem:[%s5 + $0x24] sm:$0xff]
    %v223 = vld [vmem:[%s5 + $0x2c] sm:$0xf]
    %v224 = vld [vmem:[%s5 + $0x30] sm:$0xff]
    %v225 = vld [vmem:[%s5 + $0x38] sm:$0xf]
    %v226 = vld [vmem:[%s5 + $0x3c] sm:$0xff]
    %v227 = vld [vmem:[%s5 + $0x44] sm:$0xf]
    %v228 = vld [vmem:[%s5 + $0x48] sm:$0xff]
    %v229 = vld [vmem:[%s5 + $0x50] sm:$0xf]
    %v230 = vld [vmem:[%s5 + $0x54] sm:$0xff]
    %v231 = vld [vmem:[%s5 + $0x5c] sm:$0xf]
    %v232 = vld [vmem:[%s5 + $0x60] sm:$0xff]
    %v233 = vld [vmem:[%s5 + $0x68] sm:$0xf]
    %v234 = vld [vmem:[%s5 + $0x6c] sm:$0xff]
    %v235 = vld [vmem:[%s5 + $0x74] sm:$0xf]
    %v236 = vld [vmem:[%s5 + $0x78] sm:$0xff]
    %v237 = vld [vmem:[%s5 + $0x80] sm:$0xf]
    %v238 = vld [vmem:[%s5 + $0x84] sm:$0xff]
    %v239 = vld [vmem:[%s5 + $0x8c] sm:$0xf]
    %v240 = vld [vmem:[%s5 + $0x90] sm:$0xff]
    %v241 = vld [vmem:[%s5 + $0x98] sm:$0xf]
    %v242 = vld [vmem:[%s5 + $0x9c] sm:$0xff]
    %v243 = vld [vmem:[%s5 + $0xa4] sm:$0xf]
    %v244 = vld [vmem:[%s5 + $0xa8] sm:$0xff]
    %v245 = vld [vmem:[%s5 + $0xb0] sm:$0xf]
    %v246 = vld [vmem:[%s5 + $0xb4] sm:$0xff]
    %v247 = vld [vmem:[%s5 + $0xbc] sm:$0xf]
    %v248 = vld [vmem:[%s6] sm:$0x7]
    %v250 = vlaneseq
    %v251 = vshrl.u32 %v250, 7
    %v252 = vsub.s32 0, %v251
    %v253 = vrot.slane %v248, %v252
    %v254 = vlaneseq
    %v255 = vshrl.u32 %v254, 7
    %v256 = vsub.s32 1, %v255
    %v257 = vrot.slane %v248, %v256
    %v258 = vlaneseq
    %v259 = vshrl.u32 %v258, 7
    %v260 = vsub.s32 2, %v259
    %v261 = vrot.slane %v248, %v260
    %v297 = vunpack.c.l.b16 %v216
    %v298 = vunpack.c.h.b16 %v216
    %v299 = vunpack.c.l.b16 %v217
    %v300 = vunpack.c.l.b16 %v218
    %v301 = vunpack.c.h.b16 %v218
    %v302 = vunpack.c.l.b16 %v219
    %v303 = vunpack.c.l.b16 %v220
    %v304 = vunpack.c.h.b16 %v220
    %v305 = vunpack.c.l.b16 %v221
    %v306 = vunpack.c.l.b16 %v222
    %v307 = vunpack.c.h.b16 %v222
    %v308 = vunpack.c.l.b16 %v223
    %v309 = vunpack.c.l.b16 %v224
    %v310 = vunpack.c.h.b16 %v224
    %v311 = vunpack.c.l.b16 %v225
    %v312 = vunpack.c.l.b16 %v226
    %v313 = vunpack.c.h.b16 %v226
    %v314 = vunpack.c.l.b16 %v227
    %v315 = vunpack.c.l.b16 %v228
    %v316 = vunpack.c.h.b16 %v228
    %v317 = vunpack.c.l.b16 %v229
    %v318 = vunpack.c.l.b16 %v230
    %v319 = vunpack.c.h.b16 %v230
    %v320 = vunpack.c.l.b16 %v231
    %v321 = vunpack.c.l.b16 %v232
    %v322 = vunpack.c.h.b16 %v232
    %v323 = vunpack.c.l.b16 %v233
    %v324 = vunpack.c.l.b16 %v234
    %v325 = vunpack.c.h.b16 %v234
    %v326 = vunpack.c.l.b16 %v235
    %v327 = vunpack.c.l.b16 %v236
    %v328 = vunpack.c.h.b16 %v236
    %v329 = vunpack.c.l.b16 %v237
    %v330 = vunpack.c.l.b16 %v238
    %v331 = vunpack.c.h.b16 %v238
    %v332 = vunpack.c.l.b16 %v239
    %v333 = vunpack.c.l.b16 %v240
    %v334 = vunpack.c.h.b16 %v240
    %v335 = vunpack.c.l.b16 %v241
    %v336 = vunpack.c.l.b16 %v242
    %v337 = vunpack.c.h.b16 %v242
    %v338 = vunpack.c.l.b16 %v243
    %v339 = vunpack.c.l.b16 %v244
    %v340 = vunpack.c.h.b16 %v244
    %v341 = vunpack.c.l.b16 %v245
    %v342 = vunpack.c.l.b16 %v246
    %v343 = vunpack.c.h.b16 %v246
    %v344 = vunpack.c.l.b16 %v247
    %v345 = vpack.c.b16 %v300, %v297
    %v346 = vpack.c.b16 %v301, %v298
    %v347 = vpack.c.b16 %v302, %v299
    %v348 = vpack.c.b16 %v306, %v303
    %v349 = vpack.c.b16 %v307, %v304
    %v350 = vpack.c.b16 %v308, %v305
    %v351 = vpack.c.b16 %v312, %v309
    %v352 = vpack.c.b16 %v313, %v310
    %v353 = vpack.c.b16 %v314, %v311
    %v354 = vpack.c.b16 %v318, %v315
    %v355 = vpack.c.b16 %v319, %v316
    %v356 = vpack.c.b16 %v320, %v317
    %v357 = vpack.c.b16 %v324, %v321
    %v358 = vpack.c.b16 %v325, %v322
    %v359 = vpack.c.b16 %v326, %v323
    %v360 = vpack.c.b16 %v330, %v327
    %v361 = vpack.c.b16 %v331, %v328
    %v362 = vpack.c.b16 %v332, %v329
    %v363 = vpack.c.b16 %v336, %v333
    %v364 = vpack.c.b16 %v337, %v334
    %v365 = vpack.c.b16 %v338, %v335
    %v366 = vpack.c.b16 %v342, %v339
    %v367 = vpack.c.b16 %v343, %v340
    %v368 = vpack.c.b16 %v344, %v341
    %393 = vmatprep.subr.bf16.mxu0 %v346
    %394 = vmatpush1.bf16.msra.mxu0 %v345
    %395 = vmatprep.subr.bf16.mxu0 %v349
    %396 = vmatpush1.bf16.msra.mxu0 %v348
    %397 = vmatprep.subr.bf16.mxu0 %v352
    %398 = vmatpush1.bf16.msra.mxu0 %v351
    %399 = vmatprep.subr.bf16.mxu0 %v355
    %400 = vmatpush1.bf16.msra.mxu0 %v354
    %401 = vmatprep.subr.bf16.mxu0 %v358
    %402 = vmatpush1.bf16.msra.mxu0 %v357
    %403 = vmatprep.subr.bf16.mxu0 %v361
    %404 = vmatpush1.bf16.msra.mxu0 %v360
    %405 = vmatprep.subr.bf16.mxu0 %v364
    %406 = vmatpush1.bf16.msra.mxu0 %v363
    %407 = vmatprep.subr.bf16.mxu0 %v367
    %408 = vmatpush1.bf16.msra.mxu0 %v366
    %409 = vmatprep.subr.bf16.mxu0 0
    %410 = vmatpush1.bf16.msra.mxu0 0
    %411 = vmatprep.subr.bf16.mxu0 0
    %412 = vmatpush1.bf16.msra.mxu0 0
    %413 = vmatprep.subr.bf16.mxu0 0
    %414 = vmatpush1.bf16.msra.mxu0 0
    %415 = vmatprep.subr.bf16.mxu0 0
    %416 = vmatpush1.bf16.msra.mxu0 0
    %417 = vmatprep.subr.bf16.mxu0 0
    %418 = vmatpush1.bf16.msra.mxu0 0
    %419 = vmatprep.subr.bf16.mxu0 0
    %420 = vmatpush1.bf16.msra.mxu0 0
    %421 = vmatprep.subr.bf16.mxu0 0
    %422 = vmatpush1.bf16.msra.mxu0 0
    %423 = vmatprep.subr.bf16.mxu0 0
    %424 = vmatpush1.bf16.msra.mxu0 0
    %425 = vmatprep.mubr.bf16.mxu0 0
    %426 = vmatmul.mubr.bf16.gmra.mrb[0].mxu0 %v215
    %v427 = vpop.f32.mrb[0].mxu0
    %v428 = vadd.f32 %v253, %v427
    %v429 = vpop.f32.mrb[0].mxu0
    %v430 = vadd.f32 %v257, %v429
    %v431 = vpop.f32.mrb[0].mxu0
    %v432 = vadd.f32 %v253, %v431
    %v433 = vpop.f32.mrb[0].mxu0
    %v434 = vadd.f32 %v257, %v433
    %435 = vdwg.mxu0
    %436 = vmatprep.subr.bf16.mxu0 0
    %437 = vmatpush1.bf16.msra.mxu0 %v347
    %438 = vmatprep.subr.bf16.mxu0 0
    %439 = vmatpush1.bf16.msra.mxu0 %v350
    %440 = vmatprep.subr.bf16.mxu0 0
    %441 = vmatpush1.bf16.msra.mxu0 %v353
    %442 = vmatprep.subr.bf16.mxu0 0
    %443 = vmatpush1.bf16.msra.mxu0 %v356
    %444 = vmatprep.subr.bf16.mxu0 0
    %445 = vmatpush1.bf16.msra.mxu0 %v359
    %446 = vmatprep.subr.bf16.mxu0 0
    %447 = vmatpush1.bf16.msra.mxu0 %v362
    %448 = vmatprep.subr.bf16.mxu0 0
    %449 = vmatpush1.bf16.msra.mxu0 %v365
    %450 = vmatprep.subr.bf16.mxu0 0
    %451 = vmatpush1.bf16.msra.mxu0 %v368
    %452 = vmatprep.subr.bf16.mxu0 0
    %453 = vmatpush1.bf16.msra.mxu0 0
    %454 = vmatprep.subr.bf16.mxu0 0
    %455 = vmatpush1.bf16.msra.mxu0 0
    %456 = vmatprep.subr.bf16.mxu0 0
    %457 = vmatpush1.bf16.msra.mxu0 0
    %458 = vmatprep.subr.bf16.mxu0 0
    %459 = vmatpush1.bf16.msra.mxu0 0
    %460 = vmatprep.subr.bf16.mxu0 0
    %461 = vmatpush1.bf16.msra.mxu0 0
    %462 = vmatprep.subr.bf16.mxu0 0
    %463 = vmatpush1.bf16.msra.mxu0 0
    %464 = vmatprep.subr.bf16.mxu0 0
    %465 = vmatpush1.bf16.msra.mxu0 0
    %466 = vmatprep.subr.bf16.mxu0 0
    %467 = vmatpush1.bf16.msra.mxu0 0
    %468 = vmatprep.mubr.bf16.mxu0 0
    %469 = vmatmul.mubr.bf16.gmra.mrb[0].mxu0 %v215
    %v470 = vpop.f32.mrb[0].mxu0
    %v471 = vadd.f32 %v261, %v470
    %v472 = vpop.f32.mrb[0].mxu0
    %v473 = vpop.f32.mrb[0].mxu0
    %v474 = vadd.f32 %v261, %v473
    %v475 = vpop.f32.mrb[0].mxu0
    %476 = vdwg.mxu0
    %v477 = vpack.c.bf16 %v428, %v428
    %v478 = vpack.c.bf16 %v432, %v432
    %v479 = vpack.c.bf16 %v430, %v430
    %v480 = vpack.c.bf16 %v434, %v434
    %481 = vmatprep.subr.bf16.mxu0 0
    %482 = vmatpush1.bf16.xpose.msra.mxu0 %v479
    %483 = vmatprep.subr.bf16.mxu0 0
    %484 = vmatpush1.bf16.xpose.msra.mxu0 0
    %485 = vmatprep.subr.bf16.mxu0 0
    %486 = vmatpush1.bf16.xpose.msra.mxu0 0
    %487 = vmatprep.subr.bf16.mxu0 0
    %488 = vmatpush1.bf16.xpose.msra.mxu0 0
    %489 = vmatprep.subr.bf16.mxu0 0
    %490 = vmatpush1.bf16.xpose.msra.mxu0 0
    %491 = vmatprep.subr.bf16.mxu0 0
    %492 = vmatpush1.bf16.xpose.msra.mxu0 0
    %493 = vmatprep.subr.bf16.mxu0 0
    %494 = vmatpush1.bf16.xpose.msra.mxu0 0
    %495 = vmatprep.subr.bf16.mxu0 0
    %496 = vmatpush1.bf16.xpose.msra.mxu0 0
    %497 = vmatprep.subr.bf16.mxu0 0
    %498 = vmatpush1.bf16.xpose.msra.mxu0 0
    %499 = vmatprep.subr.bf16.mxu0 0
    %500 = vmatpush1.bf16.xpose.msra.mxu0 0
    %501 = vmatprep.subr.bf16.mxu0 0
    %502 = vmatpush1.bf16.xpose.msra.mxu0 0
    %503 = vmatprep.subr.bf16.mxu0 0
    %504 = vmatpush1.bf16.xpose.msra.mxu0 0
    %505 = vmatprep.subr.bf16.mxu0 0
    %506 = vmatpush1.bf16.xpose.msra.mxu0 0
    %507 = vmatprep.subr.bf16.mxu0 0
    %508 = vmatpush1.bf16.xpose.msra.mxu0 0
    %509 = vmatprep.subr.bf16.mxu0 0
    %510 = vmatpush1.bf16.xpose.msra.mxu0 0
    %511 = vmatprep.subr.bf16.mxu0 0
    %512 = vmatpush1.bf16.xpose.msra.mxu0 0
    %513 = vmatprep.mubr.bf16.mxu0 0
    %514 = vmatmul.mubr.bf16.gmra.mrb[0].mxu0 %v477
    %v515 = vpop.f32.mrb[0].mxu0
    %v516 = vadd.f32 0.0, %v515
    %v517 = vpop.f32.mrb[0].mxu0
    %v518 = vpop.f32.mrb[0].mxu0
    %v519 = vpop.f32.mrb[0].mxu0
    %520 = vdwg.mxu0
    %521 = vmatprep.subr.bf16.mxu0 0
    %522 = vmatpush1.bf16.xpose.msra.mxu0 %v480
    %523 = vmatprep.subr.bf16.mxu0 0
    %524 = vmatpush1.bf16.xpose.msra.mxu0 0
    %525 = vmatprep.subr.bf16.mxu0 0
    %526 = vmatpush1.bf16.xpose.msra.mxu0 0
    %527 = vmatprep.subr.bf16.mxu0 0
    %528 = vmatpush1.bf16.xpose.msra.mxu0 0
    %529 = vmatprep.subr.bf16.mxu0 0
    %530 = vmatpush1.bf16.xpose.msra.mxu0 0
    %531 = vmatprep.subr.bf16.mxu0 0
    %532 = vmatpush1.bf16.xpose.msra.mxu0 0
    %533 = vmatprep.subr.bf16.mxu0 0
    %534 = vmatpush1.bf16.xpose.msra.mxu0 0
    %535 = vmatprep.subr.bf16.mxu0 0
    %536 = vmatpush1.bf16.xpose.msra.mxu0 0
    %537 = vmatprep.subr.bf16.mxu0 0
    %538 = vmatpush1.bf16.xpose.msra.mxu0 0
    %539 = vmatprep.subr.bf16.mxu0 0
    %540 = vmatpush1.bf16.xpose.msra.mxu0 0
    %541 = vmatprep.subr.bf16.mxu0 0
    %542 = vmatpush1.bf16.xpose.msra.mxu0 0
    %543 = vmatprep.subr.bf16.mxu0 0
    %544 = vmatpush1.bf16.xpose.msra.mxu0 0
    %545 = vmatprep.subr.bf16.mxu0 0
    %546 = vmatpush1.bf16.xpose.msra.mxu0 0
    %547 = vmatprep.subr.bf16.mxu0 0
    %548 = vmatpush1.bf16.xpose.msra.mxu0 0
    %549 = vmatprep.subr.bf16.mxu0 0
    %550 = vmatpush1.bf16.xpose.msra.mxu0 0
    %551 = vmatprep.subr.bf16.mxu0 0
    %552 = vmatpush1.bf16.xpose.msra.mxu0 0
    %553 = vmatprep.mubr.bf16.mxu0 0
    %554 = vmatmul.mubr.bf16.gmra.mrb[0].mxu0 %v478
    %v555 = vpop.f32.mrb[0].mxu0
    %v556 = vadd.f32 0.0, %v555
    %v557 = vpop.f32.mrb[0].mxu0
    %v558 = vpop.f32.mrb[0].mxu0
    %v559 = vpop.f32.mrb[0].mxu0
    %560 = vdwg.mxu0
    %v561 = vmul.f32 %v516, 0.088388346
    %v562 = vmul.f32 %v556, 0.088388346
    %v563 = vsel %vm195, %v561, -1e+09
    %v564 = vsel %vm196, %v562, -1e+09
    %vm565 = vcmask 64512
    %v566 = vsel %vm565, %v563, -inf
    %567 = vmax.xlane.f32.xlu0 %v566
    %v568 = vpop.xlane.xlu0 %567
    %v569 = vsel %vm565, %v564, -inf
    %570 = vmax.xlane.f32.xlu0 %v569
    %v571 = vpop.xlane.xlu0 %570
    %v572 = vsub.f32 %v563, %v568
    %v573 = vsub.f32 %v564, %v571
    %v574 = vmul.f32 %v572, 1.442695
    %v575 = vpow.pop %v574
    %v576 = vmul.f32 %v573, 1.442695
    %v577 = vpow.pop %v576
    %v578 = vsel %vm565, %v575, 0.0
    %579 = vadd.xlane.f32.xlu0 %v578
    %v580 = vpop.xlane.xlu0 %579
    %v581 = vsel %vm565, %v577, 0.0
    %582 = vadd.xlane.f32.xlu0 %v581
    %v583 = vpop.xlane.xlu0 %582
    %v584 = vrcp.pop %v580
    %v585 = vrcp.pop %v583
    %v586 = vmul.f32 %v575, %v584
    %v587 = vmul.f32 %v577, %v585
    %v588 = vpack.c.bf16 %v586, %v586
    %v589 = vpack.c.bf16 %v587, %v587
    %v590 = vpack.c.bf16 %v471, %v471
    %v591 = vpack.c.bf16 %v474, %v474
    %v593 = vsel %vm565, %v588, 0
    %vm595 = vcmask 1043456
    %v597 = vsel %vm595, %v590, 0
    %599 = vmatprep.subr.bf16.mxu0 0
    %600 = vmatpush1.bf16.msra.mxu0 %v597
    %601 = vmatprep.subr.bf16.mxu0 0
    %602 = vmatpush1.bf16.msra.mxu0 0
    %603 = vmatprep.subr.bf16.mxu0 0
    %604 = vmatpush1.bf16.msra.mxu0 0
    %605 = vmatprep.subr.bf16.mxu0 0
    %606 = vmatpush1.bf16.msra.mxu0 0
    %607 = vmatprep.subr.bf16.mxu0 0
    %608 = vmatpush1.bf16.msra.mxu0 0
    %609 = vmatprep.subr.bf16.mxu0 0
    %610 = vmatpush1.bf16.msra.mxu0 0
    %611 = vmatprep.subr.bf16.mxu0 0
    %612 = vmatpush1.bf16.msra.mxu0 0
    %613 = vmatprep.subr.bf16.mxu0 0
    %614 = vmatpush1.bf16.msra.mxu0 0
    %615 = vmatprep.subr.bf16.mxu0 0
    %616 = vmatpush1.bf16.msra.mxu0 0
    %617 = vmatprep.subr.bf16.mxu0 0
    %618 = vmatpush1.bf16.msra.mxu0 0
    %619 = vmatprep.subr.bf16.mxu0 0
    %620 = vmatpush1.bf16.msra.mxu0 0
    %621 = vmatprep.subr.bf16.mxu0 0
    %622 = vmatpush1.bf16.msra.mxu0 0
    %623 = vmatprep.subr.bf16.mxu0 0
    %624 = vmatpush1.bf16.msra.mxu0 0
    %625 = vmatprep.subr.bf16.mxu0 0
    %626 = vmatpush1.bf16.msra.mxu0 0
    %627 = vmatprep.subr.bf16.mxu0 0
    %628 = vmatpush1.bf16.msra.mxu0 0
    %629 = vmatprep.subr.bf16.mxu0 0
    %630 = vmatpush1.bf16.msra.mxu0 0
    %631 = vmatprep.mubr.bf16.mxu0 0
    %632 = vmatmul.mubr.bf16.gmra.mrb[0].mxu0 %v593
    %v633 = vpop.f32.mrb[0].mxu0
    %v634 = vadd.f32 0.0, %v633
    %v635 = vpop.f32.mrb[0].mxu0
    %v636 = vpop.f32.mrb[0].mxu0
    %v637 = vpop.f32.mrb[0].mxu0
    %638 = vdwg.mxu0
    %v640 = vsel %vm565, %v589, 0
    %v643 = vsel %vm595, %v591, 0
    %645 = vmatprep.subr.bf16.mxu0 0
    %646 = vmatpush1.bf16.msra.mxu0 %v643
    %647 = vmatprep.subr.bf16.mxu0 0
    %648 = vmatpush1.bf16.msra.mxu0 0
    %649 = vmatprep.subr.bf16.mxu0 0
    %650 = vmatpush1.bf16.msra.mxu0 0
    %651 = vmatprep.subr.bf16.mxu0 0
    %652 = vmatpush1.bf16.msra.mxu0 0
    %653 = vmatprep.subr.bf16.mxu0 0
    %654 = vmatpush1.bf16.msra.mxu0 0
    %655 = vmatprep.subr.bf16.mxu0 0
    %656 = vmatpush1.bf16.msra.mxu0 0
    %657 = vmatprep.subr.bf16.mxu0 0
    %658 = vmatpush1.bf16.msra.mxu0 0
    %659 = vmatprep.subr.bf16.mxu0 0
    %660 = vmatpush1.bf16.msra.mxu0 0
    %661 = vmatprep.subr.bf16.mxu0 0
    %662 = vmatpush1.bf16.msra.mxu0 0
    %663 = vmatprep.subr.bf16.mxu0 0
    %664 = vmatpush1.bf16.msra.mxu0 0
    %665 = vmatprep.subr.bf16.mxu0 0
    %666 = vmatpush1.bf16.msra.mxu0 0
    %667 = vmatprep.subr.bf16.mxu0 0
    %668 = vmatpush1.bf16.msra.mxu0 0
    %669 = vmatprep.subr.bf16.mxu0 0
    %670 = vmatpush1.bf16.msra.mxu0 0
    %671 = vmatprep.subr.bf16.mxu0 0
    %672 = vmatpush1.bf16.msra.mxu0 0
    %673 = vmatprep.subr.bf16.mxu0 0
    %674 = vmatpush1.bf16.msra.mxu0 0
    %675 = vmatprep.subr.bf16.mxu0 0
    %676 = vmatpush1.bf16.msra.mxu0 0
    %677 = vmatprep.mubr.bf16.mxu0 0
    %678 = vmatmul.mubr.bf16.gmra.mrb[0].mxu0 %v640
    %v679 = vpop.f32.mrb[0].mxu0
    %v680 = vadd.f32 0.0, %v679
    %v681 = vpop.f32.mrb[0].mxu0
    %v682 = vpop.f32.mrb[0].mxu0
    %v683 = vpop.f32.mrb[0].mxu0
    %684 = vdwg.mxu0
    %v685 = vpack.c.bf16 %v680, %v634
    %v686 = vld [vmem:[%s7] sm:$0xf]
    %v687 = vld [vmem:[%s7 + $0x4] sm:$0xf]
    %v688 = vld [vmem:[%s7 + $0x8] sm:$0xf]
    %v689 = vld [vmem:[%s7 + $0xc] sm:$0xf]
    %v690 = vld [vmem:[%s7 + $0x10] sm:$0xf]
    %v691 = vld [vmem:[%s7 + $0x14] sm:$0xf]
    %v692 = vld [vmem:[%s7 + $0x18] sm:$0xf]
    %v693 = vld [vmem:[%s7 + $0x1c] sm:$0xf]
    %v694 = vld [vmem:[%s7 + $0x20] sm:$0xf]
    %v695 = vld [vmem:[%s7 + $0x24] sm:$0xf]
    %v696 = vld [vmem:[%s7 + $0x28] sm:$0xf]
    %v697 = vld [vmem:[%s7 + $0x2c] sm:$0xf]
    %v698 = vld [vmem:[%s7 + $0x30] sm:$0xf]
    %v699 = vld [vmem:[%s7 + $0x34] sm:$0xf]
    %v700 = vld [vmem:[%s7 + $0x38] sm:$0xf]
    %v701 = vld [vmem:[%s7 + $0x3c] sm:$0xf]
    %v702 = vld [vmem:[%s8] sm:$0x1]
    %v704 = vlaneseq
    %v705 = vshrl.u32 %v704, 7
    %v706 = vsub.s32 0, %v705
    %v707 = vrot.slane %v702, %v706
    %v725 = vunpack.c.l.b16 %v686
    %v726 = vunpack.c.l.b16 %v687
    %v727 = vunpack.c.l.b16 %v688
    %v728 = vunpack.c.l.b16 %v689
    %v729 = vunpack.c.l.b16 %v690
    %v730 = vunpack.c.l.b16 %v691
    %v731 = vunpack.c.l.b16 %v692
    %v732 = vunpack.c.l.b16 %v693
    %v733 = vunpack.c.l.b16 %v694
    %v734 = vunpack.c.l.b16 %v695
    %v735 = vunpack.c.l.b16 %v696
    %v736 = vunpack.c.l.b16 %v697
    %v737 = vunpack.c.l.b16 %v698
    %v738 = vunpack.c.l.b16 %v699
    %v739 = vunpack.c.l.b16 %v700
    %v740 = vunpack.c.l.b16 %v701
    %v741 = vpack.c.b16 %v726, %v725
    %v742 = vpack.c.b16 %v728, %v727
    %v743 = vpack.c.b16 %v730, %v729
    %v744 = vpack.c.b16 %v732, %v731
    %v745 = vpack.c.b16 %v734, %v733
    %v746 = vpack.c.b16 %v736, %v735
    %v747 = vpack.c.b16 %v738, %v737
    %v748 = vpack.c.b16 %v740, %v739
    %757 = vmatprep.subr.bf16.mxu0 0
    %758 = vmatpush1.bf16.msra.mxu0 %v741
    %759 = vmatprep.subr.bf16.mxu0 0
    %760 = vmatpush1.bf16.msra.mxu0 %v742
    %761 = vmatprep.subr.bf16.mxu0 0
    %762 = vmatpush1.bf16.msra.mxu0 %v743
    %763 = vmatprep.subr.bf16.mxu0 0
    %764 = vmatpush1.bf16.msra.mxu0 %v744
    %765 = vmatprep.subr.bf16.mxu0 0
    %766 = vmatpush1.bf16.msra.mxu0 %v745
    %767 = vmatprep.subr.bf16.mxu0 0
    %768 = vmatpush1.bf16.msra.mxu0 %v746
    %769 = vmatprep.subr.bf16.mxu0 0
    %770 = vmatpush1.bf16.msra.mxu0 %v747
    %771 = vmatprep.subr.bf16.mxu0 0
    %772 = vmatpush1.bf16.msra.mxu0 %v748
    %773 = vmatprep.subr.bf16.mxu0 0
    %774 = vmatpush1.bf16.msra.mxu0 0
    %775 = vmatprep.subr.bf16.mxu0 0
    %776 = vmatpush1.bf16.msra.mxu0 0
    %777 = vmatprep.subr.bf16.mxu0 0
    %778 = vmatpush1.bf16.msra.mxu0 0
    %779 = vmatprep.subr.bf16.mxu0 0
    %780 = vmatpush1.bf16.msra.mxu0 0
    %781 = vmatprep.subr.bf16.mxu0 0
    %782 = vmatpush1.bf16.msra.mxu0 0
    %783 = vmatprep.subr.bf16.mxu0 0
    %784 = vmatpush1.bf16.msra.mxu0 0
    %785 = vmatprep.subr.bf16.mxu0 0
    %786 = vmatpush1.bf16.msra.mxu0 0
    %787 = vmatprep.subr.bf16.mxu0 0
    %788 = vmatpush1.bf16.msra.mxu0 0
    %789 = vmatprep.mubr.bf16.mxu0 0
    %790 = vmatmul.mubr.bf16.gmra.mrb[0].mxu0 %v685
    %v791 = vpop.f32.mrb[0].mxu0
    %v792 = vadd.f32 %v707, %v791
    %v793 = vpop.f32.mrb[0].mxu0
    %v794 = vpop.f32.mrb[0].mxu0
    %v795 = vadd.f32 %v707, %v794
    %v796 = vpop.f32.mrb[0].mxu0
    %797 = vdwg.mxu0
    %v798 = vadd.f32 %v164, %v792
    %v799 = vadd.f32 %v165, %v795
    %v800 = vld [vmem:[%s9] sm:$0x1]
    %v801 = vld [vmem:[%s10] sm:$0x1]
    %802 = vadd.xlane.f32.xlu0 %v798
    %v803 = vpop.xlane.xlu0 %802
    %804 = vadd.xlane.f32.xlu0 %v799
    %v805 = vpop.xlane.xlu0 %804
    %v806 = vrcp.pop 128.0
    %v807 = vmul.f32 %v803, %v806
    %v808 = vmul.f32 %v805, %v806
    %v809 = vsub.f32 %v798, %v807
    %v810 = vsub.f32 %v799, %v808
    %v811 = vmul.f32 %v809, %v809
    %v812 = vmul.f32 %v810, %v810
    %813 = vadd.xlane.f32.xlu0 %v811
    %v814 = vpop.xlane.xlu0 %813
    %815 = vadd.xlane.f32.xlu0 %v812
    %v816 = vpop.xlane.xlu0 %815
    %v817 = vmul.f32 %v814, %v806
    %v818 = vmul.f32 %v816, %v806
    %v819 = vadd.f32 %v817, 1e-05
    %v820 = vadd.f32 %v818, 1e-05
    %v821 = vrsqrt.pop %v819
    %v822 = vrsqrt.pop %v820
    %v823 = vmul.f32 %v809, %v821
    %v824 = vmul.f32 %v810, %v822
    %v826 = vlaneseq
    %v827 = vshrl.u32 %v826, 7
    %v828 = vsub.s32 0, %v827
    %v829 = vrot.slane %v800, %v828
    %v831 = vmul.f32 %v823, %v829
    %v832 = vmul.f32 %v824, %v829
    %v834 = vlaneseq
    %v835 = vshrl.u32 %v834, 7
    %v836 = vsub.s32 0, %v835
    %v837 = vrot.slane %v801, %v836
    %v839 = vadd.f32 %v831, %v837
    %v840 = vadd.f32 %v832, %v837
    %v841 = vpack.c.bf16 %v840, %v839
    %v842 = vld [vmem:[#allocation2] sm:$0xf]
    %v843 = vld [vmem:[#allocation2 + $0x4] sm:$0xf]
    %v844 = vld [vmem:[#allocation2 + $0x8] sm:$0xf]
    %v845 = vld [vmem:[#allocation2 + $0xc] sm:$0xf]
    %v846 = vld [vmem:[#allocation2 + $0x10] sm:$0xf]
    %v847 = vld [vmem:[#allocation2 + $0x14] sm:$0xf]
    %v848 = vld [vmem:[#allocation2 + $0x18] sm:$0xf]
    %v849 = vld [vmem:[#allocation2 + $0x1c] sm:$0xf]
    %v850 = vld [vmem:[#allocation2 + $0x20] sm:$0xf]
    %v851 = vld [vmem:[#allocation2 + $0x24] sm:$0xf]
    %v852 = vld [vmem:[#allocation2 + $0x28] sm:$0xf]
    %v853 = vld [vmem:[#allocation2 + $0x2c] sm:$0xf]
    %v854 = vld [vmem:[#allocation2 + $0x30] sm:$0xf]
    %v855 = vld [vmem:[#allocation2 + $0x34] sm:$0xf]
    %v856 = vld [vmem:[#allocation2 + $0x38] sm:$0xf]
    %v857 = vld [vmem:[#allocation2 + $0x3c] sm:$0xf]
    %v858 = vld [vmem:[%s12] sm:$0x1]
    %v860 = vlaneseq
    %v861 = vshrl.u32 %v860, 7
    %v862 = vsub.s32 0, %v861
    %v863 = vrot.slane %v858, %v862
    %v881 = vunpack.c.l.b16 %v842
    %v882 = vunpack.c.l.b16 %v843
    %v883 = vunpack.c.l.b16 %v844
    %v884 = vunpack.c.l.b16 %v845
    %v885 = vunpack.c.l.b16 %v846
    %v886 = vunpack.c.l.b16 %v847
    %v887 = vunpack.c.l.b16 %v848
    %v888 = vunpack.c.l.b16 %v849
    %v889 = vunpack.c.l.b16 %v850
    %v890 = vunpack.c.l.b16 %v851
    %v891 = vunpack.c.l.b16 %v852
    %v892 = vunpack.c.l.b16 %v853
    %v893 = vunpack.c.l.b16 %v854
    %v894 = vunpack.c.l.b16 %v855
    %v895 = vunpack.c.l.b16 %v856
    %v896 = vunpack.c.l.b16 %v857
    %v897 = vpack.c.b16 %v882, %v881
    %v898 = vpack.c.b16 %v884, %v883
    %v899 = vpack.c.b16 %v886, %v885
    %v900 = vpack.c.b16 %v888, %v887
    %v901 = vpack.c.b16 %v890, %v889
    %v902 = vpack.c.b16 %v892, %v891
    %v903 = vpack.c.b16 %v894, %v893
    %v904 = vpack.c.b16 %v896, %v895
    %913 = vmatprep.subr.bf16.mxu0 0
    %914 = vmatpush1.bf16.msra.mxu0 %v897
    %915 = vmatprep.subr.bf16.mxu0 0
    %916 = vmatpush1.bf16.msra.mxu0 %v898
    %917 = vmatprep.subr.bf16.mxu0 0
    %918 = vmatpush1.bf16.msra.mxu0 %v899
    %919 = vmatprep.subr.bf16.mxu0 0
    %920 = vmatpush1.bf16.msra.mxu0 %v900
    %921 = vmatprep.subr.bf16.mxu0 0
    %922 = vmatpush1.bf16.msra.mxu0 %v901
    %923 = vmatprep.subr.bf16.mxu0 0
    %924 = vmatpush1.bf16.msra.mxu0 %v902
    %925 = vmatprep.subr.bf16.mxu0 0
    %926 = vmatpush1.bf16.msra.mxu0 %v903
    %927 = vmatprep.subr.bf16.mxu0 0
    %928 = vmatpush1.bf16.msra.mxu0 %v904
    %929 = vmatprep.subr.bf16.mxu0 0
    %930 = vmatpush1.bf16.msra.mxu0 0
    %931 = vmatprep.subr.bf16.mxu0 0
    %932 = vmatpush1.bf16.msra.mxu0 0
    %933 = vmatprep.subr.bf16.mxu0 0
    %934 = vmatpush1.bf16.msra.mxu0 0
    %935 = vmatprep.subr.bf16.mxu0 0
    %936 = vmatpush1.bf16.msra.mxu0 0
    %937 = vmatprep.subr.bf16.mxu0 0
    %938 = vmatpush1.bf16.msra.mxu0 0
    %939 = vmatprep.subr.bf16.mxu0 0
    %940 = vmatpush1.bf16.msra.mxu0 0
    %941 = vmatprep.subr.bf16.mxu0 0
    %942 = vmatpush1.bf16.msra.mxu0 0
    %943 = vmatprep.subr.bf16.mxu0 0
    %944 = vmatpush1.bf16.msra.mxu0 0
    %945 = vmatprep.mubr.bf16.mxu0 0
    %946 = vmatmul.mubr.bf16.gmra.mrb[0].mxu0 %v841
    %v947 = vpop.f32.mrb[0].mxu0
    %v948 = vadd.f32 %v863, %v947
    %v949 = vpop.f32.mrb[0].mxu0
    %v950 = vpop.f32.mrb[0].mxu0
    %v951 = vadd.f32 %v863, %v950
    %v952 = vpop.f32.mrb[0].mxu0
    %953 = vdwg.mxu0
    %v954 = vld [vmem:[%s2] sm:$0xf]
    %v955 = vld [vmem:[%s2 + $0x4] sm:$0xf]
    %v956 = vld [vmem:[%s13] sm:$0xff]
    %v957 = vld [vmem:[%s13 + $0x8] sm:$0xff]
    %v958 = vld [vmem:[%s13 + $0x10] sm:$0xff]
    %v959 = vld [vmem:[%s13 + $0x18] sm:$0xff]
    %v960 = vld [vmem:[%s13 + $0x20] sm:$0xff]
    %v961 = vld [vmem:[%s13 + $0x28] sm:$0xff]
    %v962 = vld [vmem:[%s13 + $0x30] sm:$0xff]
    %v963 = vld [vmem:[%s13 + $0x38] sm:$0xff]
    %v964 = vld [vmem:[%s13 + $0x40] sm:$0xff]
    %v965 = vld [vmem:[%s13 + $0x48] sm:$0xff]
    %v966 = vld [vmem:[%s13 + $0x50] sm:$0xff]
    %v967 = vld [vmem:[%s13 + $0x58] sm:$0xff]
    %v968 = vld [vmem:[%s13 + $0x60] sm:$0xff]
    %v969 = vld [vmem:[%s13 + $0x68] sm:$0xff]
    %v970 = vld [vmem:[%s13 + $0x70] sm:$0xff]
    %v971 = vld [vmem:[%s13 + $0x78] sm:$0xff]
    %v972 = vld [vmem:[%s14] sm:$0x3]
    %v974 = vlaneseq
    %v975 = vshrl.u32 %v974, 7
    %v976 = vsub.s32 0, %v975
    %v977 = vrot.slane %v972, %v976
    %v978 = vlaneseq
    %v979 = vshrl.u32 %v978, 7
    %v980 = vsub.s32 1, %v979
    %v981 = vrot.slane %v972, %v980
    %v986 = vunpack.c.l.b16 %v954
    %v987 = vunpack.c.l.b16 %v955
    %v988 = vpack.c.b16 %v987, %v986
    %v1006 = vunpack.c.l.b16 %v956
    %v1007 = vunpack.c.h.b16 %v956
    %v1008 = vunpack.c.l.b16 %v957
    %v1009 = vunpack.c.h.b16 %v957
    %v1010 = vunpack.c.l.b16 %v958
    %v1011 = vunpack.c.h.b16 %v958
    %v1012 = vunpack.c.l.b16 %v959
    %v1013 = vunpack.c.h.b16 %v959
    %v1014 = vunpack.c.l.b16 %v960
    %v1015 = vunpack.c.h.b16 %v960
    %v1016 = vunpack.c.l.b16 %v961
    %v1017 = vunpack.c.h.b16 %v961
    %v1018 = vunpack.c.l.b16 %v962
    %v1019 = vunpack.c.h.b16 %v962
    %v1020 = vunpack.c.l.b16 %v963
    %v1021 = vunpack.c.h.b16 %v963
    %v1022 = vunpack.c.l.b16 %v964
    %v1023 = vunpack.c.h.b16 %v964
    %v1024 = vunpack.c.l.b16 %v965
    %v1025 = vunpack.c.h.b16 %v965
    %v1026 = vunpack.c.l.b16 %v966
    %v1027 = vunpack.c.h.b16 %v966
    %v1028 = vunpack.c.l.b16 %v967
    %v1029 = vunpack.c.h.b16 %v967
    %v1030 = vunpack.c.l.b16 %v968
    %v1031 = vunpack.c.h.b16 %v968
    %v1032 = vunpack.c.l.b16 %v969
    %v1033 = vunpack.c.h.b16 %v969
    %v1034 = vunpack.c.l.b16 %v970
    %v1035 = vunpack.c.h.b16 %v970
    %v1036 = vunpack.c.l.b16 %v971
    %v1037 = vunpack.c.h.b16 %v971
    %v1038 = vpack.c.b16 %v1008, %v1006
    %v1039 = vpack.c.b16 %v1009, %v1007
    %v1040 = vpack.c.b16 %v1012, %v1010
    %v1041 = vpack.c.b16 %v1013, %v1011
    %v1042 = vpack.c.b16 %v1016, %v1014
    %v1043 = vpack.c.b16 %v1017, %v1015
    %v1044 = vpack.c.b16 %v1020, %v1018
    %v1045 = vpack.c.b16 %v1021, %v1019
    %v1046 = vpack.c.b16 %v1024, %v1022
    %v1047 = vpack.c.b16 %v1025, %v1023
    %v1048 = vpack.c.b16 %v1028, %v1026
    %v1049 = vpack.c.b16 %v1029, %v1027
    %v1050 = vpack.c.b16 %v1032, %v1030
    %v1051 = vpack.c.b16 %v1033, %v1031
    %v1052 = vpack.c.b16 %v1036, %v1034
    %v1053 = vpack.c.b16 %v1037, %v1035
    %1070 = vmatprep.subr.bf16.mxu0 %v1039
    %1071 = vmatpush1.bf16.msra.mxu0 %v1038
    %1072 = vmatprep.subr.bf16.mxu0 %v1041
    %1073 = vmatpush1.bf16.msra.mxu0 %v1040
    %1074 = vmatprep.subr.bf16.mxu0 %v1043
    %1075 = vmatpush1.bf16.msra.mxu0 %v1042
    %1076 = vmatprep.subr.bf16.mxu0 %v1045
    %1077 = vmatpush1.bf16.msra.mxu0 %v1044
    %1078 = vmatprep.subr.bf16.mxu0 %v1047
    %1079 = vmatpush1.bf16.msra.mxu0 %v1046
    %1080 = vmatprep.subr.bf16.mxu0 %v1049
    %1081 = vmatpush1.bf16.msra.mxu0 %v1048
    %1082 = vmatprep.subr.bf16.mxu0 %v1051
    %1083 = vmatpush1.bf16.msra.mxu0 %v1050
    %1084 = vmatprep.subr.bf16.mxu0 %v1053
    %1085 = vmatpush1.bf16.msra.mxu0 %v1052
    %1086 = vmatprep.subr.bf16.mxu0 0
    %1087 = vmatpush1.bf16.msra.mxu0 0
    %1088 = vmatprep.subr.bf16.mxu0 0
    %1089 = vmatpush1.bf16.msra.mxu0 0
    %1090 = vmatprep.subr.bf16.mxu0 0
    %1091 = vmatpush1.bf16.msra.mxu0 0
    %1092 = vmatprep.subr.bf16.mxu0 0
    %1093 = vmatpush1.bf16.msra.mxu0 0
    %1094 = vmatprep.subr.bf16.mxu0 0
    %1095 = vmatpush1.bf16.msra.mxu0 0
    %1096 = vmatprep.subr.bf16.mxu0 0
    %1097 = vmatpush1.bf16.msra.mxu0 0
    %1098 = vmatprep.subr.bf16.mxu0 0
    %1099 = vmatpush1.bf16.msra.mxu0 0
    %1100 = vmatprep.subr.bf16.mxu0 0
    %1101 = vmatpush1.bf16.msra.mxu0 0
    %1102 = vmatprep.mubr.bf16.mxu0 0
    %1103 = vmatmul.mubr.bf16.gmra.mrb[0].mxu0 %v988
    %v1104 = vpop.f32.mrb[0].mxu0
    %v1105 = vadd.f32 %v977, %v1104
    %v1106 = vpop.f32.mrb[0].mxu0
    %v1107 = vadd.f32 %v981, %v1106
    %v1108 = vpop.f32.mrb[0].mxu0
    %v1109 = vadd.f32 %v977, %v1108
    %v1110 = vpop.f32.mrb[0].mxu0
    %v1111 = vadd.f32 %v981, %v1110
    %1112 = vdwg.mxu0
    %v1113 = vpack.c.bf16 %v948, %v948
    %v1114 = vpack.c.bf16 %v951, %v951
    %v1115 = vpack.c.bf16 %v1105, %v1105
    %v1116 = vpack.c.bf16 %v1109, %v1109
    %1117 = vmatprep.subr.bf16.mxu0 0
    %1118 = vmatpush1.bf16.xpose.msra.mxu0 %v1115
    %1119 = vmatprep.subr.bf16.mxu0 0
    %1120 = vmatpush1.bf16.xpose.msra.mxu0 0
    %1121 = vmatprep.subr.bf16.mxu0 0
    %1122 = vmatpush1.bf16.xpose.msra.mxu0 0
    %1123 = vmatprep.subr.bf16.mxu0 0
    %1124 = vmatpush1.bf16.xpose.msra.mxu0 0
    %1125 = vmatprep.subr.bf16.mxu0 0
    %1126 = vmatpush1.bf16.xpose.msra.mxu0 0
    %1127 = vmatprep.subr.bf16.mxu0 0
    %1128 = vmatpush1.bf16.xpose.msra.mxu0 0
    %1129 = vmatprep.subr.bf16.mxu0 0
    %1130 = vmatpush1.bf16.xpose.msra.mxu0 0
    %1131 = vmatprep.subr.bf16.mxu0 0
    %1132 = vmatpush1.bf16.xpose.msra.mxu0 0
    %1133 = vmatprep.subr.bf16.mxu0 0
    %1134 = vmatpush1.bf16.xpose.msra.mxu0 0
    %1135 = vmatprep.subr.bf16.mxu0 0
    %1136 = vmatpush1.bf16.xpose.msra.mxu0 0
    %1137 = vmatprep.subr.bf16.mxu0 0
    %1138 = vmatpush1.bf16.xpose.msra.mxu0 0
    %1139 = vmatprep.subr.bf16.mxu0 0
    %1140 = vmatpush1.bf16.xpose.msra.mxu0 0
    %1141 = vmatprep.subr.bf16.mxu0 0
    %1142 = vmatpush1.bf16.xpose.msra.mxu0 0
    %1143 = vmatprep.subr.bf16.mxu0 0
    %1144 = vmatpush1.bf16.xpose.msra.mxu0 0
    %1145 = vmatprep.subr.bf16.mxu0 0
    %1146 = vmatpush1.bf16.xpose.msra.mxu0 0
    %1147 = vmatprep.subr.bf16.mxu0 0
    %1148 = vmatpush1.bf16.xpose.msra.mxu0 0
    %1149 = vmatprep.mubr.bf16.mxu0 0
    %1150 = vmatmul.mubr.bf16.gmra.mrb[0].mxu0 %v1113
    %v1151 = vpop.f32.mrb[0].mxu0
    %v1152 = vadd.f32 0.0, %v1151
    %v1153 = vpop.f32.mrb[0].mxu0
    %v1154 = vpop.f32.mrb[0].mxu0
    %v1155 = vpop.f32.mrb[0].mxu0
    %1156 = vdwg.mxu0
    %1157 = vmatprep.subr.bf16.mxu0 0
    %1158 = vmatpush1.bf16.xpose.msra.mxu0 %v1116
    %1159 = vmatprep.subr.bf16.mxu0 0
    %1160 = vmatpush1.bf16.xpose.msra.mxu0 0
    %1161 = vmatprep.subr.bf16.mxu0 0
    %1162 = vmatpush1.bf16.xpose.msra.mxu0 0
    %1163 = vmatprep.subr.bf16.mxu0 0
    %1164 = vmatpush1.bf16.xpose.msra.mxu0 0
    %1165 = vmatprep.subr.bf16.mxu0 0
    %1166 = vmatpush1.bf16.xpose.msra.mxu0 0
    %1167 = vmatprep.subr.bf16.mxu0 0
    %1168 = vmatpush1.bf16.xpose.msra.mxu0 0
    %1169 = vmatprep.subr.bf16.mxu0 0
    %1170 = vmatpush1.bf16.xpose.msra.mxu0 0
    %1171 = vmatprep.subr.bf16.mxu0 0
    %1172 = vmatpush1.bf16.xpose.msra.mxu0 0
    %1173 = vmatprep.subr.bf16.mxu0 0
    %1174 = vmatpush1.bf16.xpose.msra.mxu0 0
    %1175 = vmatprep.subr.bf16.mxu0 0
    %1176 = vmatpush1.bf16.xpose.msra.mxu0 0
    %1177 = vmatprep.subr.bf16.mxu0 0
    %1178 = vmatpush1.bf16.xpose.msra.mxu0 0
    %1179 = vmatprep.subr.bf16.mxu0 0
    %1180 = vmatpush1.bf16.xpose.msra.mxu0 0
    %1181 = vmatprep.subr.bf16.mxu0 0
    %1182 = vmatpush1.bf16.xpose.msra.mxu0 0
    %1183 = vmatprep.subr.bf16.mxu0 0
    %1184 = vmatpush1.bf16.xpose.msra.mxu0 0
    %1185 = vmatprep.subr.bf16.mxu0 0
    %1186 = vmatpush1.bf16.xpose.msra.mxu0 0
    %1187 = vmatprep.subr.bf16.mxu0 0
    %1188 = vmatpush1.bf16.xpose.msra.mxu0 0
    %1189 = vmatprep.mubr.bf16.mxu0 0
    %1190 = vmatmul.mubr.bf16.gmra.mrb[0].mxu0 %v1114
    %v1191 = vpop.f32.mrb[0].mxu0
    %v1192 = vadd.f32 0.0, %v1191
    %v1193 = vpop.f32.mrb[0].mxu0
    %v1194 = vpop.f32.mrb[0].mxu0
    %v1195 = vpop.f32.mrb[0].mxu0
    %1196 = vdwg.mxu0
    %v1197 = vmul.f32 %v1152, 0.088388346
    %v1198 = vmul.f32 %v1192, 0.088388346
    %v1199 = vsel %vm213, %v1197, -1e+09
    %v1200 = vsel %vm214, %v1198, -1e+09
    %v1201 = vsel %vm565, %v1199, -inf
    %1202 = vmax.xlane.f32.xlu0 %v1201
    %v1203 = vpop.xlane.xlu0 %1202
    %v1204 = vsel %vm565, %v1200, -inf
    %1205 = vmax.xlane.f32.xlu0 %v1204
    %v1206 = vpop.xlane.xlu0 %1205
    %v1207 = vsub.f32 %v1199, %v1203
    %v1208 = vsub.f32 %v1200, %v1206
    %v1209 = vmul.f32 %v1207, 1.442695
    %v1210 = vpow.pop %v1209
    %v1211 = vmul.f32 %v1208, 1.442695
    %v1212 = vpow.pop %v1211
    %v1213 = vsel %vm565, %v1210, 0.0
    %1214 = vadd.xlane.f32.xlu0 %v1213
    %v1215 = vpop.xlane.xlu0 %1214
    %v1216 = vsel %vm565, %v1212, 0.0
    %1217 = vadd.xlane.f32.xlu0 %v1216
    %v1218 = vpop.xlane.xlu0 %1217
    %v1219 = vrcp.pop %v1215
    %v1220 = vrcp.pop %v1218
    %v1221 = vmul.f32 %v1210, %v1219
    %v1222 = vmul.f32 %v1212, %v1220
    %v1223 = vpack.c.bf16 %v1221, %v1221
    %v1224 = vpack.c.bf16 %v1222, %v1222
    %v1225 = vpack.c.bf16 %v1107, %v1107
    %v1226 = vpack.c.bf16 %v1111, %v1111
    %v1228 = vsel %vm565, %v1223, 0
    %v1231 = vsel %vm595, %v1225, 0
    %1233 = vmatprep.subr.bf16.mxu0 0
    %1234 = vmatpush1.bf16.msra.mxu0 %v1231
    %1235 = vmatprep.subr.bf16.mxu0 0
    %1236 = vmatpush1.bf16.msra.mxu0 0
    %1237 = vmatprep.subr.bf16.mxu0 0
    %1238 = vmatpush1.bf16.msra.mxu0 0
    %1239 = vmatprep.subr.bf16.mxu0 0
    %1240 = vmatpush1.bf16.msra.mxu0 0
    %1241 = vmatprep.subr.bf16.mxu0 0
    %1242 = vmatpush1.bf16.msra.mxu0 0
    %1243 = vmatprep.subr.bf16.mxu0 0
    %1244 = vmatpush1.bf16.msra.mxu0 0
    %1245 = vmatprep.subr.bf16.mxu0 0
    %1246 = vmatpush1.bf16.msra.mxu0 0
    %1247 = vmatprep.subr.bf16.mxu0 0
    %1248 = vmatpush1.bf16.msra.mxu0 0
    %1249 = vmatprep.subr.bf16.mxu0 0
    %1250 = vmatpush1.bf16.msra.mxu0 0
    %1251 = vmatprep.subr.bf16.mxu0 0
    %1252 = vmatpush1.bf16.msra.mxu0 0
    %1253 = vmatprep.subr.bf16.mxu0 0
    %1254 = vmatpush1.bf16.msra.mxu0 0
    %1255 = vmatprep.subr.bf16.mxu0 0
    %1256 = vmatpush1.bf16.msra.mxu0 0
    %1257 = vmatprep.subr.bf16.mxu0 0
    %1258 = vmatpush1.bf16.msra.mxu0 0
    %1259 = vmatprep.subr.bf16.mxu0 0
    %1260 = vmatpush1.bf16.msra.mxu0 0
    %1261 = vmatprep.subr.bf16.mxu0 0
    %1262 = vmatpush1.bf16.msra.mxu0 0
    %1263 = vmatprep.subr.bf16.mxu0 0
    %1264 = vmatpush1.bf16.msra.mxu0 0
    %1265 = vmatprep.mubr.bf16.mxu0 0
    %1266 = vmatmul.mubr.bf16.gmra.mrb[0].mxu0 %v1228
    %v1267 = vpop.f32.mrb[0].mxu0
    %v1268 = vadd.f32 0.0, %v1267
    %v1269 = vpop.f32.mrb[0].mxu0
    %v1270 = vpop.f32.mrb[0].mxu0
    %v1271 = vpop.f32.mrb[0].mxu0
    %1272 = vdwg.mxu0
    %v1274 = vsel %vm565, %v1224, 0
    %v1277 = vsel %vm595, %v1226, 0
    %1279 = vmatprep.subr.bf16.mxu0 0
    %1280 = vmatpush1.bf16.msra.mxu0 %v1277
    %1281 = vmatprep.subr.bf16.mxu0 0
    %1282 = vmatpush1.bf16.msra.mxu0 0
    %1283 = vmatprep.subr.bf16.mxu0 0
    %1284 = vmatpush1.bf16.msra.mxu0 0
    %1285 = vmatprep.subr.bf16.mxu0 0
    %1286 = vmatpush1.bf16.msra.mxu0 0
    %1287 = vmatprep.subr.bf16.mxu0 0
    %1288 = vmatpush1.bf16.msra.mxu0 0
    %1289 = vmatprep.subr.bf16.mxu0 0
    %1290 = vmatpush1.bf16.msra.mxu0 0
    %1291 = vmatprep.subr.bf16.mxu0 0
    %1292 = vmatpush1.bf16.msra.mxu0 0
    %1293 = vmatprep.subr.bf16.mxu0 0
    %1294 = vmatpush1.bf16.msra.mxu0 0
    %1295 = vmatprep.subr.bf16.mxu0 0
    %1296 = vmatpush1.bf16.msra.mxu0 0
    %1297 = vmatprep.subr.bf16.mxu0 0
    %1298 = vmatpush1.bf16.msra.mxu0 0
    %1299 = vmatprep.subr.bf16.mxu0 0
    %1300 = vmatpush1.bf16.msra.mxu0 0
    %1301 = vmatprep.subr.bf16.mxu0 0
    %1302 = vmatpush1.bf16.msra.mxu0 0
    %1303 = vmatprep.subr.bf16.mxu0 0
    %1304 = vmatpush1.bf16.msra.mxu0 0
    %1305 = vmatprep.subr.bf16.mxu0 0
    %1306 = vmatpush1.bf16.msra.mxu0 0
    %1307 = vmatprep.subr.bf16.mxu0 0
    %1308 = vmatpush1.bf16.msra.mxu0 0
    %1309 = vmatprep.subr.bf16.mxu0 0
    %1310 = vmatpush1.bf16.msra.mxu0 0
    %1311 = vmatprep.mubr.bf16.mxu0 0
    %1312 = vmatmul.mubr.bf16.gmra.mrb[0].mxu0 %v1274
    %v1313 = vpop.f32.mrb[0].mxu0
    %v1314 = vadd.f32 0.0, %v1313
    %v1315 = vpop.f32.mrb[0].mxu0
    %v1316 = vpop.f32.mrb[0].mxu0
    %v1317 = vpop.f32.mrb[0].mxu0
    %1318 = vdwg.mxu0
    %v1319 = vpack.c.bf16 %v1314, %v1268
    %v1320 = vld [vmem:[#allocation4] sm:$0xf]
    %v1321 = vld [vmem:[#allocation4 + $0x4] sm:$0xf]
    %v1322 = vld [vmem:[#allocation4 + $0x8] sm:$0xf]
    %v1323 = vld [vmem:[#allocation4 + $0xc] sm:$0xf]
    %v1324 = vld [vmem:[#allocation4 + $0x10] sm:$0xf]
    %v1325 = vld [vmem:[#allocation4 + $0x14] sm:$0xf]
    %v1326 = vld [vmem:[#allocation4 + $0x18] sm:$0xf]
    %v1327 = vld [vmem:[#allocation4 + $0x1c] sm:$0xf]
    %v1328 = vld [vmem:[#allocation4 + $0x20] sm:$0xf]
    %v1329 = vld [vmem:[#allocation4 + $0x24] sm:$0xf]
    %v1330 = vld [vmem:[#allocation4 + $0x28] sm:$0xf]
    %v1331 = vld [vmem:[#allocation4 + $0x2c] sm:$0xf]
    %v1332 = vld [vmem:[#allocation4 + $0x30] sm:$0xf]
    %v1333 = vld [vmem:[#allocation4 + $0x34] sm:$0xf]
    %v1334 = vld [vmem:[#allocation4 + $0x38] sm:$0xf]
    %v1335 = vld [vmem:[#allocation4 + $0x3c] sm:$0xf]
    %v1336 = vld [vmem:[#allocation6] sm:$0x1]
    %v1338 = vlaneseq
    %v1339 = vshrl.u32 %v1338, 7
    %v1340 = vsub.s32 0, %v1339
    %v1341 = vrot.slane %v1336, %v1340
    %v1359 = vunpack.c.l.b16 %v1320
    %v1360 = vunpack.c.l.b16 %v1321
    %v1361 = vunpack.c.l.b16 %v1322
    %v1362 = vunpack.c.l.b16 %v1323
    %v1363 = vunpack.c.l.b16 %v1324
    %v1364 = vunpack.c.l.b16 %v1325
    %v1365 = vunpack.c.l.b16 %v1326
    %v1366 = vunpack.c.l.b16 %v1327
    %v1367 = vunpack.c.l.b16 %v1328
    %v1368 = vunpack.c.l.b16 %v1329
    %v1369 = vunpack.c.l.b16 %v1330
    %v1370 = vunpack.c.l.b16 %v1331
    %v1371 = vunpack.c.l.b16 %v1332
    %v1372 = vunpack.c.l.b16 %v1333
    %v1373 = vunpack.c.l.b16 %v1334
    %v1374 = vunpack.c.l.b16 %v1335
    %v1375 = vpack.c.b16 %v1360, %v1359
    %v1376 = vpack.c.b16 %v1362, %v1361
    %v1377 = vpack.c.b16 %v1364, %v1363
    %v1378 = vpack.c.b16 %v1366, %v1365
    %v1379 = vpack.c.b16 %v1368, %v1367
    %v1380 = vpack.c.b16 %v1370, %v1369
    %v1381 = vpack.c.b16 %v1372, %v1371
    %v1382 = vpack.c.b16 %v1374, %v1373
    %1391 = vmatprep.subr.bf16.mxu0 0
    %1392 = vmatpush1.bf16.msra.mxu0 %v1375
    %1393 = vmatprep.subr.bf16.mxu0 0
    %1394 = vmatpush1.bf16.msra.mxu0 %v1376
    %1395 = vmatprep.subr.bf16.mxu0 0
    %1396 = vmatpush1.bf16.msra.mxu0 %v1377
    %1397 = vmatprep.subr.bf16.mxu0 0
    %1398 = vmatpush1.bf16.msra.mxu0 %v1378
    %1399 = vmatprep.subr.bf16.mxu0 0
    %1400 = vmatpush1.bf16.msra.mxu0 %v1379
    %1401 = vmatprep.subr.bf16.mxu0 0
    %1402 = vmatpush1.bf16.msra.mxu0 %v1380
    %1403 = vmatprep.subr.bf16.mxu0 0
    %1404 = vmatpush1.bf16.msra.mxu0 %v1381
    %1405 = vmatprep.subr.bf16.mxu0 0
    %1406 = vmatpush1.bf16.msra.mxu0 %v1382
    %1407 = vmatprep.subr.bf16.mxu0 0
    %1408 = vmatpush1.bf16.msra.mxu0 0
    %1409 = vmatprep.subr.bf16.mxu0 0
    %1410 = vmatpush1.bf16.msra.mxu0 0
    %1411 = vmatprep.subr.bf16.mxu0 0
    %1412 = vmatpush1.bf16.msra.mxu0 0
    %1413 = vmatprep.subr.bf16.mxu0 0
    %1414 = vmatpush1.bf16.msra.mxu0 0
    %1415 = vmatprep.subr.bf16.mxu0 0
    %1416 = vmatpush1.bf16.msra.mxu0 0
    %1417 = vmatprep.subr.bf16.mxu0 0
    %1418 = vmatpush1.bf16.msra.mxu0 0
    %1419 = vmatprep.subr.bf16.mxu0 0
    %1420 = vmatpush1.bf16.msra.mxu0 0
    %1421 = vmatprep.subr.bf16.mxu0 0
    %1422 = vmatpush1.bf16.msra.mxu0 0
    %1423 = vmatprep.mubr.bf16.mxu0 0
    %1424 = vmatmul.mubr.bf16.gmra.mrb[0].mxu0 %v1319
    %v1425 = vpop.f32.mrb[0].mxu0
    %v1426 = vadd.f32 %v1341, %v1425
    %v1427 = vpop.f32.mrb[0].mxu0
    %v1428 = vpop.f32.mrb[0].mxu0
    %v1429 = vadd.f32 %v1341, %v1428
    %v1430 = vpop.f32.mrb[0].mxu0
    %1431 = vdwg.mxu0
    %v1432 = vadd.f32 %v839, %v1426
    %v1433 = vadd.f32 %v840, %v1429
    %v1434 = vld [vmem:[#allocation7] sm:$0x1]
    %v1435 = vld [vmem:[%s18] sm:$0x1]
    %1436 = vadd.xlane.f32.xlu0 %v1432
    %v1437 = vpop.xlane.xlu0 %1436
    %1438 = vadd.xlane.f32.xlu0 %v1433
    %v1439 = vpop.xlane.xlu0 %1438
    %v1440 = vmul.f32 %v1437, %v806
    %v1441 = vmul.f32 %v1439, %v806
    %v1442 = vsub.f32 %v1432, %v1440
    %v1443 = vsub.f32 %v1433, %v1441
    %v1444 = vmul.f32 %v1442, %v1442
    %v1445 = vmul.f32 %v1443, %v1443
    %1446 = vadd.xlane.f32.xlu0 %v1444
    %v1447 = vpop.xlane.xlu0 %1446
    %1448 = vadd.xlane.f32.xlu0 %v1445
    %v1449 = vpop.xlane.xlu0 %1448
    %v1450 = vmul.f32 %v1447, %v806
    %v1451 = vmul.f32 %v1449, %v806
    %v1452 = vadd.f32 %v1450, 1e-05
    %v1453 = vadd.f32 %v1451, 1e-05
    %v1454 = vrsqrt.pop %v1452
    %v1455 = vrsqrt.pop %v1453
    %v1456 = vmul.f32 %v1442, %v1454
    %v1457 = vmul.f32 %v1443, %v1455
    %v1459 = vlaneseq
    %v1460 = vshrl.u32 %v1459, 7
    %v1461 = vsub.s32 0, %v1460
    %v1462 = vrot.slane %v1434, %v1461
    %v1464 = vmul.f32 %v1456, %v1462
    %v1465 = vmul.f32 %v1457, %v1462
    %v1467 = vlaneseq
    %v1468 = vshrl.u32 %v1467, 7
    %v1469 = vsub.s32 0, %v1468
    %v1470 = vrot.slane %v1435, %v1469
    %v1472 = vadd.f32 %v1464, %v1470
    %v1473 = vadd.f32 %v1465, %v1470
    %v1474 = vpack.c.bf16 %v1473, %v1472
    %v1475 = vld [vmem:[#allocation9] sm:$0xff]
    %v1476 = vld [vmem:[#allocation9 + $0x8] sm:$0xff]
    %v1477 = vld [vmem:[#allocation9 + $0x10] sm:$0xff]
    %v1478 = vld [vmem:[#allocation9 + $0x18] sm:$0xff]
    %v1479 = vld [vmem:[#allocation9 + $0x20] sm:$0xff]
    %v1480 = vld [vmem:[#allocation9 + $0x28] sm:$0xff]
    %v1481 = vld [vmem:[#allocation9 + $0x30] sm:$0xff]
    %v1482 = vld [vmem:[#allocation9 + $0x38] sm:$0xff]
    %v1483 = vld [vmem:[#allocation9 + $0x40] sm:$0xff]
    %v1484 = vld [vmem:[#allocation9 + $0x48] sm:$0xff]
    %v1485 = vld [vmem:[#allocation9 + $0x50] sm:$0xff]
    %v1486 = vld [vmem:[#allocation9 + $0x58] sm:$0xff]
    %v1487 = vld [vmem:[#allocation9 + $0x60] sm:$0xff]
    %v1488 = vld [vmem:[#allocation9 + $0x68] sm:$0xff]
    %v1489 = vld [vmem:[#allocation9 + $0x70] sm:$0xff]
    %v1490 = vld [vmem:[#allocation9 + $0x78] sm:$0xff]
    %v1491 = vld [vmem:[%s20] sm:$0x3]
    %v1493 = vlaneseq
    %v1494 = vshrl.u32 %v1493, 7
    %v1495 = vsub.s32 0, %v1494
    %v1496 = vrot.slane %v1491, %v1495
    %v1497 = vlaneseq
    %v1498 = vshrl.u32 %v1497, 7
    %v1499 = vsub.s32 1, %v1498
    %v1500 = vrot.slane %v1491, %v1499
    %v1519 = vunpack.c.l.b16 %v1475
    %v1520 = vunpack.c.h.b16 %v1475
    %v1521 = vunpack.c.l.b16 %v1476
    %v1522 = vunpack.c.h.b16 %v1476
    %v1523 = vunpack.c.l.b16 %v1477
    %v1524 = vunpack.c.h.b16 %v1477
    %v1525 = vunpack.c.l.b16 %v1478
    %v1526 = vunpack.c.h.b16 %v1478
    %v1527 = vunpack.c.l.b16 %v1479
    %v1528 = vunpack.c.h.b16 %v1479
    %v1529 = vunpack.c.l.b16 %v1480
    %v1530 = vunpack.c.h.b16 %v1480
    %v1531 = vunpack.c.l.b16 %v1481
    %v1532 = vunpack.c.h.b16 %v1481
    %v1533 = vunpack.c.l.b16 %v1482
    %v1534 = vunpack.c.h.b16 %v1482
    %v1535 = vunpack.c.l.b16 %v1483
    %v1536 = vunpack.c.h.b16 %v1483
    %v1537 = vunpack.c.l.b16 %v1484
    %v1538 = vunpack.c.h.b16 %v1484
    %v1539 = vunpack.c.l.b16 %v1485
    %v1540 = vunpack.c.h.b16 %v1485
    %v1541 = vunpack.c.l.b16 %v1486
    %v1542 = vunpack.c.h.b16 %v1486
    %v1543 = vunpack.c.l.b16 %v1487
    %v1544 = vunpack.c.h.b16 %v1487
    %v1545 = vunpack.c.l.b16 %v1488
    %v1546 = vunpack.c.h.b16 %v1488
    %v1547 = vunpack.c.l.b16 %v1489
    %v1548 = vunpack.c.h.b16 %v1489
    %v1549 = vunpack.c.l.b16 %v1490
    %v1550 = vunpack.c.h.b16 %v1490
    %v1551 = vpack.c.b16 %v1521, %v1519
    %v1552 = vpack.c.b16 %v1522, %v1520
    %v1553 = vpack.c.b16 %v1525, %v1523
    %v1554 = vpack.c.b16 %v1526, %v1524
    %v1555 = vpack.c.b16 %v1529, %v1527
    %v1556 = vpack.c.b16 %v1530, %v1528
    %v1557 = vpack.c.b16 %v1533, %v1531
    %v1558 = vpack.c.b16 %v1534, %v1532
    %v1559 = vpack.c.b16 %v1537, %v1535
    %v1560 = vpack.c.b16 %v1538, %v1536
    %v1561 = vpack.c.b16 %v1541, %v1539
    %v1562 = vpack.c.b16 %v1542, %v1540
    %v1563 = vpack.c.b16 %v1545, %v1543
    %v1564 = vpack.c.b16 %v1546, %v1544
    %v1565 = vpack.c.b16 %v1549, %v1547
    %v1566 = vpack.c.b16 %v1550, %v1548
    %1583 = vmatprep.subr.bf16.mxu0 %v1552
    %1584 = vmatpush1.bf16.msra.mxu0 %v1551
    %1585 = vmatprep.subr.bf16.mxu0 %v1554
    %1586 = vmatpush1.bf16.msra.mxu0 %v1553
    %1587 = vmatprep.subr.bf16.mxu0 %v1556
    %1588 = vmatpush1.bf16.msra.mxu0 %v1555
    %1589 = vmatprep.subr.bf16.mxu0 %v1558
    %1590 = vmatpush1.bf16.msra.mxu0 %v1557
    %1591 = vmatprep.subr.bf16.mxu0 %v1560
    %1592 = vmatpush1.bf16.msra.mxu0 %v1559
    %1593 = vmatprep.subr.bf16.mxu0 %v1562
    %1594 = vmatpush1.bf16.msra.mxu0 %v1561
    %1595 = vmatprep.subr.bf16.mxu0 %v1564
    %1596 = vmatpush1.bf16.msra.mxu0 %v1563
    %1597 = vmatprep.subr.bf16.mxu0 %v1566
    %1598 = vmatpush1.bf16.msra.mxu0 %v1565
    %1599 = vmatprep.subr.bf16.mxu0 0
    %1600 = vmatpush1.bf16.msra.mxu0 0
    %1601 = vmatprep.subr.bf16.mxu0 0
    %1602 = vmatpush1.bf16.msra.mxu0 0
    %1603 = vmatprep.subr.bf16.mxu0 0
    %1604 = vmatpush1.bf16.msra.mxu0 0
    %1605 = vmatprep.subr.bf16.mxu0 0
    %1606 = vmatpush1.bf16.msra.mxu0 0
    %1607 = vmatprep.subr.bf16.mxu0 0
    %1608 = vmatpush1.bf16.msra.mxu0 0
    %1609 = vmatprep.subr.bf16.mxu0 0
    %1610 = vmatpush1.bf16.msra.mxu0 0
    %1611 = vmatprep.subr.bf16.mxu0 0
    %1612 = vmatpush1.bf16.msra.mxu0 0
    %1613 = vmatprep.subr.bf16.mxu0 0
    %1614 = vmatpush1.bf16.msra.mxu0 0
    %1615 = vmatprep.mubr.bf16.mxu0 0
    %1616 = vmatmul.mubr.bf16.gmra.mrb[0].mxu0 %v1474
    %v1617 = vpop.f32.mrb[0].mxu0
    %v1618 = vadd.f32 %v1496, %v1617
    %v1619 = vpop.f32.mrb[0].mxu0
    %v1620 = vadd.f32 %v1500, %v1619
    %v1621 = vpop.f32.mrb[0].mxu0
    %v1622 = vadd.f32 %v1496, %v1621
    %v1623 = vpop.f32.mrb[0].mxu0
    %v1624 = vadd.f32 %v1500, %v1623
    %1625 = vdwg.mxu0
    %v1626 = vmax.f32 %v1618, 0.0
    %v1627 = vmax.f32 %v1620, 0.0
    %v1628 = vmax.f32 %v1622, 0.0
    %v1629 = vmax.f32 %v1624, 0.0
    %v1630 = vpack.c.bf16 %v1628, %v1626
    %v1631 = vpack.c.bf16 %v1629, %v1627
    %v1632 = vld [vmem:[#allocation10] sm:$0xf]
    %v1633 = vld [vmem:[#allocation10 + $0x4] sm:$0xf]
    %v1634 = vld [vmem:[#allocation10 + $0x8] sm:$0xf]
    %v1635 = vld [vmem:[#allocation10 + $0xc] sm:$0xf]
    %v1636 = vld [vmem:[#allocation10 + $0x10] sm:$0xf]
    %v1637 = vld [vmem:[#allocation10 + $0x14] sm:$0xf]
    %v1638 = vld [vmem:[#allocation10 + $0x18] sm:$0xf]
    %v1639 = vld [vmem:[#allocation10 + $0x1c] sm:$0xf]
    %v1640 = vld [vmem:[#allocation10 + $0x20] sm:$0xf]
    %v1641 = vld [vmem:[#allocation10 + $0x24] sm:$0xf]
    %v1642 = vld [vmem:[#allocation10 + $0x28] sm:$0xf]
    %v1643 = vld [vmem:[#allocation10 + $0x2c] sm:$0xf]
    %v1644 = vld [vmem:[#allocation10 + $0x30] sm:$0xf]
    %v1645 = vld [vmem:[#allocation10 + $0x34] sm:$0xf]
    %v1646 = vld [vmem:[#allocation10 + $0x38] sm:$0xf]
    %v1647 = vld [vmem:[#allocation10 + $0x3c] sm:$0xf]
    %v1648 = vld [vmem:[#allocation10 + $0x40] sm:$0xf]
    %v1649 = vld [vmem:[#allocation10 + $0x44] sm:$0xf]
    %v1650 = vld [vmem:[#allocation10 + $0x48] sm:$0xf]
    %v1651 = vld [vmem:[#allocation10 + $0x4c] sm:$0xf]
    %v1652 = vld [vmem:[#allocation10 + $0x50] sm:$0xf]
    %v1653 = vld [vmem:[#allocation10 + $0x54] sm:$0xf]
    %v1654 = vld [vmem:[#allocation10 + $0x58] sm:$0xf]
    %v1655 = vld [vmem:[#allocation10 + $0x5c] sm:$0xf]
    %v1656 = vld [vmem:[#allocation10 + $0x60] sm:$0xf]
    %v1657 = vld [vmem:[#allocation10 + $0x64] sm:$0xf]
    %v1658 = vld [vmem:[#allocation10 + $0x68] sm:$0xf]
    %v1659 = vld [vmem:[#allocation10 + $0x6c] sm:$0xf]
    %v1660 = vld [vmem:[#allocation10 + $0x70] sm:$0xf]
    %v1661 = vld [vmem:[#allocation10 + $0x74] sm:$0xf]
    %v1662 = vld [vmem:[#allocation10 + $0x78] sm:$0xf]
    %v1663 = vld [vmem:[#allocation10 + $0x7c] sm:$0xf]
    %v1664 = vld [vmem:[%s22] sm:$0x1]
    %v1666 = vlaneseq
    %v1667 = vshrl.u32 %v1666, 7
    %v1668 = vsub.s32 0, %v1667
    %v1669 = vrot.slane %v1664, %v1668
    %v1703 = vunpack.c.l.b16 %v1632
    %v1704 = vunpack.c.l.b16 %v1633
    %v1705 = vunpack.c.l.b16 %v1634
    %v1706 = vunpack.c.l.b16 %v1635
    %v1707 = vunpack.c.l.b16 %v1636
    %v1708 = vunpack.c.l.b16 %v1637
    %v1709 = vunpack.c.l.b16 %v1638
    %v1710 = vunpack.c.l.b16 %v1639
    %v1711 = vunpack.c.l.b16 %v1640
    %v1712 = vunpack.c.l.b16 %v1641
    %v1713 = vunpack.c.l.b16 %v1642
    %v1714 = vunpack.c.l.b16 %v1643
    %v1715 = vunpack.c.l.b16 %v1644
    %v1716 = vunpack.c.l.b16 %v1645
    %v1717 = vunpack.c.l.b16 %v1646
    %v1718 = vunpack.c.l.b16 %v1647
    %v1719 = vunpack.c.l.b16 %v1648
    %v1720 = vunpack.c.l.b16 %v1649
    %v1721 = vunpack.c.l.b16 %v1650
    %v1722 = vunpack.c.l.b16 %v1651
    %v1723 = vunpack.c.l.b16 %v1652
    %v1724 = vunpack.c.l.b16 %v1653
    %v1725 = vunpack.c.l.b16 %v1654
    %v1726 = vunpack.c.l.b16 %v1655
    %v1727 = vunpack.c.l.b16 %v1656
    %v1728 = vunpack.c.l.b16 %v1657
    %v1729 = vunpack.c.l.b16 %v1658
    %v1730 = vunpack.c.l.b16 %v1659
    %v1731 = vunpack.c.l.b16 %v1660
    %v1732 = vunpack.c.l.b16 %v1661
    %v1733 = vunpack.c.l.b16 %v1662
    %v1734 = vunpack.c.l.b16 %v1663
    %v1735 = vpack.c.b16 %v1704, %v1703
    %v1736 = vpack.c.b16 %v1706, %v1705
    %v1737 = vpack.c.b16 %v1708, %v1707
    %v1738 = vpack.c.b16 %v1710, %v1709
    %v1739 = vpack.c.b16 %v1712, %v1711
    %v1740 = vpack.c.b16 %v1714, %v1713
    %v1741 = vpack.c.b16 %v1716, %v1715
    %v1742 = vpack.c.b16 %v1718, %v1717
    %v1743 = vpack.c.b16 %v1720, %v1719
    %v1744 = vpack.c.b16 %v1722, %v1721
    %v1745 = vpack.c.b16 %v1724, %v1723
    %v1746 = vpack.c.b16 %v1726, %v1725
    %v1747 = vpack.c.b16 %v1728, %v1727
    %v1748 = vpack.c.b16 %v1730, %v1729
    %v1749 = vpack.c.b16 %v1732, %v1731
    %v1750 = vpack.c.b16 %v1734, %v1733
    %1767 = vmatprep.subr.bf16.mxu0 0
    %1768 = vmatpush1.bf16.msra.mxu0 %v1735
    %1769 = vmatprep.subr.bf16.mxu0 0
    %1770 = vmatpush1.bf16.msra.mxu0 %v1736
    %1771 = vmatprep.subr.bf16.mxu0 0
    %1772 = vmatpush1.bf16.msra.mxu0 %v1737
    %1773 = vmatprep.subr.bf16.mxu0 0
    %1774 = vmatpush1.bf16.msra.mxu0 %v1738
    %1775 = vmatprep.subr.bf16.mxu0 0
    %1776 = vmatpush1.bf16.msra.mxu0 %v1739
    %1777 = vmatprep.subr.bf16.mxu0 0
    %1778 = vmatpush1.bf16.msra.mxu0 %v1740
    %1779 = vmatprep.subr.bf16.mxu0 0
    %1780 = vmatpush1.bf16.msra.mxu0 %v1741
    %1781 = vmatprep.subr.bf16.mxu0 0
    %1782 = vmatpush1.bf16.msra.mxu0 %v1742
    %1783 = vmatprep.subr.bf16.mxu0 0
    %1784 = vmatpush1.bf16.msra.mxu0 %v1743
    %1785 = vmatprep.subr.bf16.mxu0 0
    %1786 = vmatpush1.bf16.msra.mxu0 %v1744
    %1787 = vmatprep.subr.bf16.mxu0 0
    %1788 = vmatpush1.bf16.msra.mxu0 %v1745
    %1789 = vmatprep.subr.bf16.mxu0 0
    %1790 = vmatpush1.bf16.msra.mxu0 %v1746
    %1791 = vmatprep.subr.bf16.mxu0 0
    %1792 = vmatpush1.bf16.msra.mxu0 %v1747
    %1793 = vmatprep.subr.bf16.mxu0 0
    %1794 = vmatpush1.bf16.msra.mxu0 %v1748
    %1795 = vmatprep.subr.bf16.mxu0 0
    %1796 = vmatpush1.bf16.msra.mxu0 %v1749
    %1797 = vmatprep.subr.bf16.mxu0 0
    %1798 = vmatpush1.bf16.msra.mxu0 %v1750
    %1799 = vmatprep.mubr.bf16.mxu0 %v1631
    %1800 = vmatmul.mubr.bf16.gmra.mrb[0].mxu0 %v1630
    %v1801 = vpop.f32.mrb[0].mxu0
    %v1802 = vadd.f32 %v1669, %v1801
    %v1803 = vpop.f32.mrb[0].mxu0
    %v1804 = vpop.f32.mrb[0].mxu0
    %v1805 = vadd.f32 %v1669, %v1804
    %v1806 = vpop.f32.mrb[0].mxu0
    %1807 = vdwg.mxu0
    %v1808 = vadd.f32 %v1472, %v1802
    %v1809 = vadd.f32 %v1473, %v1805
    %v1810 = vld [vmem:[%s23] sm:$0x1]
    %v1811 = vld [vmem:[%s24] sm:$0x1]
    %1812 = vadd.xlane.f32.xlu0 %v1808
    %v1813 = vpop.xlane.xlu0 %1812
    %1814 = vadd.xlane.f32.xlu0 %v1809
    %v1815 = vpop.xlane.xlu0 %1814
    %v1816 = vmul.f32 %v1813, %v806
    %v1817 = vmul.f32 %v1815, %v806
    %v1818 = vsub.f32 %v1808, %v1816
    %v1819 = vsub.f32 %v1809, %v1817
    %v1820 = vmul.f32 %v1818, %v1818
    %v1821 = vmul.f32 %v1819, %v1819
    %1822 = vadd.xlane.f32.xlu0 %v1820
    %v1823 = vpop.xlane.xlu0 %1822
    %1824 = vadd.xlane.f32.xlu0 %v1821
    %v1825 = vpop.xlane.xlu0 %1824
    %v1826 = vmul.f32 %v1823, %v806
    %v1827 = vmul.f32 %v1825, %v806
    %v1828 = vadd.f32 %v1826, 1e-05
    %v1829 = vadd.f32 %v1827, 1e-05
    %v1830 = vrsqrt.pop %v1828
    %v1831 = vrsqrt.pop %v1829
    %v1832 = vmul.f32 %v1818, %v1830
    %v1833 = vmul.f32 %v1819, %v1831
    %v1835 = vlaneseq
    %v1836 = vshrl.u32 %v1835, 7
    %v1837 = vsub.s32 0, %v1836
    %v1838 = vrot.slane %v1810, %v1837
    %v1840 = vmul.f32 %v1832, %v1838
    %v1841 = vmul.f32 %v1833, %v1838
    %v1843 = vlaneseq
    %v1844 = vshrl.u32 %v1843, 7
    %v1845 = vsub.s32 0, %v1844
    %v1846 = vrot.slane %v1811, %v1845
    %v1848 = vadd.f32 %v1840, %v1846
    %v1849 = vadd.f32 %v1841, %v1846
    %v1850 = vpack.c.bf16 %v1848, %v1848
    %v1851 = vpack.c.bf16 %v1849, %v1849
    %1852 = vst [vmem:[%s25] sm:$0xf] %v1850
    %1853 = vst [vmem:[%s25 + $0x4] sm:$0xf] %v1851
    // Predicated region
    $region126: #{transformer_decoder_forward.3} parent=1 // pred_check
      _
    $region127: #{transformer_decoder_forward.3} parent=1 // pred_check_branch
      %1855 = sbr.rel (0) target = $region129
    $region128: #{transformer_decoder_forward.3} parent=1 // pred_region
      _
    $region129: #{transformer_decoder_forward.3} parent=1 // pred_fallthru
      _
    // Predicated region
    $region130: #{transformer_decoder_forward.3} parent=1 // pred_check
      _
    $region131: #{transformer_decoder_forward.3} parent=1 // pred_check_branch
      %1857 = sbr.rel (0) target = $region133
    $region132: #{transformer_decoder_forward.3} parent=1 // pred_region
      _
    $region133: #{transformer_decoder_forward.3} parent=1 // pred_fallthru
      _
    %1858 = vsyncpa [#allocation3], 1
    %1859 = vsyncpa [#allocation5], 1
    %1860 = vsyncpa [#allocation8], 1
    %1861 = vsyncpa [#allocation11], 1

// kernel: transformer_decoder_forward.4
$region0: #{transformer_decoder_forward.4}
  #allocation0 [shape = 'u32[]', space=smem, size = 0x4, offset = 0x4, fixed_abs, tag = 'smem constant byte address 0x4 - core index']
  #allocation1 [shape = 'u32[144,128]{1,0:T(1,128)}', space=vmem, size = 0x12000, scoped, tag = 'internal scratch']
  %s0 = inlined_call_operand.vmem [shape: bf16[2,8,128], index: 0, kind: input, shape index: {}]
  %s1 = inlined_call_operand.vmem [shape: f32[8,128], index: 1, kind: input, shape index: {}]
  %s2 = inlined_call_operand.vmem [shape: bf16[2,8,128], index: 2, kind: input, shape index: {}]
  %s3 = inlined_call_operand.vmem [shape: s32[2,1,1], index: 3, kind: input, shape index: {}]
  %s4 = inlined_call_operand.vmem [shape: s32[2,1,1], index: 4, kind: input, shape index: {}]
  %s5 = inlined_call_operand.vmem [shape: bf16[128,384], index: 5, kind: input, shape index: {}]
  %s6 = inlined_call_operand.vmem [shape: f32[1,384], index: 6, kind: input, shape index: {}]
  %s7 = inlined_call_operand.vmem [shape: bf16[128,128], index: 7, kind: input, shape index: {}]
  %s8 = inlined_call_operand.vmem [shape: f32[1,128], index: 8, kind: input, shape index: {}]
  %s9 = inlined_call_operand.vmem [shape: f32[1,128], index: 9, kind: input, shape index: {}]
  %s10 = inlined_call_operand.vmem [shape: f32[1,128], index: 10, kind: input, shape index: {}]
  %s11 = inlined_call_operand.vmem [shape: bf16[128,128], index: 11, kind: input, shape index: {}]
  %s12 = inlined_call_operand.vmem [shape: f32[1,128], index: 12, kind: input, shape index: {}]
  %s13 = inlined_call_operand.vmem [shape: bf16[128,256], index: 13, kind: input, shape index: {}]
  %s14 = inlined_call_operand.vmem [shape: f32[1,256], index: 14, kind: input, shape index: {}]
  %s15 = inlined_call_operand.vmem [shape: bf16[128,128], index: 15, kind: input, shape index: {}]
  %s16 = inlined_call_operand.vmem [shape: f32[1,128], index: 16, kind: input, shape index: {}]
  %s17 = inlined_call_operand.vmem [shape: f32[1,128], index: 17, kind: input, shape index: {}]
  %s18 = inlined_call_operand.vmem [shape: f32[1,128], index: 18, kind: input, shape index: {}]
  %s19 = inlined_call_operand.vmem [shape: bf16[128,256], index: 19, kind: input, shape index: {}]
  %s20 = inlined_call_operand.vmem [shape: f32[1,256], index: 20, kind: input, shape index: {}]
  %s21 = inlined_call_operand.vmem [shape: bf16[256,128], index: 21, kind: input, shape index: {}]
  %s22 = inlined_call_operand.vmem [shape: f32[1,128], index: 22, kind: input, shape index: {}]
  %s23 = inlined_call_operand.vmem [shape: f32[1,128], index: 23, kind: input, shape index: {}]
  %s24 = inlined_call_operand.vmem [shape: f32[1,128], index: 24, kind: input, shape index: {}]
  %s25 = inlined_call_operand.vmem [shape: bf16[2,8,128], index: 25, kind: output, shape index: {}]
  %s26 = sld [smem:[#allocation0]]
  $region110: #{transformer_decoder_forward.4} parent=0
    _
  %s28 = ssub.s32 1, %s26
  %s29 = scalar_select 0, %s28, %s26
  // Predicated region
  $region2: #{transformer_decoder_forward.4} parent=0 // pred_check
    _
  $region3: #{transformer_decoder_forward.4} parent=0 // pred_check_branch
    %31 = sbr.rel (0) target = $region5
  $region4: #{transformer_decoder_forward.4} parent=0 // pred_region
    _
  $region5: #{transformer_decoder_forward.4} parent=0 // pred_fallthru
    _
  // Predicated region
  $region6: #{transformer_decoder_forward.4} parent=0 // pred_check
    _
  $region7: #{transformer_decoder_forward.4} parent=0 // pred_check_branch
    %33 = sbr.rel (0) target = $region9
  $region8: #{transformer_decoder_forward.4} parent=0 // pred_region
    _
  $region9: #{transformer_decoder_forward.4} parent=0 // pred_fallthru
    _
  // Predicated region
  $region10: #{transformer_decoder_forward.4} parent=0 // pred_check
    _
  $region11: #{transformer_decoder_forward.4} parent=0 // pred_check_branch
    %35 = sbr.rel (0) target = $region13
  $region12: #{transformer_decoder_forward.4} parent=0 // pred_region
    _
  $region13: #{transformer_decoder_forward.4} parent=0 // pred_fallthru
    _
  // Predicated region
  $region14: #{transformer_decoder_forward.4} parent=0 // pred_check
    _
  $region15: #{transformer_decoder_forward.4} parent=0 // pred_check_branch
    %37 = sbr.rel (0) target = $region17
  $region16: #{transformer_decoder_forward.4} parent=0 // pred_region
    _
  $region17: #{transformer_decoder_forward.4} parent=0 // pred_fallthru
    _
  // Predicated region
  $region18: #{transformer_decoder_forward.4} parent=0 // pred_check
    _
  $region19: #{transformer_decoder_forward.4} parent=0 // pred_check_branch
    %39 = sbr.rel (0) target = $region21
  $region20: #{transformer_decoder_forward.4} parent=0 // pred_region
    _
  $region21: #{transformer_decoder_forward.4} parent=0 // pred_fallthru
    _
  // Predicated region
  $region22: #{transformer_decoder_forward.4} parent=0 // pred_check
    _
  $region23: #{transformer_decoder_forward.4} parent=0 // pred_check_branch
    %41 = sbr.rel (0) target = $region25
  $region24: #{transformer_decoder_forward.4} parent=0 // pred_region
    _
  $region25: #{transformer_decoder_forward.4} parent=0 // pred_fallthru
    _
  // Predicated region
  $region26: #{transformer_decoder_forward.4} parent=0 // pred_check
    _
  $region27: #{transformer_decoder_forward.4} parent=0 // pred_check_branch
    %43 = sbr.rel (0) target = $region29
  $region28: #{transformer_decoder_forward.4} parent=0 // pred_region
    _
  $region29: #{transformer_decoder_forward.4} parent=0 // pred_fallthru
    _
  // Predicated region
  $region30: #{transformer_decoder_forward.4} parent=0 // pred_check
    _
  $region31: #{transformer_decoder_forward.4} parent=0 // pred_check_branch
    %45 = sbr.rel (0) target = $region33
  $region32: #{transformer_decoder_forward.4} parent=0 // pred_region
    _
  $region33: #{transformer_decoder_forward.4} parent=0 // pred_fallthru
    _
  // Predicated region
  $region34: #{transformer_decoder_forward.4} parent=0 // pred_check
    _
  $region35: #{transformer_decoder_forward.4} parent=0 // pred_check_branch
    %47 = sbr.rel (0) target = $region37
  $region36: #{transformer_decoder_forward.4} parent=0 // pred_region
    _
  $region37: #{transformer_decoder_forward.4} parent=0 // pred_fallthru
    _
  // Predicated region
  $region38: #{transformer_decoder_forward.4} parent=0 // pred_check
    _
  $region39: #{transformer_decoder_forward.4} parent=0 // pred_check_branch
    %49 = sbr.rel (0) target = $region41
  $region40: #{transformer_decoder_forward.4} parent=0 // pred_region
    _
  $region41: #{transformer_decoder_forward.4} parent=0 // pred_fallthru
    _
  // Predicated region
  $region42: #{transformer_decoder_forward.4} parent=0 // pred_check
    _
  $region43: #{transformer_decoder_forward.4} parent=0 // pred_check_branch
    %51 = sbr.rel (0) target = $region45
  $region44: #{transformer_decoder_forward.4} parent=0 // pred_region
    _
  $region45: #{transformer_decoder_forward.4} parent=0 // pred_fallthru
    _
  // Predicated region
  $region46: #{transformer_decoder_forward.4} parent=0 // pred_check
    _
  $region47: #{transformer_decoder_forward.4} parent=0 // pred_check_branch
    %53 = sbr.rel (0) target = $region49
  $region48: #{transformer_decoder_forward.4} parent=0 // pred_region
    _
  $region49: #{transformer_decoder_forward.4} parent=0 // pred_fallthru
    _
  // Predicated region
  $region50: #{transformer_decoder_forward.4} parent=0 // pred_check
    _
  $region51: #{transformer_decoder_forward.4} parent=0 // pred_check_branch
    %55 = sbr.rel (0) target = $region53
  $region52: #{transformer_decoder_forward.4} parent=0 // pred_region
    _
  $region53: #{transformer_decoder_forward.4} parent=0 // pred_fallthru
    _
  // Predicated region
  $region54: #{transformer_decoder_forward.4} parent=0 // pred_check
    _
  $region55: #{transformer_decoder_forward.4} parent=0 // pred_check_branch
    %57 = sbr.rel (0) target = $region57
  $region56: #{transformer_decoder_forward.4} parent=0 // pred_region
    _
  $region57: #{transformer_decoder_forward.4} parent=0 // pred_fallthru
    _
  // Predicated region
  $region58: #{transformer_decoder_forward.4} parent=0 // pred_check
    _
  $region59: #{transformer_decoder_forward.4} parent=0 // pred_check_branch
    %59 = sbr.rel (0) target = $region61
  $region60: #{transformer_decoder_forward.4} parent=0 // pred_region
    _
  $region61: #{transformer_decoder_forward.4} parent=0 // pred_fallthru
    _
  // Predicated region
  $region62: #{transformer_decoder_forward.4} parent=0 // pred_check
    _
  $region63: #{transformer_decoder_forward.4} parent=0 // pred_check_branch
    %61 = sbr.rel (0) target = $region65
  $region64: #{transformer_decoder_forward.4} parent=0 // pred_region
    _
  $region65: #{transformer_decoder_forward.4} parent=0 // pred_fallthru
    _
  // Predicated region
  $region66: #{transformer_decoder_forward.4} parent=0 // pred_check
    _
  $region67: #{transformer_decoder_forward.4} parent=0 // pred_check_branch
    %63 = sbr.rel (0) target = $region69
  $region68: #{transformer_decoder_forward.4} parent=0 // pred_region
    _
  $region69: #{transformer_decoder_forward.4} parent=0 // pred_fallthru
    _
  // Predicated region
  $region70: #{transformer_decoder_forward.4} parent=0 // pred_check
    _
  $region71: #{transformer_decoder_forward.4} parent=0 // pred_check_branch
    %65 = sbr.rel (0) target = $region73
  $region72: #{transformer_decoder_forward.4} parent=0 // pred_region
    _
  $region73: #{transformer_decoder_forward.4} parent=0 // pred_fallthru
    _
  // Predicated region
  $region74: #{transformer_decoder_forward.4} parent=0 // pred_check
    _
  $region75: #{transformer_decoder_forward.4} parent=0 // pred_check_branch
    %67 = sbr.rel (0) target = $region77
  $region76: #{transformer_decoder_forward.4} parent=0 // pred_region
    _
  $region77: #{transformer_decoder_forward.4} parent=0 // pred_fallthru
    _
  // Predicated region
  $region78: #{transformer_decoder_forward.4} parent=0 // pred_check
    _
  $region79: #{transformer_decoder_forward.4} parent=0 // pred_check_branch
    %69 = sbr.rel (0) target = $region81
  $region80: #{transformer_decoder_forward.4} parent=0 // pred_region
    _
  $region81: #{transformer_decoder_forward.4} parent=0 // pred_fallthru
    _
  // Predicated region
  $region82: #{transformer_decoder_forward.4} parent=0 // pred_check
    _
  $region83: #{transformer_decoder_forward.4} parent=0 // pred_check_branch
    %71 = sbr.rel (0) target = $region85
  $region84: #{transformer_decoder_forward.4} parent=0 // pred_region
    _
  $region85: #{transformer_decoder_forward.4} parent=0 // pred_fallthru
    _
  // Predicated region
  $region86: #{transformer_decoder_forward.4} parent=0 // pred_check
    _
  $region87: #{transformer_decoder_forward.4} parent=0 // pred_check_branch
    %73 = sbr.rel (0) target = $region89
  $region88: #{transformer_decoder_forward.4} parent=0 // pred_region
    _
  $region89: #{transformer_decoder_forward.4} parent=0 // pred_fallthru
    _
  // Predicated region
  $region90: #{transformer_decoder_forward.4} parent=0 // pred_check
    _
  $region91: #{transformer_decoder_forward.4} parent=0 // pred_check_branch
    %75 = sbr.rel (0) target = $region93
  $region92: #{transformer_decoder_forward.4} parent=0 // pred_region
    _
  $region93: #{transformer_decoder_forward.4} parent=0 // pred_fallthru
    _
  // Predicated region
  $region94: #{transformer_decoder_forward.4} parent=0 // pred_check
    _
  $region95: #{transformer_decoder_forward.4} parent=0 // pred_check_branch
    %77 = sbr.rel (0) target = $region97
  $region96: #{transformer_decoder_forward.4} parent=0 // pred_region
    _
  $region97: #{transformer_decoder_forward.4} parent=0 // pred_fallthru
    _
  // Predicated region
  $region98: #{transformer_decoder_forward.4} parent=0 // pred_check
    _
  $region99: #{transformer_decoder_forward.4} parent=0 // pred_check_branch
    %79 = sbr.rel (0) target = $region101
  $region100: #{transformer_decoder_forward.4} parent=0 // pred_region
    _
  $region101: #{transformer_decoder_forward.4} parent=0 // pred_fallthru
    _
  %v81 = vld [vmem:[%s0] sm:$0xf]
  %v82 = vld [vmem:[%s0 + $0x4] sm:$0xf]
  %v83 = vunpack.c.l.bf16 %v81
  %v84 = vunpack.c.l.bf16 %v82
  %v85 = vld [vmem:[%s1] sm:$0xff]
  %v86 = vadd.f32 %v83, %v85
  %v87 = vadd.f32 %v84, %v85
  %v88 = vld [vmem:[%s3] sm:$0x1]
  %v89 = vld [vmem:[%s3 + $0x1] sm:$0x1]
  %v90 = vld [vmem:[%s4] sm:$0x1]
  %v91 = vld [vmem:[%s4 + $0x1] sm:$0x1]
  %v92 = vlaneseq
  %v93 = vshrl.u32 %v92, 7
  %v94 = vlaneseq
  %v95 = vand.u32 %v94, 127
  %v96 = vlaneseq
  %v97 = vshrl.u32 %v96, 7
  %v98 = vsub.s32 0, %v97
  %v99 = vrot.slane %v88, %v98
  %v100 = vlaneseq
  %v101 = vshrl.u32 %v100, 7
  %v102 = vsub.s32 0, %v101
  %v103 = vrot.slane %v89, %v102
  %104 = vset.pattern.permute.xlu0 0
  %105 = vperm.xlu0 %104, %v99
  %v106 = vpop.permute.xlu0 %105
  %107 = vset.pattern.permute.xlu0 0
  %108 = vperm.xlu0 %107, %v103
  %v109 = vpop.permute.xlu0 %108
  %vm110 = vcmp.lt.s32.totalorder %v93, %v106
  %vm111 = vcmp.lt.s32.totalorder %v93, %v109
  %vm112 = vcmp.lt.s32.totalorder %v95, %v106
  %vm113 = vcmp.lt.s32.totalorder %v95, %v109
  %vm114 = vmand %vm110, %vm112
  %vm115 = vmand %vm111, %vm113
  %vm116 = vcmp.le.s32.totalorder %v95, %v93
  %vm117 = vmand %vm114, %vm116
  %vm118 = vmand %vm115, %vm116
  %v119 = vlaneseq
  %v120 = vshrl.u32 %v119, 7
  %v121 = vsub.s32 0, %v120
  %v122 = vrot.slane %v90, %v121
  %v123 = vlaneseq
  %v124 = vshrl.u32 %v123, 7
  %v125 = vsub.s32 0, %v124
  %v126 = vrot.slane %v91, %v125
  %127 = vset.pattern.permute.xlu0 0
  %128 = vperm.xlu0 %127, %v122
  %v129 = vpop.permute.xlu0 %128
  %130 = vset.pattern.permute.xlu0 0
  %131 = vperm.xlu0 %130, %v126
  %v132 = vpop.permute.xlu0 %131
  %vm133 = vcmp.lt.s32.totalorder %v95, %v129
  %vm134 = vcmp.lt.s32.totalorder %v95, %v132
  %vm135 = vmand %vm110, %vm133
  %vm136 = vmand %vm111, %vm134
  %v137 = vpack.c.bf16 %v87, %v86
  %v138 = vld [vmem:[%s5] sm:$0xff]
  %v139 = vld [vmem:[%s5 + $0x8] sm:$0xf]
  %v140 = vld [vmem:[%s5 + $0xc] sm:$0xff]
  %v141 = vld [vmem:[%s5 + $0x14] sm:$0xf]
  %v142 = vld [vmem:[%s5 + $0x18] sm:$0xff]
  %v143 = vld [vmem:[%s5 + $0x20] sm:$0xf]
  %v144 = vld [vmem:[%s5 + $0x24] sm:$0xff]
  %v145 = vld [vmem:[%s5 + $0x2c] sm:$0xf]
  %v146 = vld [vmem:[%s5 + $0x30] sm:$0xff]
  %v147 = vld [vmem:[%s5 + $0x38] sm:$0xf]
  %v148 = vld [vmem:[%s5 + $0x3c] sm:$0xff]
  %v149 = vld [vmem:[%s5 + $0x44] sm:$0xf]
  %v150 = vld [vmem:[%s5 + $0x48] sm:$0xff]
  %v151 = vld [vmem:[%s5 + $0x50] sm:$0xf]
  %v152 = vld [vmem:[%s5 + $0x54] sm:$0xff]
  %v153 = vld [vmem:[%s5 + $0x5c] sm:$0xf]
  %v154 = vld [vmem:[%s5 + $0x60] sm:$0xff]
  %v155 = vld [vmem:[%s5 + $0x68] sm:$0xf]
  %v156 = vld [vmem:[%s5 + $0x6c] sm:$0xff]
  %v157 = vld [vmem:[%s5 + $0x74] sm:$0xf]
  %v158 = vld [vmem:[%s5 + $0x78] sm:$0xff]
  %v159 = vld [vmem:[%s5 + $0x80] sm:$0xf]
  %v160 = vld [vmem:[%s5 + $0x84] sm:$0xff]
  %v161 = vld [vmem:[%s5 + $0x8c] sm:$0xf]
  %v162 = vld [vmem:[%s5 + $0x90] sm:$0xff]
  %v163 = vld [vmem:[%s5 + $0x98] sm:$0xf]
  %v164 = vld [vmem:[%s5 + $0x9c] sm:$0xff]
  %v165 = vld [vmem:[%s5 + $0xa4] sm:$0xf]
  %v166 = vld [vmem:[%s5 + $0xa8] sm:$0xff]
  %v167 = vld [vmem:[%s5 + $0xb0] sm:$0xf]
  %v168 = vld [vmem:[%s5 + $0xb4] sm:$0xff]
  %v169 = vld [vmem:[%s5 + $0xbc] sm:$0xf]
  %v170 = vld [vmem:[%s6] sm:$0x7]
  %v172 = vlaneseq
  %v173 = vshrl.u32 %v172, 7
  %v174 = vsub.s32 0, %v173
  %v175 = vrot.slane %v170, %v174
  %v176 = vlaneseq
  %v177 = vshrl.u32 %v176, 7
  %v178 = vsub.s32 1, %v177
  %v179 = vrot.slane %v170, %v178
  %v180 = vlaneseq
  %v181 = vshrl.u32 %v180, 7
  %v182 = vsub.s32 2, %v181
  %v183 = vrot.slane %v170, %v182
  %v219 = vunpack.c.l.b16 %v138
  %v220 = vunpack.c.h.b16 %v138
  %v221 = vunpack.c.l.b16 %v139
  %v222 = vunpack.c.l.b16 %v140
  %v223 = vunpack.c.h.b16 %v140
  %v224 = vunpack.c.l.b16 %v141
  %v225 = vunpack.c.l.b16 %v142
  %v226 = vunpack.c.h.b16 %v142
  %v227 = vunpack.c.l.b16 %v143
  %v228 = vunpack.c.l.b16 %v144
  %v229 = vunpack.c.h.b16 %v144
  %v230 = vunpack.c.l.b16 %v145
  %v231 = vunpack.c.l.b16 %v146
  %v232 = vunpack.c.h.b16 %v146
  %v233 = vunpack.c.l.b16 %v147
  %v234 = vunpack.c.l.b16 %v148
  %v235 = vunpack.c.h.b16 %v148
  %v236 = vunpack.c.l.b16 %v149
  %v237 = vunpack.c.l.b16 %v150
  %v238 = vunpack.c.h.b16 %v150
  %v239 = vunpack.c.l.b16 %v151
  %v240 = vunpack.c.l.b16 %v152
  %v241 = vunpack.c.h.b16 %v152
  %v242 = vunpack.c.l.b16 %v153
  %v243 = vunpack.c.l.b16 %v154
  %v244 = vunpack.c.h.b16 %v154
  %v245 = vunpack.c.l.b16 %v155
  %v246 = vunpack.c.l.b16 %v156
  %v247 = vunpack.c.h.b16 %v156
  %v248 = vunpack.c.l.b16 %v157
  %v249 = vunpack.c.l.b16 %v158
  %v250 = vunpack.c.h.b16 %v158
  %v251 = vunpack.c.l.b16 %v159
  %v252 = vunpack.c.l.b16 %v160
  %v253 = vunpack.c.h.b16 %v160
  %v254 = vunpack.c.l.b16 %v161
  %v255 = vunpack.c.l.b16 %v162
  %v256 = vunpack.c.h.b16 %v162
  %v257 = vunpack.c.l.b16 %v163
  %v258 = vunpack.c.l.b16 %v164
  %v259 = vunpack.c.h.b16 %v164
  %v260 = vunpack.c.l.b16 %v165
  %v261 = vunpack.c.l.b16 %v166
  %v262 = vunpack.c.h.b16 %v166
  %v263 = vunpack.c.l.b16 %v167
  %v264 = vunpack.c.l.b16 %v168
  %v265 = vunpack.c.h.b16 %v168
  %v266 = vunpack.c.l.b16 %v169
  %v267 = vpack.c.b16 %v222, %v219
  %v268 = vpack.c.b16 %v223, %v220
  %v269 = vpack.c.b16 %v224, %v221
  %v270 = vpack.c.b16 %v228, %v225
  %v271 = vpack.c.b16 %v229, %v226
  %v272 = vpack.c.b16 %v230, %v227
  %v273 = vpack.c.b16 %v234, %v231
  %v274 = vpack.c.b16 %v235, %v232
  %v275 = vpack.c.b16 %v236, %v233
  %v276 = vpack.c.b16 %v240, %v237
  %v277 = vpack.c.b16 %v241, %v238
  %v278 = vpack.c.b16 %v242, %v239
  %v279 = vpack.c.b16 %v246, %v243
  %v280 = vpack.c.b16 %v247, %v244
  %v281 = vpack.c.b16 %v248, %v245
  %v282 = vpack.c.b16 %v252, %v249
  %v283 = vpack.c.b16 %v253, %v250
  %v284 = vpack.c.b16 %v254, %v251
  %v285 = vpack.c.b16 %v258, %v255
  %v286 = vpack.c.b16 %v259, %v256
  %v287 = vpack.c.b16 %v260, %v257
  %v288 = vpack.c.b16 %v264, %v261
  %v289 = vpack.c.b16 %v265, %v262
  %v290 = vpack.c.b16 %v266, %v263
  %315 = vmatprep.subr.bf16.mxu0 %v268
  %316 = vmatpush1.bf16.msra.mxu0 %v267
  %317 = vmatprep.subr.bf16.mxu0 %v271
  %318 = vmatpush1.bf16.msra.mxu0 %v270
  %319 = vmatprep.subr.bf16.mxu0 %v274
  %320 = vmatpush1.bf16.msra.mxu0 %v273
  %321 = vmatprep.subr.bf16.mxu0 %v277
  %322 = vmatpush1.bf16.msra.mxu0 %v276
  %323 = vmatprep.subr.bf16.mxu0 %v280
  %324 = vmatpush1.bf16.msra.mxu0 %v279
  %325 = vmatprep.subr.bf16.mxu0 %v283
  %326 = vmatpush1.bf16.msra.mxu0 %v282
  %327 = vmatprep.subr.bf16.mxu0 %v286
  %328 = vmatpush1.bf16.msra.mxu0 %v285
  %329 = vmatprep.subr.bf16.mxu0 %v289
  %330 = vmatpush1.bf16.msra.mxu0 %v288
  %331 = vmatprep.subr.bf16.mxu0 0
  %332 = vmatpush1.bf16.msra.mxu0 0
  %333 = vmatprep.subr.bf16.mxu0 0
  %334 = vmatpush1.bf16.msra.mxu0 0
  %335 = vmatprep.subr.bf16.mxu0 0
  %336 = vmatpush1.bf16.msra.mxu0 0
  %337 = vmatprep.subr.bf16.mxu0 0
  %338 = vmatpush1.bf16.msra.mxu0 0
  %339 = vmatprep.subr.bf16.mxu0 0
  %340 = vmatpush1.bf16.msra.mxu0 0
  %341 = vmatprep.subr.bf16.mxu0 0
  %342 = vmatpush1.bf16.msra.mxu0 0
  %343 = vmatprep.subr.bf16.mxu0 0
  %344 = vmatpush1.bf16.msra.mxu0 0
  %345 = vmatprep.subr.bf16.mxu0 0
  %346 = vmatpush1.bf16.msra.mxu0 0
  %347 = vmatprep.mubr.bf16.mxu0 0
  %348 = vmatmul.mubr.bf16.gmra.mrb[0].mxu0 %v137
  %v349 = vpop.f32.mrb[0].mxu0
  %v350 = vadd.f32 %v175, %v349
  %v351 = vpop.f32.mrb[0].mxu0
  %v352 = vadd.f32 %v179, %v351
  %v353 = vpop.f32.mrb[0].mxu0
  %v354 = vadd.f32 %v175, %v353
  %v355 = vpop.f32.mrb[0].mxu0
  %v356 = vadd.f32 %v179, %v355
  %357 = vdwg.mxu0
  %358 = vmatprep.subr.bf16.mxu0 0
  %359 = vmatpush1.bf16.msra.mxu0 %v269
  %360 = vmatprep.subr.bf16.mxu0 0
  %361 = vmatpush1.bf16.msra.mxu0 %v272
  %362 = vmatprep.subr.bf16.mxu0 0
  %363 = vmatpush1.bf16.msra.mxu0 %v275
  %364 = vmatprep.subr.bf16.mxu0 0
  %365 = vmatpush1.bf16.msra.mxu0 %v278
  %366 = vmatprep.subr.bf16.mxu0 0
  %367 = vmatpush1.bf16.msra.mxu0 %v281
  %368 = vmatprep.subr.bf16.mxu0 0
  %369 = vmatpush1.bf16.msra.mxu0 %v284
  %370 = vmatprep.subr.bf16.mxu0 0
  %371 = vmatpush1.bf16.msra.mxu0 %v287
  %372 = vmatprep.subr.bf16.mxu0 0
  %373 = vmatpush1.bf16.msra.mxu0 %v290
  %374 = vmatprep.subr.bf16.mxu0 0
  %375 = vmatpush1.bf16.msra.mxu0 0
  %376 = vmatprep.subr.bf16.mxu0 0
  %377 = vmatpush1.bf16.msra.mxu0 0
  %378 = vmatprep.subr.bf16.mxu0 0
  %379 = vmatpush1.bf16.msra.mxu0 0
  %380 = vmatprep.subr.bf16.mxu0 0
  %381 = vmatpush1.bf16.msra.mxu0 0
  %382 = vmatprep.subr.bf16.mxu0 0
  %383 = vmatpush1.bf16.msra.mxu0 0
  %384 = vmatprep.subr.bf16.mxu0 0
  %385 = vmatpush1.bf16.msra.mxu0 0
  %386 = vmatprep.subr.bf16.mxu0 0
  %387 = vmatpush1.bf16.msra.mxu0 0
  %388 = vmatprep.subr.bf16.mxu0 0
  %389 = vmatpush1.bf16.msra.mxu0 0
  %390 = vmatprep.mubr.bf16.mxu0 0
  %391 = vmatmul.mubr.bf16.gmra.mrb[0].mxu0 %v137
  %v392 = vpop.f32.mrb[0].mxu0
  %v393 = vadd.f32 %v183, %v392
  %v394 = vpop.f32.mrb[0].mxu0
  %v395 = vpop.f32.mrb[0].mxu0
  %v396 = vadd.f32 %v183, %v395
  %v397 = vpop.f32.mrb[0].mxu0
  %398 = vdwg.mxu0
  %v399 = vpack.c.bf16 %v350, %v350
  %v400 = vpack.c.bf16 %v354, %v354
  %v401 = vpack.c.bf16 %v352, %v352
  %v402 = vpack.c.bf16 %v356, %v356
  %403 = vmatprep.subr.bf16.mxu0 0
  %404 = vmatpush1.bf16.xpose.msra.mxu0 %v401
  %405 = vmatprep.subr.bf16.mxu0 0
  %406 = vmatpush1.bf16.xpose.msra.mxu0 0
  %407 = vmatprep.subr.bf16.mxu0 0
  %408 = vmatpush1.bf16.xpose.msra.mxu0 0
  %409 = vmatprep.subr.bf16.mxu0 0
  %410 = vmatpush1.bf16.xpose.msra.mxu0 0
  %411 = vmatprep.subr.bf16.mxu0 0
  %412 = vmatpush1.bf16.xpose.msra.mxu0 0
  %413 = vmatprep.subr.bf16.mxu0 0
  %414 = vmatpush1.bf16.xpose.msra.mxu0 0
  %415 = vmatprep.subr.bf16.mxu0 0
  %416 = vmatpush1.bf16.xpose.msra.mxu0 0
  %417 = vmatprep.subr.bf16.mxu0 0
  %418 = vmatpush1.bf16.xpose.msra.mxu0 0
  %419 = vmatprep.subr.bf16.mxu0 0
  %420 = vmatpush1.bf16.xpose.msra.mxu0 0
  %421 = vmatprep.subr.bf16.mxu0 0
  %422 = vmatpush1.bf16.xpose.msra.mxu0 0
  %423 = vmatprep.subr.bf16.mxu0 0
  %424 = vmatpush1.bf16.xpose.msra.mxu0 0
  %425 = vmatprep.subr.bf16.mxu0 0
  %426 = vmatpush1.bf16.xpose.msra.mxu0 0
  %427 = vmatprep.subr.bf16.mxu0 0
  %428 = vmatpush1.bf16.xpose.msra.mxu0 0
  %429 = vmatprep.subr.bf16.mxu0 0
  %430 = vmatpush1.bf16.xpose.msra.mxu0 0
  %431 = vmatprep.subr.bf16.mxu0 0
  %432 = vmatpush1.bf16.xpose.msra.mxu0 0
  %433 = vmatprep.subr.bf16.mxu0 0
  %434 = vmatpush1.bf16.xpose.msra.mxu0 0
  %435 = vmatprep.mubr.bf16.mxu0 0
  %436 = vmatmul.mubr.bf16.gmra.mrb[0].mxu0 %v399
  %v437 = vpop.f32.mrb[0].mxu0
  %v438 = vadd.f32 0.0, %v437
  %v439 = vpop.f32.mrb[0].mxu0
  %v440 = vpop.f32.mrb[0].mxu0
  %v441 = vpop.f32.mrb[0].mxu0
  %442 = vdwg.mxu0
  %443 = vmatprep.subr.bf16.mxu0 0
  %444 = vmatpush1.bf16.xpose.msra.mxu0 %v402
  %445 = vmatprep.subr.bf16.mxu0 0
  %446 = vmatpush1.bf16.xpose.msra.mxu0 0
  %447 = vmatprep.subr.bf16.mxu0 0
  %448 = vmatpush1.bf16.xpose.msra.mxu0 0
  %449 = vmatprep.subr.bf16.mxu0 0
  %450 = vmatpush1.bf16.xpose.msra.mxu0 0
  %451 = vmatprep.subr.bf16.mxu0 0
  %452 = vmatpush1.bf16.xpose.msra.mxu0 0
  %453 = vmatprep.subr.bf16.mxu0 0
  %454 = vmatpush1.bf16.xpose.msra.mxu0 0
  %455 = vmatprep.subr.bf16.mxu0 0
  %456 = vmatpush1.bf16.xpose.msra.mxu0 0
  %457 = vmatprep.subr.bf16.mxu0 0
  %458 = vmatpush1.bf16.xpose.msra.mxu0 0
  %459 = vmatprep.subr.bf16.mxu0 0
  %460 = vmatpush1.bf16.xpose.msra.mxu0 0
  %461 = vmatprep.subr.bf16.mxu0 0
  %462 = vmatpush1.bf16.xpose.msra.mxu0 0
  %463 = vmatprep.subr.bf16.mxu0 0
  %464 = vmatpush1.bf16.xpose.msra.mxu0 0
  %465 = vmatprep.subr.bf16.mxu0 0
  %466 = vmatpush1.bf16.xpose.msra.mxu0 0
  %467 = vmatprep.subr.bf16.mxu0 0
  %468 = vmatpush1.bf16.xpose.msra.mxu0 0
  %469 = vmatprep.subr.bf16.mxu0 0
  %470 = vmatpush1.bf16.xpose.msra.mxu0 0
  %471 = vmatprep.subr.bf16.mxu0 0
  %472 = vmatpush1.bf16.xpose.msra.mxu0 0
  %473 = vmatprep.subr.bf16.mxu0 0
  %474 = vmatpush1.bf16.xpose.msra.mxu0 0
  %475 = vmatprep.mubr.bf16.mxu0 0
  %476 = vmatmul.mubr.bf16.gmra.mrb[0].mxu0 %v400
  %v477 = vpop.f32.mrb[0].mxu0
  %v478 = vadd.f32 0.0, %v477
  %v479 = vpop.f32.mrb[0].mxu0
  %v480 = vpop.f32.mrb[0].mxu0
  %v481 = vpop.f32.mrb[0].mxu0
  %482 = vdwg.mxu0
  %v483 = vmul.f32 %v438, 0.088388346
  %v484 = vmul.f32 %v478, 0.088388346
  %v485 = vsel %vm117, %v483, -1e+09
  %v486 = vsel %vm118, %v484, -1e+09
  %vm487 = vcmask 64512
  %v488 = vsel %vm487, %v485, -inf
  %489 = vmax.xlane.f32.xlu0 %v488
  %v490 = vpop.xlane.xlu0 %489
  %v491 = vsel %vm487, %v486, -inf
  %492 = vmax.xlane.f32.xlu0 %v491
  %v493 = vpop.xlane.xlu0 %492
  %v494 = vsub.f32 %v485, %v490
  %v495 = vsub.f32 %v486, %v493
  %v496 = vmul.f32 %v494, 1.442695
  %v497 = vpow.pop %v496
  %v498 = vmul.f32 %v495, 1.442695
  %v499 = vpow.pop %v498
  %v500 = vsel %vm487, %v497, 0.0
  %501 = vadd.xlane.f32.xlu0 %v500
  %v502 = vpop.xlane.xlu0 %501
  %v503 = vsel %vm487, %v499, 0.0
  %504 = vadd.xlane.f32.xlu0 %v503
  %v505 = vpop.xlane.xlu0 %504
  %v506 = vrcp.pop %v502
  %v507 = vrcp.pop %v505
  %v508 = vmul.f32 %v497, %v506
  %v509 = vmul.f32 %v499, %v507
  %v510 = vpack.c.bf16 %v508, %v508
  %v511 = vpack.c.bf16 %v509, %v509
  %v512 = vpack.c.bf16 %v393, %v393
  %v513 = vpack.c.bf16 %v396, %v396
  %v515 = vsel %vm487, %v510, 0
  %vm517 = vcmask 1043456
  %v519 = vsel %vm517, %v512, 0
  %521 = vmatprep.subr.bf16.mxu0 0
  %522 = vmatpush1.bf16.msra.mxu0 %v519
  %523 = vmatprep.subr.bf16.mxu0 0
  %524 = vmatpush1.bf16.msra.mxu0 0
  %525 = vmatprep.subr.bf16.mxu0 0
  %526 = vmatpush1.bf16.msra.mxu0 0
  %527 = vmatprep.subr.bf16.mxu0 0
  %528 = vmatpush1.bf16.msra.mxu0 0
  %529 = vmatprep.subr.bf16.mxu0 0
  %530 = vmatpush1.bf16.msra.mxu0 0
  %531 = vmatprep.subr.bf16.mxu0 0
  %532 = vmatpush1.bf16.msra.mxu0 0
  %533 = vmatprep.subr.bf16.mxu0 0
  %534 = vmatpush1.bf16.msra.mxu0 0
  %535 = vmatprep.subr.bf16.mxu0 0
  %536 = vmatpush1.bf16.msra.mxu0 0
  %537 = vmatprep.subr.bf16.mxu0 0
  %538 = vmatpush1.bf16.msra.mxu0 0
  %539 = vmatprep.subr.bf16.mxu0 0
  %540 = vmatpush1.bf16.msra.mxu0 0
  %541 = vmatprep.subr.bf16.mxu0 0
  %542 = vmatpush1.bf16.msra.mxu0 0
  %543 = vmatprep.subr.bf16.mxu0 0
  %544 = vmatpush1.bf16.msra.mxu0 0
  %545 = vmatprep.subr.bf16.mxu0 0
  %546 = vmatpush1.bf16.msra.mxu0 0
  %547 = vmatprep.subr.bf16.mxu0 0
  %548 = vmatpush1.bf16.msra.mxu0 0
  %549 = vmatprep.subr.bf16.mxu0 0
  %550 = vmatpush1.bf16.msra.mxu0 0
  %551 = vmatprep.subr.bf16.mxu0 0
  %552 = vmatpush1.bf16.msra.mxu0 0
  %553 = vmatprep.mubr.bf16.mxu0 0
  %554 = vmatmul.mubr.bf16.gmra.mrb[0].mxu0 %v515
  %v555 = vpop.f32.mrb[0].mxu0
  %v556 = vadd.f32 0.0, %v555
  %v557 = vpop.f32.mrb[0].mxu0
  %v558 = vpop.f32.mrb[0].mxu0
  %v559 = vpop.f32.mrb[0].mxu0
  %560 = vdwg.mxu0
  %v562 = vsel %vm487, %v511, 0
  %v565 = vsel %vm517, %v513, 0
  %567 = vmatprep.subr.bf16.mxu0 0
  %568 = vmatpush1.bf16.msra.mxu0 %v565
  %569 = vmatprep.subr.bf16.mxu0 0
  %570 = vmatpush1.bf16.msra.mxu0 0
  %571 = vmatprep.subr.bf16.mxu0 0
  %572 = vmatpush1.bf16.msra.mxu0 0
  %573 = vmatprep.subr.bf16.mxu0 0
  %574 = vmatpush1.bf16.msra.mxu0 0
  %575 = vmatprep.subr.bf16.mxu0 0
  %576 = vmatpush1.bf16.msra.mxu0 0
  %577 = vmatprep.subr.bf16.mxu0 0
  %578 = vmatpush1.bf16.msra.mxu0 0
  %579 = vmatprep.subr.bf16.mxu0 0
  %580 = vmatpush1.bf16.msra.mxu0 0
  %581 = vmatprep.subr.bf16.mxu0 0
  %582 = vmatpush1.bf16.msra.mxu0 0
  %583 = vmatprep.subr.bf16.mxu0 0
  %584 = vmatpush1.bf16.msra.mxu0 0
  %585 = vmatprep.subr.bf16.mxu0 0
  %586 = vmatpush1.bf16.msra.mxu0 0
  %587 = vmatprep.subr.bf16.mxu0 0
  %588 = vmatpush1.bf16.msra.mxu0 0
  %589 = vmatprep.subr.bf16.mxu0 0
  %590 = vmatpush1.bf16.msra.mxu0 0
  %591 = vmatprep.subr.bf16.mxu0 0
  %592 = vmatpush1.bf16.msra.mxu0 0
  %593 = vmatprep.subr.bf16.mxu0 0
  %594 = vmatpush1.bf16.msra.mxu0 0
  %595 = vmatprep.subr.bf16.mxu0 0
  %596 = vmatpush1.bf16.msra.mxu0 0
  %597 = vmatprep.subr.bf16.mxu0 0
  %598 = vmatpush1.bf16.msra.mxu0 0
  %599 = vmatprep.mubr.bf16.mxu0 0
  %600 = vmatmul.mubr.bf16.gmra.mrb[0].mxu0 %v562
  %v601 = vpop.f32.mrb[0].mxu0
  %v602 = vadd.f32 0.0, %v601
  %v603 = vpop.f32.mrb[0].mxu0
  %v604 = vpop.f32.mrb[0].mxu0
  %v605 = vpop.f32.mrb[0].mxu0
  %606 = vdwg.mxu0
  %v607 = vpack.c.bf16 %v602, %v556
  %v608 = vld [vmem:[%s7] sm:$0xf]
  %v609 = vld [vmem:[%s7 + $0x4] sm:$0xf]
  %v610 = vld [vmem:[%s7 + $0x8] sm:$0xf]
  %v611 = vld [vmem:[%s7 + $0xc] sm:$0xf]
  %v612 = vld [vmem:[%s7 + $0x10] sm:$0xf]
  %v613 = vld [vmem:[%s7 + $0x14] sm:$0xf]
  %v614 = vld [vmem:[%s7 + $0x18] sm:$0xf]
  %v615 = vld [vmem:[%s7 + $0x1c] sm:$0xf]
  %v616 = vld [vmem:[%s7 + $0x20] sm:$0xf]
  %v617 = vld [vmem:[%s7 + $0x24] sm:$0xf]
  %v618 = vld [vmem:[%s7 + $0x28] sm:$0xf]
  %v619 = vld [vmem:[%s7 + $0x2c] sm:$0xf]
  %v620 = vld [vmem:[%s7 + $0x30] sm:$0xf]
  %v621 = vld [vmem:[%s7 + $0x34] sm:$0xf]
  %v622 = vld [vmem:[%s7 + $0x38] sm:$0xf]
  %v623 = vld [vmem:[%s7 + $0x3c] sm:$0xf]
  %v624 = vld [vmem:[%s8] sm:$0x1]
  %v626 = vlaneseq
  %v627 = vshrl.u32 %v626, 7
  %v628 = vsub.s32 0, %v627
  %v629 = vrot.slane %v624, %v628
  %v647 = vunpack.c.l.b16 %v608
  %v648 = vunpack.c.l.b16 %v609
  %v649 = vunpack.c.l.b16 %v610
  %v650 = vunpack.c.l.b16 %v611
  %v651 = vunpack.c.l.b16 %v612
  %v652 = vunpack.c.l.b16 %v613
  %v653 = vunpack.c.l.b16 %v614
  %v654 = vunpack.c.l.b16 %v615
  %v655 = vunpack.c.l.b16 %v616
  %v656 = vunpack.c.l.b16 %v617
  %v657 = vunpack.c.l.b16 %v618
  %v658 = vunpack.c.l.b16 %v619
  %v659 = vunpack.c.l.b16 %v620
  %v660 = vunpack.c.l.b16 %v621
  %v661 = vunpack.c.l.b16 %v622
  %v662 = vunpack.c.l.b16 %v623
  %v663 = vpack.c.b16 %v648, %v647
  %v664 = vpack.c.b16 %v650, %v649
  %v665 = vpack.c.b16 %v652, %v651
  %v666 = vpack.c.b16 %v654, %v653
  %v667 = vpack.c.b16 %v656, %v655
  %v668 = vpack.c.b16 %v658, %v657
  %v669 = vpack.c.b16 %v660, %v659
  %v670 = vpack.c.b16 %v662, %v661
  %679 = vmatprep.subr.bf16.mxu0 0
  %680 = vmatpush1.bf16.msra.mxu0 %v663
  %681 = vmatprep.subr.bf16.mxu0 0
  %682 = vmatpush1.bf16.msra.mxu0 %v664
  %683 = vmatprep.subr.bf16.mxu0 0
  %684 = vmatpush1.bf16.msra.mxu0 %v665
  %685 = vmatprep.subr.bf16.mxu0 0
  %686 = vmatpush1.bf16.msra.mxu0 %v666
  %687 = vmatprep.subr.bf16.mxu0 0
  %688 = vmatpush1.bf16.msra.mxu0 %v667
  %689 = vmatprep.subr.bf16.mxu0 0
  %690 = vmatpush1.bf16.msra.mxu0 %v668
  %691 = vmatprep.subr.bf16.mxu0 0
  %692 = vmatpush1.bf16.msra.mxu0 %v669
  %693 = vmatprep.subr.bf16.mxu0 0
  %694 = vmatpush1.bf16.msra.mxu0 %v670
  %695 = vmatprep.subr.bf16.mxu0 0
  %696 = vmatpush1.bf16.msra.mxu0 0
  %697 = vmatprep.subr.bf16.mxu0 0
  %698 = vmatpush1.bf16.msra.mxu0 0
  %699 = vmatprep.subr.bf16.mxu0 0
  %700 = vmatpush1.bf16.msra.mxu0 0
  %701 = vmatprep.subr.bf16.mxu0 0
  %702 = vmatpush1.bf16.msra.mxu0 0
  %703 = vmatprep.subr.bf16.mxu0 0
  %704 = vmatpush1.bf16.msra.mxu0 0
  %705 = vmatprep.subr.bf16.mxu0 0
  %706 = vmatpush1.bf16.msra.mxu0 0
  %707 = vmatprep.subr.bf16.mxu0 0
  %708 = vmatpush1.bf16.msra.mxu0 0
  %709 = vmatprep.subr.bf16.mxu0 0
  %710 = vmatpush1.bf16.msra.mxu0 0
  %711 = vmatprep.mubr.bf16.mxu0 0
  %712 = vmatmul.mubr.bf16.gmra.mrb[0].mxu0 %v607
  %v713 = vpop.f32.mrb[0].mxu0
  %v714 = vadd.f32 %v629, %v713
  %v715 = vpop.f32.mrb[0].mxu0
  %v716 = vpop.f32.mrb[0].mxu0
  %v717 = vadd.f32 %v629, %v716
  %v718 = vpop.f32.mrb[0].mxu0
  %719 = vdwg.mxu0
  %v720 = vadd.f32 %v86, %v714
  %v721 = vadd.f32 %v87, %v717
  %v722 = vld [vmem:[%s9] sm:$0x1]
  %v723 = vld [vmem:[%s10] sm:$0x1]
  %724 = vadd.xlane.f32.xlu0 %v720
  %v725 = vpop.xlane.xlu0 %724
  %726 = vadd.xlane.f32.xlu0 %v721
  %v727 = vpop.xlane.xlu0 %726
  %v728 = vrcp.pop 128.0
  %v729 = vmul.f32 %v725, %v728
  %v730 = vmul.f32 %v727, %v728
  %v731 = vsub.f32 %v720, %v729
  %v732 = vsub.f32 %v721, %v730
  %v733 = vmul.f32 %v731, %v731
  %v734 = vmul.f32 %v732, %v732
  %735 = vadd.xlane.f32.xlu0 %v733
  %v736 = vpop.xlane.xlu0 %735
  %737 = vadd.xlane.f32.xlu0 %v734
  %v738 = vpop.xlane.xlu0 %737
  %v739 = vmul.f32 %v736, %v728
  %v740 = vmul.f32 %v738, %v728
  %v741 = vadd.f32 %v739, 1e-05
  %v742 = vadd.f32 %v740, 1e-05
  %v743 = vrsqrt.pop %v741
  %v744 = vrsqrt.pop %v742
  %v745 = vmul.f32 %v731, %v743
  %v746 = vmul.f32 %v732, %v744
  %v748 = vlaneseq
  %v749 = vshrl.u32 %v748, 7
  %v750 = vsub.s32 0, %v749
  %v751 = vrot.slane %v722, %v750
  %v753 = vmul.f32 %v745, %v751
  %v754 = vmul.f32 %v746, %v751
  %v756 = vlaneseq
  %v757 = vshrl.u32 %v756, 7
  %v758 = vsub.s32 0, %v757
  %v759 = vrot.slane %v723, %v758
  %v761 = vadd.f32 %v753, %v759
  %v762 = vadd.f32 %v754, %v759
  %v763 = vpack.c.bf16 %v762, %v761
  %v764 = vld [vmem:[%s11] sm:$0xf]
  %v765 = vld [vmem:[%s11 + $0x4] sm:$0xf]
  %v766 = vld [vmem:[%s11 + $0x8] sm:$0xf]
  %v767 = vld [vmem:[%s11 + $0xc] sm:$0xf]
  %v768 = vld [vmem:[%s11 + $0x10] sm:$0xf]
  %v769 = vld [vmem:[%s11 + $0x14] sm:$0xf]
  %v770 = vld [vmem:[%s11 + $0x18] sm:$0xf]
  %v771 = vld [vmem:[%s11 + $0x1c] sm:$0xf]
  %v772 = vld [vmem:[%s11 + $0x20] sm:$0xf]
  %v773 = vld [vmem:[%s11 + $0x24] sm:$0xf]
  %v774 = vld [vmem:[%s11 + $0x28] sm:$0xf]
  %v775 = vld [vmem:[%s11 + $0x2c] sm:$0xf]
  %v776 = vld [vmem:[%s11 + $0x30] sm:$0xf]
  %v777 = vld [vmem:[%s11 + $0x34] sm:$0xf]
  %v778 = vld [vmem:[%s11 + $0x38] sm:$0xf]
  %v779 = vld [vmem:[%s11 + $0x3c] sm:$0xf]
  %v780 = vld [vmem:[%s12] sm:$0x1]
  %v782 = vlaneseq
  %v783 = vshrl.u32 %v782, 7
  %v784 = vsub.s32 0, %v783
  %v785 = vrot.slane %v780, %v784
  %v803 = vunpack.c.l.b16 %v764
  %v804 = vunpack.c.l.b16 %v765
  %v805 = vunpack.c.l.b16 %v766
  %v806 = vunpack.c.l.b16 %v767
  %v807 = vunpack.c.l.b16 %v768
  %v808 = vunpack.c.l.b16 %v769
  %v809 = vunpack.c.l.b16 %v770
  %v810 = vunpack.c.l.b16 %v771
  %v811 = vunpack.c.l.b16 %v772
  %v812 = vunpack.c.l.b16 %v773
  %v813 = vunpack.c.l.b16 %v774
  %v814 = vunpack.c.l.b16 %v775
  %v815 = vunpack.c.l.b16 %v776
  %v816 = vunpack.c.l.b16 %v777
  %v817 = vunpack.c.l.b16 %v778
  %v818 = vunpack.c.l.b16 %v779
  %v819 = vpack.c.b16 %v804, %v803
  %v820 = vpack.c.b16 %v806, %v805
  %v821 = vpack.c.b16 %v808, %v807
  %v822 = vpack.c.b16 %v810, %v809
  %v823 = vpack.c.b16 %v812, %v811
  %v824 = vpack.c.b16 %v814, %v813
  %v825 = vpack.c.b16 %v816, %v815
  %v826 = vpack.c.b16 %v818, %v817
  %835 = vmatprep.subr.bf16.mxu0 0
  %836 = vmatpush1.bf16.msra.mxu0 %v819
  %837 = vmatprep.subr.bf16.mxu0 0
  %838 = vmatpush1.bf16.msra.mxu0 %v820
  %839 = vmatprep.subr.bf16.mxu0 0
  %840 = vmatpush1.bf16.msra.mxu0 %v821
  %841 = vmatprep.subr.bf16.mxu0 0
  %842 = vmatpush1.bf16.msra.mxu0 %v822
  %843 = vmatprep.subr.bf16.mxu0 0
  %844 = vmatpush1.bf16.msra.mxu0 %v823
  %845 = vmatprep.subr.bf16.mxu0 0
  %846 = vmatpush1.bf16.msra.mxu0 %v824
  %847 = vmatprep.subr.bf16.mxu0 0
  %848 = vmatpush1.bf16.msra.mxu0 %v825
  %849 = vmatprep.subr.bf16.mxu0 0
  %850 = vmatpush1.bf16.msra.mxu0 %v826
  %851 = vmatprep.subr.bf16.mxu0 0
  %852 = vmatpush1.bf16.msra.mxu0 0
  %853 = vmatprep.subr.bf16.mxu0 0
  %854 = vmatpush1.bf16.msra.mxu0 0
  %855 = vmatprep.subr.bf16.mxu0 0
  %856 = vmatpush1.bf16.msra.mxu0 0
  %857 = vmatprep.subr.bf16.mxu0 0
  %858 = vmatpush1.bf16.msra.mxu0 0
  %859 = vmatprep.subr.bf16.mxu0 0
  %860 = vmatpush1.bf16.msra.mxu0 0
  %861 = vmatprep.subr.bf16.mxu0 0
  %862 = vmatpush1.bf16.msra.mxu0 0
  %863 = vmatprep.subr.bf16.mxu0 0
  %864 = vmatpush1.bf16.msra.mxu0 0
  %865 = vmatprep.subr.bf16.mxu0 0
  %866 = vmatpush1.bf16.msra.mxu0 0
  %867 = vmatprep.mubr.bf16.mxu0 0
  %868 = vmatmul.mubr.bf16.gmra.mrb[0].mxu0 %v763
  %v869 = vpop.f32.mrb[0].mxu0
  %v870 = vadd.f32 %v785, %v869
  %v871 = vpop.f32.mrb[0].mxu0
  %v872 = vpop.f32.mrb[0].mxu0
  %v873 = vadd.f32 %v785, %v872
  %v874 = vpop.f32.mrb[0].mxu0
  %875 = vdwg.mxu0
  %v876 = vld [vmem:[%s2] sm:$0xf]
  %v877 = vld [vmem:[%s2 + $0x4] sm:$0xf]
  %v878 = vld [vmem:[%s13] sm:$0xff]
  %v879 = vld [vmem:[%s13 + $0x8] sm:$0xff]
  %v880 = vld [vmem:[%s13 + $0x10] sm:$0xff]
  %v881 = vld [vmem:[%s13 + $0x18] sm:$0xff]
  %v882 = vld [vmem:[%s13 + $0x20] sm:$0xff]
  %v883 = vld [vmem:[%s13 + $0x28] sm:$0xff]
  %v884 = vld [vmem:[%s13 + $0x30] sm:$0xff]
  %v885 = vld [vmem:[%s13 + $0x38] sm:$0xff]
  %v886 = vld [vmem:[%s13 + $0x40] sm:$0xff]
  %v887 = vld [vmem:[%s13 + $0x48] sm:$0xff]
  %v888 = vld [vmem:[%s13 + $0x50] sm:$0xff]
  %v889 = vld [vmem:[%s13 + $0x58] sm:$0xff]
  %v890 = vld [vmem:[%s13 + $0x60] sm:$0xff]
  %v891 = vld [vmem:[%s13 + $0x68] sm:$0xff]
  %v892 = vld [vmem:[%s13 + $0x70] sm:$0xff]
  %v893 = vld [vmem:[%s13 + $0x78] sm:$0xff]
  %v894 = vld [vmem:[%s14] sm:$0x3]
  %v896 = vlaneseq
  %v897 = vshrl.u32 %v896, 7
  %v898 = vsub.s32 0, %v897
  %v899 = vrot.slane %v894, %v898
  %v900 = vlaneseq
  %v901 = vshrl.u32 %v900, 7
  %v902 = vsub.s32 1, %v901
  %v903 = vrot.slane %v894, %v902
  %v908 = vunpack.c.l.b16 %v876
  %v909 = vunpack.c.l.b16 %v877
  %v910 = vpack.c.b16 %v909, %v908
  %v928 = vunpack.c.l.b16 %v878
  %v929 = vunpack.c.h.b16 %v878
  %v930 = vunpack.c.l.b16 %v879
  %v931 = vunpack.c.h.b16 %v879
  %v932 = vunpack.c.l.b16 %v880
  %v933 = vunpack.c.h.b16 %v880
  %v934 = vunpack.c.l.b16 %v881
  %v935 = vunpack.c.h.b16 %v881
  %v936 = vunpack.c.l.b16 %v882
  %v937 = vunpack.c.h.b16 %v882
  %v938 = vunpack.c.l.b16 %v883
  %v939 = vunpack.c.h.b16 %v883
  %v940 = vunpack.c.l.b16 %v884
  %v941 = vunpack.c.h.b16 %v884
  %v942 = vunpack.c.l.b16 %v885
  %v943 = vunpack.c.h.b16 %v885
  %v944 = vunpack.c.l.b16 %v886
  %v945 = vunpack.c.h.b16 %v886
  %v946 = vunpack.c.l.b16 %v887
  %v947 = vunpack.c.h.b16 %v887
  %v948 = vunpack.c.l.b16 %v888
  %v949 = vunpack.c.h.b16 %v888
  %v950 = vunpack.c.l.b16 %v889
  %v951 = vunpack.c.h.b16 %v889
  %v952 = vunpack.c.l.b16 %v890
  %v953 = vunpack.c.h.b16 %v890
  %v954 = vunpack.c.l.b16 %v891
  %v955 = vunpack.c.h.b16 %v891
  %v956 = vunpack.c.l.b16 %v892
  %v957 = vunpack.c.h.b16 %v892
  %v958 = vunpack.c.l.b16 %v893
  %v959 = vunpack.c.h.b16 %v893
  %v960 = vpack.c.b16 %v930, %v928
  %v961 = vpack.c.b16 %v931, %v929
  %v962 = vpack.c.b16 %v934, %v932
  %v963 = vpack.c.b16 %v935, %v933
  %v964 = vpack.c.b16 %v938, %v936
  %v965 = vpack.c.b16 %v939, %v937
  %v966 = vpack.c.b16 %v942, %v940
  %v967 = vpack.c.b16 %v943, %v941
  %v968 = vpack.c.b16 %v946, %v944
  %v969 = vpack.c.b16 %v947, %v945
  %v970 = vpack.c.b16 %v950, %v948
  %v971 = vpack.c.b16 %v951, %v949
  %v972 = vpack.c.b16 %v954, %v952
  %v973 = vpack.c.b16 %v955, %v953
  %v974 = vpack.c.b16 %v958, %v956
  %v975 = vpack.c.b16 %v959, %v957
  %992 = vmatprep.subr.bf16.mxu0 %v961
  %993 = vmatpush1.bf16.msra.mxu0 %v960
  %994 = vmatprep.subr.bf16.mxu0 %v963
  %995 = vmatpush1.bf16.msra.mxu0 %v962
  %996 = vmatprep.subr.bf16.mxu0 %v965
  %997 = vmatpush1.bf16.msra.mxu0 %v964
  %998 = vmatprep.subr.bf16.mxu0 %v967
  %999 = vmatpush1.bf16.msra.mxu0 %v966
  %1000 = vmatprep.subr.bf16.mxu0 %v969
  %1001 = vmatpush1.bf16.msra.mxu0 %v968
  %1002 = vmatprep.subr.bf16.mxu0 %v971
  %1003 = vmatpush1.bf16.msra.mxu0 %v970
  %1004 = vmatprep.subr.bf16.mxu0 %v973
  %1005 = vmatpush1.bf16.msra.mxu0 %v972
  %1006 = vmatprep.subr.bf16.mxu0 %v975
  %1007 = vmatpush1.bf16.msra.mxu0 %v974
  %1008 = vmatprep.subr.bf16.mxu0 0
  %1009 = vmatpush1.bf16.msra.mxu0 0
  %1010 = vmatprep.subr.bf16.mxu0 0
  %1011 = vmatpush1.bf16.msra.mxu0 0
  %1012 = vmatprep.subr.bf16.mxu0 0
  %1013 = vmatpush1.bf16.msra.mxu0 0
  %1014 = vmatprep.subr.bf16.mxu0 0
  %1015 = vmatpush1.bf16.msra.mxu0 0
  %1016 = vmatprep.subr.bf16.mxu0 0
  %1017 = vmatpush1.bf16.msra.mxu0 0
  %1018 = vmatprep.subr.bf16.mxu0 0
  %1019 = vmatpush1.bf16.msra.mxu0 0
  %1020 = vmatprep.subr.bf16.mxu0 0
  %1021 = vmatpush1.bf16.msra.mxu0 0
  %1022 = vmatprep.subr.bf16.mxu0 0
  %1023 = vmatpush1.bf16.msra.mxu0 0
  %1024 = vmatprep.mubr.bf16.mxu0 0
  %1025 = vmatmul.mubr.bf16.gmra.mrb[0].mxu0 %v910
  %v1026 = vpop.f32.mrb[0].mxu0
  %v1027 = vadd.f32 %v899, %v1026
  %v1028 = vpop.f32.mrb[0].mxu0
  %v1029 = vadd.f32 %v903, %v1028
  %v1030 = vpop.f32.mrb[0].mxu0
  %v1031 = vadd.f32 %v899, %v1030
  %v1032 = vpop.f32.mrb[0].mxu0
  %v1033 = vadd.f32 %v903, %v1032
  %1034 = vdwg.mxu0
  %v1035 = vpack.c.bf16 %v870, %v870
  %v1036 = vpack.c.bf16 %v873, %v873
  %v1037 = vpack.c.bf16 %v1027, %v1027
  %v1038 = vpack.c.bf16 %v1031, %v1031
  %1039 = vmatprep.subr.bf16.mxu0 0
  %1040 = vmatpush1.bf16.xpose.msra.mxu0 %v1037
  %1041 = vmatprep.subr.bf16.mxu0 0
  %1042 = vmatpush1.bf16.xpose.msra.mxu0 0
  %1043 = vmatprep.subr.bf16.mxu0 0
  %1044 = vmatpush1.bf16.xpose.msra.mxu0 0
  %1045 = vmatprep.subr.bf16.mxu0 0
  %1046 = vmatpush1.bf16.xpose.msra.mxu0 0
  %1047 = vmatprep.subr.bf16.mxu0 0
  %1048 = vmatpush1.bf16.xpose.msra.mxu0 0
  %1049 = vmatprep.subr.bf16.mxu0 0
  %1050 = vmatpush1.bf16.xpose.msra.mxu0 0
  %1051 = vmatprep.subr.bf16.mxu0 0
  %1052 = vmatpush1.bf16.xpose.msra.mxu0 0
  %1053 = vmatprep.subr.bf16.mxu0 0
  %1054 = vmatpush1.bf16.xpose.msra.mxu0 0
  %1055 = vmatprep.subr.bf16.mxu0 0
  %1056 = vmatpush1.bf16.xpose.msra.mxu0 0
  %1057 = vmatprep.subr.bf16.mxu0 0
  %1058 = vmatpush1.bf16.xpose.msra.mxu0 0
  %1059 = vmatprep.subr.bf16.mxu0 0
  %1060 = vmatpush1.bf16.xpose.msra.mxu0 0
  %1061 = vmatprep.subr.bf16.mxu0 0
  %1062 = vmatpush1.bf16.xpose.msra.mxu0 0
  %1063 = vmatprep.subr.bf16.mxu0 0
  %1064 = vmatpush1.bf16.xpose.msra.mxu0 0
  %1065 = vmatprep.subr.bf16.mxu0 0
  %1066 = vmatpush1.bf16.xpose.msra.mxu0 0
  %1067 = vmatprep.subr.bf16.mxu0 0
  %1068 = vmatpush1.bf16.xpose.msra.mxu0 0
  %1069 = vmatprep.subr.bf16.mxu0 0
  %1070 = vmatpush1.bf16.xpose.msra.mxu0 0
  %1071 = vmatprep.mubr.bf16.mxu0 0
  %1072 = vmatmul.mubr.bf16.gmra.mrb[0].mxu0 %v1035
  %v1073 = vpop.f32.mrb[0].mxu0
  %v1074 = vadd.f32 0.0, %v1073
  %v1075 = vpop.f32.mrb[0].mxu0
  %v1076 = vpop.f32.mrb[0].mxu0
  %v1077 = vpop.f32.mrb[0].mxu0
  %1078 = vdwg.mxu0
  %1079 = vmatprep.subr.bf16.mxu0 0
  %1080 = vmatpush1.bf16.xpose.msra.mxu0 %v1038
  %1081 = vmatprep.subr.bf16.mxu0 0
  %1082 = vmatpush1.bf16.xpose.msra.mxu0 0
  %1083 = vmatprep.subr.bf16.mxu0 0
  %1084 = vmatpush1.bf16.xpose.msra.mxu0 0
  %1085 = vmatprep.subr.bf16.mxu0 0
  %1086 = vmatpush1.bf16.xpose.msra.mxu0 0
  %1087 = vmatprep.subr.bf16.mxu0 0
  %1088 = vmatpush1.bf16.xpose.msra.mxu0 0
  %1089 = vmatprep.subr.bf16.mxu0 0
  %1090 = vmatpush1.bf16.xpose.msra.mxu0 0
  %1091 = vmatprep.subr.bf16.mxu0 0
  %1092 = vmatpush1.bf16.xpose.msra.mxu0 0
  %1093 = vmatprep.subr.bf16.mxu0 0
  %1094 = vmatpush1.bf16.xpose.msra.mxu0 0
  %1095 = vmatprep.subr.bf16.mxu0 0
  %1096 = vmatpush1.bf16.xpose.msra.mxu0 0
  %1097 = vmatprep.subr.bf16.mxu0 0
  %1098 = vmatpush1.bf16.xpose.msra.mxu0 0
  %1099 = vmatprep.subr.bf16.mxu0 0
  %1100 = vmatpush1.bf16.xpose.msra.mxu0 0
  %1101 = vmatprep.subr.bf16.mxu0 0
  %1102 = vmatpush1.bf16.xpose.msra.mxu0 0
  %1103 = vmatprep.subr.bf16.mxu0 0
  %1104 = vmatpush1.bf16.xpose.msra.mxu0 0
  %1105 = vmatprep.subr.bf16.mxu0 0
  %1106 = vmatpush1.bf16.xpose.msra.mxu0 0
  %1107 = vmatprep.subr.bf16.mxu0 0
  %1108 = vmatpush1.bf16.xpose.msra.mxu0 0
  %1109 = vmatprep.subr.bf16.mxu0 0
  %1110 = vmatpush1.bf16.xpose.msra.mxu0 0
  %1111 = vmatprep.mubr.bf16.mxu0 0
  %1112 = vmatmul.mubr.bf16.gmra.mrb[0].mxu0 %v1036
  %v1113 = vpop.f32.mrb[0].mxu0
  %v1114 = vadd.f32 0.0, %v1113
  %v1115 = vpop.f32.mrb[0].mxu0
  %v1116 = vpop.f32.mrb[0].mxu0
  %v1117 = vpop.f32.mrb[0].mxu0
  %1118 = vdwg.mxu0
  %v1119 = vmul.f32 %v1074, 0.088388346
  %v1120 = vmul.f32 %v1114, 0.088388346
  %v1121 = vsel %vm135, %v1119, -1e+09
  %v1122 = vsel %vm136, %v1120, -1e+09
  %v1123 = vsel %vm487, %v1121, -inf
  %1124 = vmax.xlane.f32.xlu0 %v1123
  %v1125 = vpop.xlane.xlu0 %1124
  %v1126 = vsel %vm487, %v1122, -inf
  %1127 = vmax.xlane.f32.xlu0 %v1126
  %v1128 = vpop.xlane.xlu0 %1127
  %v1129 = vsub.f32 %v1121, %v1125
  %v1130 = vsub.f32 %v1122, %v1128
  %v1131 = vmul.f32 %v1129, 1.442695
  %v1132 = vpow.pop %v1131
  %v1133 = vmul.f32 %v1130, 1.442695
  %v1134 = vpow.pop %v1133
  %v1135 = vsel %vm487, %v1132, 0.0
  %1136 = vadd.xlane.f32.xlu0 %v1135
  %v1137 = vpop.xlane.xlu0 %1136
  %v1138 = vsel %vm487, %v1134, 0.0
  %1139 = vadd.xlane.f32.xlu0 %v1138
  %v1140 = vpop.xlane.xlu0 %1139
  %v1141 = vrcp.pop %v1137
  %v1142 = vrcp.pop %v1140
  %v1143 = vmul.f32 %v1132, %v1141
  %v1144 = vmul.f32 %v1134, %v1142
  %v1145 = vpack.c.bf16 %v1143, %v1143
  %v1146 = vpack.c.bf16 %v1144, %v1144
  %v1147 = vpack.c.bf16 %v1029, %v1029
  %v1148 = vpack.c.bf16 %v1033, %v1033
  %v1150 = vsel %vm487, %v1145, 0
  %v1153 = vsel %vm517, %v1147, 0
  %1155 = vmatprep.subr.bf16.mxu0 0
  %1156 = vmatpush1.bf16.msra.mxu0 %v1153
  %1157 = vmatprep.subr.bf16.mxu0 0
  %1158 = vmatpush1.bf16.msra.mxu0 0
  %1159 = vmatprep.subr.bf16.mxu0 0
  %1160 = vmatpush1.bf16.msra.mxu0 0
  %1161 = vmatprep.subr.bf16.mxu0 0
  %1162 = vmatpush1.bf16.msra.mxu0 0
  %1163 = vmatprep.subr.bf16.mxu0 0
  %1164 = vmatpush1.bf16.msra.mxu0 0
  %1165 = vmatprep.subr.bf16.mxu0 0
  %1166 = vmatpush1.bf16.msra.mxu0 0
  %1167 = vmatprep.subr.bf16.mxu0 0
  %1168 = vmatpush1.bf16.msra.mxu0 0
  %1169 = vmatprep.subr.bf16.mxu0 0
  %1170 = vmatpush1.bf16.msra.mxu0 0
  %1171 = vmatprep.subr.bf16.mxu0 0
  %1172 = vmatpush1.bf16.msra.mxu0 0
  %1173 = vmatprep.subr.bf16.mxu0 0
  %1174 = vmatpush1.bf16.msra.mxu0 0
  %1175 = vmatprep.subr.bf16.mxu0 0
  %1176 = vmatpush1.bf16.msra.mxu0 0
  %1177 = vmatprep.subr.bf16.mxu0 0
  %1178 = vmatpush1.bf16.msra.mxu0 0
  %1179 = vmatprep.subr.bf16.mxu0 0
  %1180 = vmatpush1.bf16.msra.mxu0 0
  %1181 = vmatprep.subr.bf16.mxu0 0
  %1182 = vmatpush1.bf16.msra.mxu0 0
  %1183 = vmatprep.subr.bf16.mxu0 0
  %1184 = vmatpush1.bf16.msra.mxu0 0
  %1185 = vmatprep.subr.bf16.mxu0 0
  %1186 = vmatpush1.bf16.msra.mxu0 0
  %1187 = vmatprep.mubr.bf16.mxu0 0
  %1188 = vmatmul.mubr.bf16.gmra.mrb[0].mxu0 %v1150
  %v1189 = vpop.f32.mrb[0].mxu0
  %v1190 = vadd.f32 0.0, %v1189
  %v1191 = vpop.f32.mrb[0].mxu0
  %v1192 = vpop.f32.mrb[0].mxu0
  %v1193 = vpop.f32.mrb[0].mxu0
  %1194 = vdwg.mxu0
  %v1196 = vsel %vm487, %v1146, 0
  %v1199 = vsel %vm517, %v1148, 0
  %1201 = vmatprep.subr.bf16.mxu0 0
  %1202 = vmatpush1.bf16.msra.mxu0 %v1199
  %1203 = vmatprep.subr.bf16.mxu0 0
  %1204 = vmatpush1.bf16.msra.mxu0 0
  %1205 = vmatprep.subr.bf16.mxu0 0
  %1206 = vmatpush1.bf16.msra.mxu0 0
  %1207 = vmatprep.subr.bf16.mxu0 0
  %1208 = vmatpush1.bf16.msra.mxu0 0
  %1209 = vmatprep.subr.bf16.mxu0 0
  %1210 = vmatpush1.bf16.msra.mxu0 0
  %1211 = vmatprep.subr.bf16.mxu0 0
  %1212 = vmatpush1.bf16.msra.mxu0 0
  %1213 = vmatprep.subr.bf16.mxu0 0
  %1214 = vmatpush1.bf16.msra.mxu0 0
  %1215 = vmatprep.subr.bf16.mxu0 0
  %1216 = vmatpush1.bf16.msra.mxu0 0
  %1217 = vmatprep.subr.bf16.mxu0 0
  %1218 = vmatpush1.bf16.msra.mxu0 0
  %1219 = vmatprep.subr.bf16.mxu0 0
  %1220 = vmatpush1.bf16.msra.mxu0 0
  %1221 = vmatprep.subr.bf16.mxu0 0
  %1222 = vmatpush1.bf16.msra.mxu0 0
  %1223 = vmatprep.subr.bf16.mxu0 0
  %1224 = vmatpush1.bf16.msra.mxu0 0
  %1225 = vmatprep.subr.bf16.mxu0 0
  %1226 = vmatpush1.bf16.msra.mxu0 0
  %1227 = vmatprep.subr.bf16.mxu0 0
  %1228 = vmatpush1.bf16.msra.mxu0 0
  %1229 = vmatprep.subr.bf16.mxu0 0
  %1230 = vmatpush1.bf16.msra.mxu0 0
  %1231 = vmatprep.subr.bf16.mxu0 0
  %1232 = vmatpush1.bf16.msra.mxu0 0
  %1233 = vmatprep.mubr.bf16.mxu0 0
  %1234 = vmatmul.mubr.bf16.gmra.mrb[0].mxu0 %v1196
  %v1235 = vpop.f32.mrb[0].mxu0
  %v1236 = vadd.f32 0.0, %v1235
  %v1237 = vpop.f32.mrb[0].mxu0
  %v1238 = vpop.f32.mrb[0].mxu0
  %v1239 = vpop.f32.mrb[0].mxu0
  %1240 = vdwg.mxu0
  %v1241 = vpack.c.bf16 %v1236, %v1190
  %v1242 = vld [vmem:[%s15] sm:$0xf]
  %v1243 = vld [vmem:[%s15 + $0x4] sm:$0xf]
  %v1244 = vld [vmem:[%s15 + $0x8] sm:$0xf]
  %v1245 = vld [vmem:[%s15 + $0xc] sm:$0xf]
  %v1246 = vld [vmem:[%s15 + $0x10] sm:$0xf]
  %v1247 = vld [vmem:[%s15 + $0x14] sm:$0xf]
  %v1248 = vld [vmem:[%s15 + $0x18] sm:$0xf]
  %v1249 = vld [vmem:[%s15 + $0x1c] sm:$0xf]
  %v1250 = vld [vmem:[%s15 + $0x20] sm:$0xf]
  %v1251 = vld [vmem:[%s15 + $0x24] sm:$0xf]
  %v1252 = vld [vmem:[%s15 + $0x28] sm:$0xf]
  %v1253 = vld [vmem:[%s15 + $0x2c] sm:$0xf]
  %v1254 = vld [vmem:[%s15 + $0x30] sm:$0xf]
  %v1255 = vld [vmem:[%s15 + $0x34] sm:$0xf]
  %v1256 = vld [vmem:[%s15 + $0x38] sm:$0xf]
  %v1257 = vld [vmem:[%s15 + $0x3c] sm:$0xf]
  %v1258 = vld [vmem:[%s16] sm:$0x1]
  %v1260 = vlaneseq
  %v1261 = vshrl.u32 %v1260, 7
  %v1262 = vsub.s32 0, %v1261
  %v1263 = vrot.slane %v1258, %v1262
  %v1281 = vunpack.c.l.b16 %v1242
  %v1282 = vunpack.c.l.b16 %v1243
  %v1283 = vunpack.c.l.b16 %v1244
  %v1284 = vunpack.c.l.b16 %v1245
  %v1285 = vunpack.c.l.b16 %v1246
  %v1286 = vunpack.c.l.b16 %v1247
  %v1287 = vunpack.c.l.b16 %v1248
  %v1288 = vunpack.c.l.b16 %v1249
  %v1289 = vunpack.c.l.b16 %v1250
  %v1290 = vunpack.c.l.b16 %v1251
  %v1291 = vunpack.c.l.b16 %v1252
  %v1292 = vunpack.c.l.b16 %v1253
  %v1293 = vunpack.c.l.b16 %v1254
  %v1294 = vunpack.c.l.b16 %v1255
  %v1295 = vunpack.c.l.b16 %v1256
  %v1296 = vunpack.c.l.b16 %v1257
  %v1297 = vpack.c.b16 %v1282, %v1281
  %v1298 = vpack.c.b16 %v1284, %v1283
  %v1299 = vpack.c.b16 %v1286, %v1285
  %v1300 = vpack.c.b16 %v1288, %v1287
  %v1301 = vpack.c.b16 %v1290, %v1289
  %v1302 = vpack.c.b16 %v1292, %v1291
  %v1303 = vpack.c.b16 %v1294, %v1293
  %v1304 = vpack.c.b16 %v1296, %v1295
  %1313 = vmatprep.subr.bf16.mxu0 0
  %1314 = vmatpush1.bf16.msra.mxu0 %v1297
  %1315 = vmatprep.subr.bf16.mxu0 0
  %1316 = vmatpush1.bf16.msra.mxu0 %v1298
  %1317 = vmatprep.subr.bf16.mxu0 0
  %1318 = vmatpush1.bf16.msra.mxu0 %v1299
  %1319 = vmatprep.subr.bf16.mxu0 0
  %1320 = vmatpush1.bf16.msra.mxu0 %v1300
  %1321 = vmatprep.subr.bf16.mxu0 0
  %1322 = vmatpush1.bf16.msra.mxu0 %v1301
  %1323 = vmatprep.subr.bf16.mxu0 0
  %1324 = vmatpush1.bf16.msra.mxu0 %v1302
  %1325 = vmatprep.subr.bf16.mxu0 0
  %1326 = vmatpush1.bf16.msra.mxu0 %v1303
  %1327 = vmatprep.subr.bf16.mxu0 0
  %1328 = vmatpush1.bf16.msra.mxu0 %v1304
  %1329 = vmatprep.subr.bf16.mxu0 0
  %1330 = vmatpush1.bf16.msra.mxu0 0
  %1331 = vmatprep.subr.bf16.mxu0 0
  %1332 = vmatpush1.bf16.msra.mxu0 0
  %1333 = vmatprep.subr.bf16.mxu0 0
  %1334 = vmatpush1.bf16.msra.mxu0 0
  %1335 = vmatprep.subr.bf16.mxu0 0
  %1336 = vmatpush1.bf16.msra.mxu0 0
  %1337 = vmatprep.subr.bf16.mxu0 0
  %1338 = vmatpush1.bf16.msra.mxu0 0
  %1339 = vmatprep.subr.bf16.mxu0 0
  %1340 = vmatpush1.bf16.msra.mxu0 0
  %1341 = vmatprep.subr.bf16.mxu0 0
  %1342 = vmatpush1.bf16.msra.mxu0 0
  %1343 = vmatprep.subr.bf16.mxu0 0
  %1344 = vmatpush1.bf16.msra.mxu0 0
  %1345 = vmatprep.mubr.bf16.mxu0 0
  %1346 = vmatmul.mubr.bf16.gmra.mrb[0].mxu0 %v1241
  %v1347 = vpop.f32.mrb[0].mxu0
  %v1348 = vadd.f32 %v1263, %v1347
  %v1349 = vpop.f32.mrb[0].mxu0
  %v1350 = vpop.f32.mrb[0].mxu0
  %v1351 = vadd.f32 %v1263, %v1350
  %v1352 = vpop.f32.mrb[0].mxu0
  %1353 = vdwg.mxu0
  %v1354 = vadd.f32 %v761, %v1348
  %v1355 = vadd.f32 %v762, %v1351
  %v1356 = vld [vmem:[%s17] sm:$0x1]
  %v1357 = vld [vmem:[%s18] sm:$0x1]
  %1358 = vadd.xlane.f32.xlu0 %v1354
  %v1359 = vpop.xlane.xlu0 %1358
  %1360 = vadd.xlane.f32.xlu0 %v1355
  %v1361 = vpop.xlane.xlu0 %1360
  %v1362 = vmul.f32 %v1359, %v728
  %v1363 = vmul.f32 %v1361, %v728
  %v1364 = vsub.f32 %v1354, %v1362
  %v1365 = vsub.f32 %v1355, %v1363
  %v1366 = vmul.f32 %v1364, %v1364
  %v1367 = vmul.f32 %v1365, %v1365
  %1368 = vadd.xlane.f32.xlu0 %v1366
  %v1369 = vpop.xlane.xlu0 %1368
  %1370 = vadd.xlane.f32.xlu0 %v1367
  %v1371 = vpop.xlane.xlu0 %1370
  %v1372 = vmul.f32 %v1369, %v728
  %v1373 = vmul.f32 %v1371, %v728
  %v1374 = vadd.f32 %v1372, 1e-05
  %v1375 = vadd.f32 %v1373, 1e-05
  %v1376 = vrsqrt.pop %v1374
  %v1377 = vrsqrt.pop %v1375
  %v1378 = vmul.f32 %v1364, %v1376
  %v1379 = vmul.f32 %v1365, %v1377
  %v1381 = vlaneseq
  %v1382 = vshrl.u32 %v1381, 7
  %v1383 = vsub.s32 0, %v1382
  %v1384 = vrot.slane %v1356, %v1383
  %v1386 = vmul.f32 %v1378, %v1384
  %v1387 = vmul.f32 %v1379, %v1384
  %v1389 = vlaneseq
  %v1390 = vshrl.u32 %v1389, 7
  %v1391 = vsub.s32 0, %v1390
  %v1392 = vrot.slane %v1357, %v1391
  %v1394 = vadd.f32 %v1386, %v1392
  %v1395 = vadd.f32 %v1387, %v1392
  %v1396 = vpack.c.bf16 %v1395, %v1394
  %v1397 = vld [vmem:[%s19] sm:$0xff]
  %v1398 = vld [vmem:[%s19 + $0x8] sm:$0xff]
  %v1399 = vld [vmem:[%s19 + $0x10] sm:$0xff]
  %v1400 = vld [vmem:[%s19 + $0x18] sm:$0xff]
  %v1401 = vld [vmem:[%s19 + $0x20] sm:$0xff]
  %v1402 = vld [vmem:[%s19 + $0x28] sm:$0xff]
  %v1403 = vld [vmem:[%s19 + $0x30] sm:$0xff]
  %v1404 = vld [vmem:[%s19 + $0x38] sm:$0xff]
  %v1405 = vld [vmem:[%s19 + $0x40] sm:$0xff]
  %v1406 = vld [vmem:[%s19 + $0x48] sm:$0xff]
  %v1407 = vld [vmem:[%s19 + $0x50] sm:$0xff]
  %v1408 = vld [vmem:[%s19 + $0x58] sm:$0xff]
  %v1409 = vld [vmem:[%s19 + $0x60] sm:$0xff]
  %v1410 = vld [vmem:[%s19 + $0x68] sm:$0xff]
  %v1411 = vld [vmem:[%s19 + $0x70] sm:$0xff]
  %v1412 = vld [vmem:[%s19 + $0x78] sm:$0xff]
  %v1413 = vld [vmem:[%s20] sm:$0x3]
  %v1415 = vlaneseq
  %v1416 = vshrl.u32 %v1415, 7
  %v1417 = vsub.s32 0, %v1416
  %v1418 = vrot.slane %v1413, %v1417
  %v1419 = vlaneseq
  %v1420 = vshrl.u32 %v1419, 7
  %v1421 = vsub.s32 1, %v1420
  %v1422 = vrot.slane %v1413, %v1421
  %v1441 = vunpack.c.l.b16 %v1397
  %v1442 = vunpack.c.h.b16 %v1397
  %v1443 = vunpack.c.l.b16 %v1398
  %v1444 = vunpack.c.h.b16 %v1398
  %v1445 = vunpack.c.l.b16 %v1399
  %v1446 = vunpack.c.h.b16 %v1399
  %v1447 = vunpack.c.l.b16 %v1400
  %v1448 = vunpack.c.h.b16 %v1400
  %v1449 = vunpack.c.l.b16 %v1401
  %v1450 = vunpack.c.h.b16 %v1401
  %v1451 = vunpack.c.l.b16 %v1402
  %v1452 = vunpack.c.h.b16 %v1402
  %v1453 = vunpack.c.l.b16 %v1403
  %v1454 = vunpack.c.h.b16 %v1403
  %v1455 = vunpack.c.l.b16 %v1404
  %v1456 = vunpack.c.h.b16 %v1404
  %v1457 = vunpack.c.l.b16 %v1405
  %v1458 = vunpack.c.h.b16 %v1405
  %v1459 = vunpack.c.l.b16 %v1406
  %v1460 = vunpack.c.h.b16 %v1406
  %v1461 = vunpack.c.l.b16 %v1407
  %v1462 = vunpack.c.h.b16 %v1407
  %v1463 = vunpack.c.l.b16 %v1408
  %v1464 = vunpack.c.h.b16 %v1408
  %v1465 = vunpack.c.l.b16 %v1409
  %v1466 = vunpack.c.h.b16 %v1409
  %v1467 = vunpack.c.l.b16 %v1410
  %v1468 = vunpack.c.h.b16 %v1410
  %v1469 = vunpack.c.l.b16 %v1411
  %v1470 = vunpack.c.h.b16 %v1411
  %v1471 = vunpack.c.l.b16 %v1412
  %v1472 = vunpack.c.h.b16 %v1412
  %v1473 = vpack.c.b16 %v1443, %v1441
  %v1474 = vpack.c.b16 %v1444, %v1442
  %v1475 = vpack.c.b16 %v1447, %v1445
  %v1476 = vpack.c.b16 %v1448, %v1446
  %v1477 = vpack.c.b16 %v1451, %v1449
  %v1478 = vpack.c.b16 %v1452, %v1450
  %v1479 = vpack.c.b16 %v1455, %v1453
  %v1480 = vpack.c.b16 %v1456, %v1454
  %v1481 = vpack.c.b16 %v1459, %v1457
  %v1482 = vpack.c.b16 %v1460, %v1458
  %v1483 = vpack.c.b16 %v1463, %v1461
  %v1484 = vpack.c.b16 %v1464, %v1462
  %v1485 = vpack.c.b16 %v1467, %v1465
  %v1486 = vpack.c.b16 %v1468, %v1466
  %v1487 = vpack.c.b16 %v1471, %v1469
  %v1488 = vpack.c.b16 %v1472, %v1470
  %1505 = vmatprep.subr.bf16.mxu0 %v1474
  %1506 = vmatpush1.bf16.msra.mxu0 %v1473
  %1507 = vmatprep.subr.bf16.mxu0 %v1476
  %1508 = vmatpush1.bf16.msra.mxu0 %v1475
  %1509 = vmatprep.subr.bf16.mxu0 %v1478
  %1510 = vmatpush1.bf16.msra.mxu0 %v1477
  %1511 = vmatprep.subr.bf16.mxu0 %v1480
  %1512 = vmatpush1.bf16.msra.mxu0 %v1479
  %1513 = vmatprep.subr.bf16.mxu0 %v1482
  %1514 = vmatpush1.bf16.msra.mxu0 %v1481
  %1515 = vmatprep.subr.bf16.mxu0 %v1484
  %1516 = vmatpush1.bf16.msra.mxu0 %v1483
  %1517 = vmatprep.subr.bf16.mxu0 %v1486
  %1518 = vmatpush1.bf16.msra.mxu0 %v1485
  %1519 = vmatprep.subr.bf16.mxu0 %v1488
  %1520 = vmatpush1.bf16.msra.mxu0 %v1487
  %1521 = vmatprep.subr.bf16.mxu0 0
  %1522 = vmatpush1.bf16.msra.mxu0 0
  %1523 = vmatprep.subr.bf16.mxu0 0
  %1524 = vmatpush1.bf16.msra.mxu0 0
  %1525 = vmatprep.subr.bf16.mxu0 0
  %1526 = vmatpush1.bf16.msra.mxu0 0
  %1527 = vmatprep.subr.bf16.mxu0 0
  %1528 = vmatpush1.bf16.msra.mxu0 0
  %1529 = vmatprep.subr.bf16.mxu0 0
  %1530 = vmatpush1.bf16.msra.mxu0 0
  %1531 = vmatprep.subr.bf16.mxu0 0
  %1532 = vmatpush1.bf16.msra.mxu0 0
  %1533 = vmatprep.subr.bf16.mxu0 0
  %1534 = vmatpush1.bf16.msra.mxu0 0
  %1535 = vmatprep.subr.bf16.mxu0 0
  %1536 = vmatpush1.bf16.msra.mxu0 0
  %1537 = vmatprep.mubr.bf16.mxu0 0
  %1538 = vmatmul.mubr.bf16.gmra.mrb[0].mxu0 %v1396
  %v1539 = vpop.f32.mrb[0].mxu0
  %v1540 = vadd.f32 %v1418, %v1539
  %v1541 = vpop.f32.mrb[0].mxu0
  %v1542 = vadd.f32 %v1422, %v1541
  %v1543 = vpop.f32.mrb[0].mxu0
  %v1544 = vadd.f32 %v1418, %v1543
  %v1545 = vpop.f32.mrb[0].mxu0
  %v1546 = vadd.f32 %v1422, %v1545
  %1547 = vdwg.mxu0
  %v1548 = vmax.f32 %v1540, 0.0
  %v1549 = vmax.f32 %v1542, 0.0
  %v1550 = vmax.f32 %v1544, 0.0
  %v1551 = vmax.f32 %v1546, 0.0
  %v1552 = vpack.c.bf16 %v1550, %v1548
  %v1553 = vpack.c.bf16 %v1551, %v1549
  %v1554 = vld [vmem:[%s21] sm:$0xf]
  %v1555 = vld [vmem:[%s21 + $0x4] sm:$0xf]
  %v1556 = vld [vmem:[%s21 + $0x8] sm:$0xf]
  %v1557 = vld [vmem:[%s21 + $0xc] sm:$0xf]
  %v1558 = vld [vmem:[%s21 + $0x10] sm:$0xf]
  %v1559 = vld [vmem:[%s21 + $0x14] sm:$0xf]
  %v1560 = vld [vmem:[%s21 + $0x18] sm:$0xf]
  %v1561 = vld [vmem:[%s21 + $0x1c] sm:$0xf]
  %v1562 = vld [vmem:[%s21 + $0x20] sm:$0xf]
  %v1563 = vld [vmem:[%s21 + $0x24] sm:$0xf]
  %v1564 = vld [vmem:[%s21 + $0x28] sm:$0xf]
  %v1565 = vld [vmem:[%s21 + $0x2c] sm:$0xf]
  %v1566 = vld [vmem:[%s21 + $0x30] sm:$0xf]
  %v1567 = vld [vmem:[%s21 + $0x34] sm:$0xf]
  %v1568 = vld [vmem:[%s21 + $0x38] sm:$0xf]
  %v1569 = vld [vmem:[%s21 + $0x3c] sm:$0xf]
  %v1570 = vld [vmem:[%s21 + $0x40] sm:$0xf]
  %v1571 = vld [vmem:[%s21 + $0x44] sm:$0xf]
  %v1572 = vld [vmem:[%s21 + $0x48] sm:$0xf]
  %v1573 = vld [vmem:[%s21 + $0x4c] sm:$0xf]
  %v1574 = vld [vmem:[%s21 + $0x50] sm:$0xf]
  %v1575 = vld [vmem:[%s21 + $0x54] sm:$0xf]
  %v1576 = vld [vmem:[%s21 + $0x58] sm:$0xf]
  %v1577 = vld [vmem:[%s21 + $0x5c] sm:$0xf]
  %v1578 = vld [vmem:[%s21 + $0x60] sm:$0xf]
  %v1579 = vld [vmem:[%s21 + $0x64] sm:$0xf]
  %v1580 = vld [vmem:[%s21 + $0x68] sm:$0xf]
  %v1581 = vld [vmem:[%s21 + $0x6c] sm:$0xf]
  %v1582 = vld [vmem:[%s21 + $0x70] sm:$0xf]
  %v1583 = vld [vmem:[%s21 + $0x74] sm:$0xf]
  %v1584 = vld [vmem:[%s21 + $0x78] sm:$0xf]
  %v1585 = vld [vmem:[%s21 + $0x7c] sm:$0xf]
  %v1586 = vld [vmem:[%s22] sm:$0x1]
  %v1588 = vlaneseq
  %v1589 = vshrl.u32 %v1588, 7
  %v1590 = vsub.s32 0, %v1589
  %v1591 = vrot.slane %v1586, %v1590
  %v1625 = vunpack.c.l.b16 %v1554
  %v1626 = vunpack.c.l.b16 %v1555
  %v1627 = vunpack.c.l.b16 %v1556
  %v1628 = vunpack.c.l.b16 %v1557
  %v1629 = vunpack.c.l.b16 %v1558
  %v1630 = vunpack.c.l.b16 %v1559
  %v1631 = vunpack.c.l.b16 %v1560
  %v1632 = vunpack.c.l.b16 %v1561
  %v1633 = vunpack.c.l.b16 %v1562
  %v1634 = vunpack.c.l.b16 %v1563
  %v1635 = vunpack.c.l.b16 %v1564
  %v1636 = vunpack.c.l.b16 %v1565
  %v1637 = vunpack.c.l.b16 %v1566
  %v1638 = vunpack.c.l.b16 %v1567
  %v1639 = vunpack.c.l.b16 %v1568
  %v1640 = vunpack.c.l.b16 %v1569
  %v1641 = vunpack.c.l.b16 %v1570
  %v1642 = vunpack.c.l.b16 %v1571
  %v1643 = vunpack.c.l.b16 %v1572
  %v1644 = vunpack.c.l.b16 %v1573
  %v1645 = vunpack.c.l.b16 %v1574
  %v1646 = vunpack.c.l.b16 %v1575
  %v1647 = vunpack.c.l.b16 %v1576
  %v1648 = vunpack.c.l.b16 %v1577
  %v1649 = vunpack.c.l.b16 %v1578
  %v1650 = vunpack.c.l.b16 %v1579
  %v1651 = vunpack.c.l.b16 %v1580
  %v1652 = vunpack.c.l.b16 %v1581
  %v1653 = vunpack.c.l.b16 %v1582
  %v1654 = vunpack.c.l.b16 %v1583
  %v1655 = vunpack.c.l.b16 %v1584
  %v1656 = vunpack.c.l.b16 %v1585
  %v1657 = vpack.c.b16 %v1626, %v1625
  %v1658 = vpack.c.b16 %v1628, %v1627
  %v1659 = vpack.c.b16 %v1630, %v1629
  %v1660 = vpack.c.b16 %v1632, %v1631
  %v1661 = vpack.c.b16 %v1634, %v1633
  %v1662 = vpack.c.b16 %v1636, %v1635
  %v1663 = vpack.c.b16 %v1638, %v1637
  %v1664 = vpack.c.b16 %v1640, %v1639
  %v1665 = vpack.c.b16 %v1642, %v1641
  %v1666 = vpack.c.b16 %v1644, %v1643
  %v1667 = vpack.c.b16 %v1646, %v1645
  %v1668 = vpack.c.b16 %v1648, %v1647
  %v1669 = vpack.c.b16 %v1650, %v1649
  %v1670 = vpack.c.b16 %v1652, %v1651
  %v1671 = vpack.c.b16 %v1654, %v1653
  %v1672 = vpack.c.b16 %v1656, %v1655
  %1689 = vmatprep.subr.bf16.mxu0 0
  %1690 = vmatpush1.bf16.msra.mxu0 %v1657
  %1691 = vmatprep.subr.bf16.mxu0 0
  %1692 = vmatpush1.bf16.msra.mxu0 %v1658
  %1693 = vmatprep.subr.bf16.mxu0 0
  %1694 = vmatpush1.bf16.msra.mxu0 %v1659
  %1695 = vmatprep.subr.bf16.mxu0 0
  %1696 = vmatpush1.bf16.msra.mxu0 %v1660
  %1697 = vmatprep.subr.bf16.mxu0 0
  %1698 = vmatpush1.bf16.msra.mxu0 %v1661
  %1699 = vmatprep.subr.bf16.mxu0 0
  %1700 = vmatpush1.bf16.msra.mxu0 %v1662
  %1701 = vmatprep.subr.bf16.mxu0 0
  %1702 = vmatpush1.bf16.msra.mxu0 %v1663
  %1703 = vmatprep.subr.bf16.mxu0 0
  %1704 = vmatpush1.bf16.msra.mxu0 %v1664
  %1705 = vmatprep.subr.bf16.mxu0 0
  %1706 = vmatpush1.bf16.msra.mxu0 %v1665
  %1707 = vmatprep.subr.bf16.mxu0 0
  %1708 = vmatpush1.bf16.msra.mxu0 %v1666
  %1709 = vmatprep.subr.bf16.mxu0 0
  %1710 = vmatpush1.bf16.msra.mxu0 %v1667
  %1711 = vmatprep.subr.bf16.mxu0 0
  %1712 = vmatpush1.bf16.msra.mxu0 %v1668
  %1713 = vmatprep.subr.bf16.mxu0 0
  %1714 = vmatpush1.bf16.msra.mxu0 %v1669
  %1715 = vmatprep.subr.bf16.mxu0 0
  %1716 = vmatpush1.bf16.msra.mxu0 %v1670
  %1717 = vmatprep.subr.bf16.mxu0 0
  %1718 = vmatpush1.bf16.msra.mxu0 %v1671
  %1719 = vmatprep.subr.bf16.mxu0 0
  %1720 = vmatpush1.bf16.msra.mxu0 %v1672
  %1721 = vmatprep.mubr.bf16.mxu0 %v1553
  %1722 = vmatmul.mubr.bf16.gmra.mrb[0].mxu0 %v1552
  %v1723 = vpop.f32.mrb[0].mxu0
  %v1724 = vadd.f32 %v1591, %v1723
  %v1725 = vpop.f32.mrb[0].mxu0
  %v1726 = vpop.f32.mrb[0].mxu0
  %v1727 = vadd.f32 %v1591, %v1726
  %v1728 = vpop.f32.mrb[0].mxu0
  %1729 = vdwg.mxu0
  %v1730 = vadd.f32 %v1394, %v1724
  %v1731 = vadd.f32 %v1395, %v1727
  %v1732 = vld [vmem:[%s23] sm:$0x1]
  %v1733 = vld [vmem:[%s24] sm:$0x1]
  %1734 = vadd.xlane.f32.xlu0 %v1730
  %v1735 = vpop.xlane.xlu0 %1734
  %1736 = vadd.xlane.f32.xlu0 %v1731
  %v1737 = vpop.xlane.xlu0 %1736
  %v1738 = vmul.f32 %v1735, %v728
  %v1739 = vmul.f32 %v1737, %v728
  %v1740 = vsub.f32 %v1730, %v1738
  %v1741 = vsub.f32 %v1731, %v1739
  %v1742 = vmul.f32 %v1740, %v1740
  %v1743 = vmul.f32 %v1741, %v1741
  %1744 = vadd.xlane.f32.xlu0 %v1742
  %v1745 = vpop.xlane.xlu0 %1744
  %1746 = vadd.xlane.f32.xlu0 %v1743
  %v1747 = vpop.xlane.xlu0 %1746
  %v1748 = vmul.f32 %v1745, %v728
  %v1749 = vmul.f32 %v1747, %v728
  %v1750 = vadd.f32 %v1748, 1e-05
  %v1751 = vadd.f32 %v1749, 1e-05
  %v1752 = vrsqrt.pop %v1750
  %v1753 = vrsqrt.pop %v1751
  %v1754 = vmul.f32 %v1740, %v1752
  %v1755 = vmul.f32 %v1741, %v1753
  %v1757 = vlaneseq
  %v1758 = vshrl.u32 %v1757, 7
  %v1759 = vsub.s32 0, %v1758
  %v1760 = vrot.slane %v1732, %v1759
  %v1762 = vmul.f32 %v1754, %v1760
  %v1763 = vmul.f32 %v1755, %v1760
  %v1765 = vlaneseq
  %v1766 = vshrl.u32 %v1765, 7
  %v1767 = vsub.s32 0, %v1766
  %v1768 = vrot.slane %v1733, %v1767
  %v1770 = vadd.f32 %v1762, %v1768
  %v1771 = vadd.f32 %v1763, %v1768
  %v1772 = vpack.c.bf16 %v1770, %v1770
  %v1773 = vpack.c.bf16 %v1771, %v1771
  %1774 = vst [vmem:[%s25] sm:$0xf] %v1772
  %1775 = vst [vmem:[%s25 + $0x4] sm:$0xf] %v1773
  // Predicated region
  $region102: #{transformer_decoder_forward.4} parent=0 // pred_check
    _
  $region103: #{transformer_decoder_forward.4} parent=0 // pred_check_branch
    %1777 = sbr.rel (0) target = $region105
  $region104: #{transformer_decoder_forward.4} parent=0 // pred_region
    _
  $region105: #{transformer_decoder_forward.4} parent=0 // pred_fallthru
    _
  // Predicated region
  $region106: #{transformer_decoder_forward.4} parent=0 // pred_check
    _
  $region107: #{transformer_decoder_forward.4} parent=0 // pred_check_branch
    %1779 = sbr.rel (0) target = $region109
  $region108: #{transformer_decoder_forward.4} parent=0 // pred_region
    _
  $region109: #{transformer_decoder_forward.4} parent=0 // pred_fallthru
    _

</llo_original>
